<compile_context>
chip_gen: v7x
topology: tpu7x:2x2x1
jax: 0.10.0
libtpu: 0.0.40
codegen_flags: <defaults>
</compile_context>

<pallas_src>
import functools

import jax
import jax.numpy as jnp
from jax.experimental import pallas as pl
from jax.experimental.pallas import tpu as pltpu


# Logical layer sizes of MLP3: 10 -> 200 -> 500 -> 500 -> 100 -> 50 -> 1
LAYER_SIZES = [10, 200, 500, 500, 100, 50, 1]


def _round_up(x: int, m: int) -> int:
    return ((x + m - 1) // m) * m


def mlp3_kernel(x_ref,
                w1, b1, w2, b2, w3, b3, w4, b4, w5, b5, w6, b6,
                o_ref):
    """Fused forward for one batch tile.

    5x (bf16 MXU matmul -> f32 bias + ReLU) followed by the final 50->1 projection
    implemented as a broadcast multiply + lane-sum (padded lanes are exactly zero
    on both operands, so this equals the logical 50x1 matmul).
    """
    h = x_ref[...]                                            # bf16 (TM, 10)
    for w_ref, b_ref in ((w1, b1), (w2, b2), (w3, b3), (w4, b4), (w5, b5)):
        y = jnp.dot(h, w_ref[...],
                    preferred_element_type=jnp.float32) + b_ref[...]  # f32 acc + f32 bias
        h = jnp.maximum(y, 0.0).astype(jnp.bfloat16)          # f32 ReLU, bf16 for next MXU pass
    o_ref[...] = (jnp.sum(h.astype(jnp.float32) * w6[...], axis=-1, keepdims=True)
                  + b6[...])


def init_params(key, layer_sizes=LAYER_SIZES, dtype=jnp.float32):
    """Deterministic init mimicking PyTorch's default U(-1/sqrt(fan_in), 1/sqrt(fan_in))."""
    params = []
    for i in range(len(layer_sizes) - 1):
        fan_in, fan_out = layer_sizes[i], layer_sizes[i + 1]
        key, kw, kb = jax.random.split(key, 3)
        bound = 1.0 / (fan_in ** 0.5)
        w = jax.random.uniform(kw, (fan_in, fan_out), dtype, -bound, bound)
        b = jax.random.uniform(kb, (fan_out,), dtype, -bound, bound)
        params.append((w, b))
    return params


def prepare_params(params):
    """Pad feature dims to 128 multiples; cast matmul weights to bf16, biases stay f32.

    Layer 1 keeps its logical in-dim (10) to match the unpadded input.  The final
    layer (50 -> 1) is stored as a zero-padded f32 row (1, 128) plus a (1, 1) bias
    and evaluated as a lane reduction in the kernel.
    """
    flat = []
    for i, (w, b) in enumerate(params[:-1]):               # layers 1..5 (MXU path)
        fin, fout = w.shape
        fin_p = fin if i == 0 else _round_up(fin, 128)
        fout_p = _round_up(fout, 128)
        w_p = (jnp.zeros((fin_p, fout_p), jnp.float32)
               .at[:fin, :fout].set(w).astype(jnp.bfloat16))
        b_p = jnp.zeros((1, fout_p), jnp.float32).at[0, :fout].set(b)
        flat += [w_p, b_p]
    w6, b6 = params[-1]                                     # (50, 1), (1,)
    fin = w6.shape[0]
    fin_p = _round_up(fin, 128)
    w6_row = jnp.zeros((1, fin_p), jnp.float32).at[0, :fin].set(w6[:, 0])
    b6_p = jnp.asarray(b6, jnp.float32).reshape(1, 1)
    flat += [w6_row, b6_p]
    return flat


@functools.partial(jax.jit, static_argnames=("tm",))
def mlp3_forward(x, params_flat, *, tm=512):
    """x: (batch, 10) float32. Returns (batch, 1) float32."""
    batch, in_feat = x.shape

    # Batch tile: multiple of 8, no larger than needed.  TM=512 keeps the largest
    # live f32 intermediate (TM x 512) at 1 MiB -> comfortably inside scoped VMEM.
    tm_eff = _round_up(min(tm, _round_up(batch, 8)), 8)
    batch_p = _round_up(batch, tm_eff)
    n_tiles = batch_p // tm_eff

    # Only the batch dim is padded; features stay at their logical extent (10).
    x_b = x.astype(jnp.bfloat16)
    if batch_p != batch:
        x_b = jnp.zeros((batch_p, in_feat), jnp.bfloat16).at[:batch, :].set(x_b)

    # x / out tiles march with the grid; weights & biases use a constant block index
    # so they are fetched once and stay VMEM-resident across all batch tiles.
    x_spec = pl.BlockSpec((tm_eff, in_feat), lambda i: (i, 0))
    param_specs = [pl.BlockSpec(p.shape, lambda i: (0, 0)) for p in params_flat]
    out_spec = pl.BlockSpec((tm_eff, 1), lambda i: (i, 0))

    # Advisory cost estimate for XLA's scheduler around the custom call.
    flops = 0
    for li in range(5):
        w = params_flat[2 * li]
        flops += 2 * batch_p * w.shape[0] * w.shape[1]
    flops += 2 * batch_p * params_flat[10].shape[1]           # final lane reduction
    bytes_accessed = (sum(p.size * p.dtype.itemsize for p in params_flat)
                      + x_b.size * x_b.dtype.itemsize
                      + batch_p * 4)
    cost = pl.CostEstimate(flops=flops, transcendentals=0,
                           bytes_accessed=bytes_accessed)

    out_p = pl.pallas_call(
        mlp3_kernel,
        out_shape=jax.ShapeDtypeStruct((batch_p, 1), jnp.float32),
        grid_spec=pltpu.PrefetchScalarGridSpec(
            num_scalar_prefetch=0,
            grid=(n_tiles,),
            in_specs=[x_spec] + param_specs,
            out_specs=out_spec,
        ),
        compiler_params=pltpu.CompilerParams(
            dimension_semantics=("parallel",)),   # shard batch tiles across v7x TCs
        cost_estimate=cost,
    )(x_b, *params_flat)

    return out_p[:batch] if batch_p != batch else out_p


def reference_forward_bf16(x, params):
    """Matched reference: bf16 inputs/weights, f32 accumulation, f32 bias/ReLU."""
    h = x.astype(jnp.bfloat16)
    n = len(params)
    for i, (w, b) in enumerate(params):
        if i < n - 1:
            y = jnp.dot(h, w.astype(jnp.bfloat16),
                        preferred_element_type=jnp.float32) + b.astype(jnp.float32)
            h = jnp.maximum(y, 0.0).astype(jnp.bfloat16)
        else:
            # Final layer is evaluated in f32 in the kernel.
            y = jnp.dot(h.astype(jnp.float32), w.astype(jnp.float32)) + b.astype(jnp.float32)
            h = y
    return h


if __name__ == "__main__":
    key = jax.random.PRNGKey(0)
    k_params, k_x = jax.random.split(key)

    params = init_params(k_params)           # logical-shape f32 params
    params_flat = prepare_params(params)     # padded / bf16 params for the kernel

    batch, input_features = 256, LAYER_SIZES[0]
    x = jax.random.normal(k_x, (batch, input_features), dtype=jnp.float32)

    out = mlp3_forward(x, params_flat, tm=128)   # 2 grid steps at this batch size
    out = jax.block_until_ready(out)

    ref = reference_forward_bf16(x, params)
    assert out.shape == (batch, LAYER_SIZES[-1]), out.shape
    assert jnp.allclose(out, ref, atol=1e-3, rtol=1e-3), (
        float(jnp.max(jnp.abs(out - ref))))

    print("KERNEL_OK")
</pallas_src>

<mosaic_0001>
module attributes {stable_mosaic.version = 11 : i64} {
  func.func @mlp3_kernel(%arg0: i32, %arg1: memref<128x10xbf16, #tpu.memory_space<vmem>>, %arg2: memref<10x256xbf16, #tpu.memory_space<vmem>>, %arg3: memref<1x256xf32, #tpu.memory_space<vmem>>, %arg4: memref<256x512xbf16, #tpu.memory_space<vmem>>, %arg5: memref<1x512xf32, #tpu.memory_space<vmem>>, %arg6: memref<512x512xbf16, #tpu.memory_space<vmem>>, %arg7: memref<1x512xf32, #tpu.memory_space<vmem>>, %arg8: memref<512x128xbf16, #tpu.memory_space<vmem>>, %arg9: memref<1x128xf32, #tpu.memory_space<vmem>>, %arg10: memref<128x128xbf16, #tpu.memory_space<vmem>>, %arg11: memref<1x128xf32, #tpu.memory_space<vmem>>, %arg12: memref<1x128xf32, #tpu.memory_space<vmem>>, %arg13: memref<1x1xf32, #tpu.memory_space<vmem>>, %arg14: memref<128x1xf32, #tpu.memory_space<vmem>>) attributes {dimension_semantics = [#tpu.dimension_semantics<parallel>], iteration_bounds = array<i64: 2>, scalar_prefetch = 0 : i64, scratch_operands = 0 : i64, tpu.core_type = #tpu.core_type<tc>, window_params = [{transform_indices = @transform_0, window_bounds = array<i64: 128, 10>}, {pipeline_mode = #tpu.pipeline_mode<synchronous>, transform_indices = @transform_1, window_bounds = array<i64: 10, 256>}, {pipeline_mode = #tpu.pipeline_mode<synchronous>, transform_indices = @transform_2, window_bounds = array<i64: 1, 256>}, {pipeline_mode = #tpu.pipeline_mode<synchronous>, transform_indices = @transform_3, window_bounds = array<i64: 256, 512>}, {pipeline_mode = #tpu.pipeline_mode<synchronous>, transform_indices = @transform_4, window_bounds = array<i64: 1, 512>}, {pipeline_mode = #tpu.pipeline_mode<synchronous>, transform_indices = @transform_5, window_bounds = array<i64: 512, 512>}, {pipeline_mode = #tpu.pipeline_mode<synchronous>, transform_indices = @transform_6, window_bounds = array<i64: 1, 512>}, {pipeline_mode = #tpu.pipeline_mode<synchronous>, transform_indices = @transform_7, window_bounds = array<i64: 512, 128>}, {pipeline_mode = #tpu.pipeline_mode<synchronous>, transform_indices = @transform_8, window_bounds = array<i64: 1, 128>}, {pipeline_mode = #tpu.pipeline_mode<synchronous>, transform_indices = @transform_9, window_bounds = array<i64: 128, 128>}, {pipeline_mode = #tpu.pipeline_mode<synchronous>, transform_indices = @transform_10, window_bounds = array<i64: 1, 128>}, {pipeline_mode = #tpu.pipeline_mode<synchronous>, transform_indices = @transform_11, window_bounds = array<i64: 1, 128>}, {pipeline_mode = #tpu.pipeline_mode<synchronous>, transform_indices = @transform_12, window_bounds = array<i64: 1, 1>}, {transform_indices = @transform_13, window_bounds = array<i64: 128, 1>}]} {
    %c0 = arith.constant 0 : index
    %c0_0 = arith.constant 0 : index
    %0 = vector.load %arg1[%c0, %c0_0] : memref<128x10xbf16, #tpu.memory_space<vmem>>, vector<128x10xbf16>
    %c0_1 = arith.constant 0 : index
    %c0_2 = arith.constant 0 : index
    %1 = vector.load %arg2[%c0_1, %c0_2] : memref<10x256xbf16, #tpu.memory_space<vmem>>, vector<10x256xbf16>
    %cst = arith.constant dense<0.000000e+00> : vector<128x256xf32>
    %2 = tpu.matmul %0, %1, %cst {dimension_numbers = #tpu.dot_dimension_numbers<[1], [0], [0], [1], [0, 0, 1, 1], [], []>} : vector<128x10xbf16>, vector<10x256xbf16>, vector<128x256xf32> -> vector<128x256xf32>
    %c0_3 = arith.constant 0 : index
    %c0_4 = arith.constant 0 : index
    %3 = vector.load %arg3[%c0_3, %c0_4] : memref<1x256xf32, #tpu.memory_space<vmem>>, vector<1x256xf32>
    %4 = vector.broadcast %3 : vector<1x256xf32> to vector<128x256xf32>
    %5 = arith.addf %2, %4 : vector<128x256xf32>
    %cst_5 = arith.constant 0.000000e+00 : f32
    %6 = vector.broadcast %cst_5 : f32 to vector<128x256xf32>
    %7 = arith.maximumf %5, %6 : vector<128x256xf32>
    %8 = arith.truncf %7 : vector<128x256xf32> to vector<128x256xbf16>
    %c0_6 = arith.constant 0 : index
    %c0_7 = arith.constant 0 : index
    %9 = vector.load %arg4[%c0_6, %c0_7] : memref<256x512xbf16, #tpu.memory_space<vmem>>, vector<256x512xbf16>
    %cst_8 = arith.constant dense<0.000000e+00> : vector<128x512xf32>
    %10 = tpu.matmul %8, %9, %cst_8 {dimension_numbers = #tpu.dot_dimension_numbers<[1], [0], [0], [1], [0, 0, 1, 1], [], []>} : vector<128x256xbf16>, vector<256x512xbf16>, vector<128x512xf32> -> vector<128x512xf32>
    %c0_9 = arith.constant 0 : index
    %c0_10 = arith.constant 0 : index
    %11 = vector.load %arg5[%c0_9, %c0_10] : memref<1x512xf32, #tpu.memory_space<vmem>>, vector<1x512xf32>
    %12 = vector.broadcast %11 : vector<1x512xf32> to vector<128x512xf32>
    %13 = arith.addf %10, %12 : vector<128x512xf32>
    %cst_11 = arith.constant 0.000000e+00 : f32
    %14 = vector.broadcast %cst_11 : f32 to vector<128x512xf32>
    %15 = arith.maximumf %13, %14 : vector<128x512xf32>
    %16 = arith.truncf %15 : vector<128x512xf32> to vector<128x512xbf16>
    %c0_12 = arith.constant 0 : index
    %c0_13 = arith.constant 0 : index
    %17 = vector.load %arg6[%c0_12, %c0_13] : memref<512x512xbf16, #tpu.memory_space<vmem>>, vector<512x512xbf16>
    %cst_14 = arith.constant dense<0.000000e+00> : vector<128x512xf32>
    %18 = tpu.matmul %16, %17, %cst_14 {dimension_numbers = #tpu.dot_dimension_numbers<[1], [0], [0], [1], [0, 0, 1, 1], [], []>} : vector<128x512xbf16>, vector<512x512xbf16>, vector<128x512xf32> -> vector<128x512xf32>
    %c0_15 = arith.constant 0 : index
    %c0_16 = arith.constant 0 : index
    %19 = vector.load %arg7[%c0_15, %c0_16] : memref<1x512xf32, #tpu.memory_space<vmem>>, vector<1x512xf32>
    %20 = vector.broadcast %19 : vector<1x512xf32> to vector<128x512xf32>
    %21 = arith.addf %18, %20 : vector<128x512xf32>
    %cst_17 = arith.constant 0.000000e+00 : f32
    %22 = vector.broadcast %cst_17 : f32 to vector<128x512xf32>
    %23 = arith.maximumf %21, %22 : vector<128x512xf32>
    %24 = arith.truncf %23 : vector<128x512xf32> to vector<128x512xbf16>
    %c0_18 = arith.constant 0 : index
    %c0_19 = arith.constant 0 : index
    %25 = vector.load %arg8[%c0_18, %c0_19] : memref<512x128xbf16, #tpu.memory_space<vmem>>, vector<512x128xbf16>
    %cst_20 = arith.constant dense<0.000000e+00> : vector<128x128xf32>
    %26 = tpu.matmul %24, %25, %cst_20 {dimension_numbers = #tpu.dot_dimension_numbers<[1], [0], [0], [1], [0, 0, 1, 1], [], []>} : vector<128x512xbf16>, vector<512x128xbf16>, vector<128x128xf32> -> vector<128x128xf32>
    %c0_21 = arith.constant 0 : index
    %c0_22 = arith.constant 0 : index
    %27 = vector.load %arg9[%c0_21, %c0_22] : memref<1x128xf32, #tpu.memory_space<vmem>>, vector<1x128xf32>
    %28 = vector.broadcast %27 : vector<1x128xf32> to vector<128x128xf32>
    %29 = arith.addf %26, %28 : vector<128x128xf32>
    %cst_23 = arith.constant 0.000000e+00 : f32
    %30 = vector.broadcast %cst_23 : f32 to vector<128x128xf32>
    %31 = arith.maximumf %29, %30 : vector<128x128xf32>
    %32 = arith.truncf %31 : vector<128x128xf32> to vector<128x128xbf16>
    %c0_24 = arith.constant 0 : index
    %c0_25 = arith.constant 0 : index
    %33 = vector.load %arg10[%c0_24, %c0_25] : memref<128x128xbf16, #tpu.memory_space<vmem>>, vector<128x128xbf16>
    %cst_26 = arith.constant dense<0.000000e+00> : vector<128x128xf32>
    %34 = tpu.matmul %32, %33, %cst_26 {dimension_numbers = #tpu.dot_dimension_numbers<[1], [0], [0], [1], [0, 0, 1, 1], [], []>} : vector<128x128xbf16>, vector<128x128xbf16>, vector<128x128xf32> -> vector<128x128xf32>
    %c0_27 = arith.constant 0 : index
    %c0_28 = arith.constant 0 : index
    %35 = vector.load %arg11[%c0_27, %c0_28] : memref<1x128xf32, #tpu.memory_space<vmem>>, vector<1x128xf32>
    %36 = vector.broadcast %35 : vector<1x128xf32> to vector<128x128xf32>
    %37 = arith.addf %34, %36 : vector<128x128xf32>
    %cst_29 = arith.constant 0.000000e+00 : f32
    %38 = vector.broadcast %cst_29 : f32 to vector<128x128xf32>
    %39 = arith.maximumf %37, %38 : vector<128x128xf32>
    %40 = arith.truncf %39 : vector<128x128xf32> to vector<128x128xbf16>
    %41 = arith.extf %40 : vector<128x128xbf16> to vector<128x128xf32>
    %c0_30 = arith.constant 0 : index
    %c0_31 = arith.constant 0 : index
    %42 = vector.load %arg12[%c0_30, %c0_31] : memref<1x128xf32, #tpu.memory_space<vmem>>, vector<1x128xf32>
    %43 = vector.broadcast %42 : vector<1x128xf32> to vector<128x128xf32>
    %44 = arith.mulf %41, %43 : vector<128x128xf32>
    %cst_32 = arith.constant dense<0.000000e+00> : vector<128xf32>
    %45 = vector.multi_reduction <add>, %44, %cst_32 [1] : vector<128x128xf32> to vector<128xf32>
    %46 = vector.shape_cast %45 : vector<128xf32> to vector<128x1xf32>
    %c0_33 = arith.constant 0 : index
    %c0_34 = arith.constant 0 : index
    %47 = vector.load %arg13[%c0_33, %c0_34] : memref<1x1xf32, #tpu.memory_space<vmem>>, vector<1x1xf32>
    %48 = vector.broadcast %47 : vector<1x1xf32> to vector<128x1xf32>
    %49 = arith.addf %46, %48 : vector<128x1xf32>
    %c0_35 = arith.constant 0 : index
    %c0_36 = arith.constant 0 : index
    %50 = vector.load %arg14[%c0_35, %c0_36] : memref<128x1xf32, #tpu.memory_space<vmem>>, vector<128x1xf32>
    tpu.vector_store %arg14[%c0_35, %c0_36], %49 {strides = array<i32>} : memref<128x1xf32, #tpu.memory_space<vmem>>, vector<128x1xf32>,
    return
  }
  func.func @transform_0(%arg0: i32) -> (i32, i32) {
    %c0_i32 = arith.constant 0 : i32
    %c0_i32_0 = arith.constant 0 : i32
    return %arg0, %c0_i32 : i32, i32
  }
  func.func @transform_1(%arg0: i32) -> (i32, i32) {
    %c0_i32 = arith.constant 0 : i32
    %c0_i32_0 = arith.constant 0 : i32
    %c0_i32_1 = arith.constant 0 : i32
    return %c0_i32, %c0_i32_0 : i32, i32
  }
  func.func @transform_2(%arg0: i32) -> (i32, i32) {
    %c0_i32 = arith.constant 0 : i32
    %c0_i32_0 = arith.constant 0 : i32
    %c0_i32_1 = arith.constant 0 : i32
    return %c0_i32, %c0_i32_0 : i32, i32
  }
  func.func @transform_3(%arg0: i32) -> (i32, i32) {
    %c0_i32 = arith.constant 0 : i32
    %c0_i32_0 = arith.constant 0 : i32
    %c0_i32_1 = arith.constant 0 : i32
    return %c0_i32, %c0_i32_0 : i32, i32
  }
  func.func @transform_4(%arg0: i32) -> (i32, i32) {
    %c0_i32 = arith.constant 0 : i32
    %c0_i32_0 = arith.constant 0 : i32
    %c0_i32_1 = arith.constant 0 : i32
    return %c0_i32, %c0_i32_0 : i32, i32
  }
  func.func @transform_5(%arg0: i32) -> (i32, i32) {
    %c0_i32 = arith.constant 0 : i32
    %c0_i32_0 = arith.constant 0 : i32
    %c0_i32_1 = arith.constant 0 : i32
    return %c0_i32, %c0_i32_0 : i32, i32
  }
  func.func @transform_6(%arg0: i32) -> (i32, i32) {
    %c0_i32 = arith.constant 0 : i32
    %c0_i32_0 = arith.constant 0 : i32
    %c0_i32_1 = arith.constant 0 : i32
    return %c0_i32, %c0_i32_0 : i32, i32
  }
  func.func @transform_7(%arg0: i32) -> (i32, i32) {
    %c0_i32 = arith.constant 0 : i32
    %c0_i32_0 = arith.constant 0 : i32
    %c0_i32_1 = arith.constant 0 : i32
    return %c0_i32, %c0_i32_0 : i32, i32
  }
  func.func @transform_8(%arg0: i32) -> (i32, i32) {
    %c0_i32 = arith.constant 0 : i32
    %c0_i32_0 = arith.constant 0 : i32
    %c0_i32_1 = arith.constant 0 : i32
    return %c0_i32, %c0_i32_0 : i32, i32
  }
  func.func @transform_9(%arg0: i32) -> (i32, i32) {
    %c0_i32 = arith.constant 0 : i32
    %c0_i32_0 = arith.constant 0 : i32
    %c0_i32_1 = arith.constant 0 : i32
    return %c0_i32, %c0_i32_0 : i32, i32
  }
  func.func @transform_10(%arg0: i32) -> (i32, i32) {
    %c0_i32 = arith.constant 0 : i32
    %c0_i32_0 = arith.constant 0 : i32
    %c0_i32_1 = arith.constant 0 : i32
    return %c0_i32, %c0_i32_0 : i32, i32
  }
  func.func @transform_11(%arg0: i32) -> (i32, i32) {
    %c0_i32 = arith.constant 0 : i32
    %c0_i32_0 = arith.constant 0 : i32
    %c0_i32_1 = arith.constant 0 : i32
    return %c0_i32, %c0_i32_0 : i32, i32
  }
  func.func @transform_12(%arg0: i32) -> (i32, i32) {
    %c0_i32 = arith.constant 0 : i32
    %c0_i32_0 = arith.constant 0 : i32
    %c0_i32_1 = arith.constant 0 : i32
    return %c0_i32, %c0_i32_0 : i32, i32
  }
  func.func @transform_13(%arg0: i32) -> (i32, i32) {
    %c0_i32 = arith.constant 0 : i32
    %c0_i32_0 = arith.constant 0 : i32
    return %arg0, %c0_i32 : i32, i32
  }
}

</mosaic_0001>

<llo_original>
// kernel: mlp3_forward.1
$region0: #{mlp3_forward.1}
  #allocation0 [shape = 'u32[]', space=smem, size = 0x4, offset = 0x4, fixed_abs, tag = 'smem constant byte address 0x4 - core index']
  #allocation1 [shape = 'u32[144,128]{1,0:T(1,128)}', space=vmem, size = 0x12000, scoped, tag = 'internal scratch']
  #allocation2 [shape = 'f32[1,1]{1,0:T(1,128)S(1)}', space=vmem, size = 0x200, scoped, tag = 'scoped memory for mlp3_forward.1']
  %s0 = inlined_call_operand.vmem [shape: bf16[256,10], index: 0, kind: input, shape index: {}]
  %s1 = inlined_call_operand.vmem [shape: bf16[10,256], index: 1, kind: input, shape index: {}]
  %s2 = inlined_call_operand.vmem [shape: f32[1,256], index: 2, kind: input, shape index: {}]
  %s3 = inlined_call_operand.hbm [shape: bf16[256,512], index: 3, kind: input, shape index: {}]
  %s4 = inlined_call_operand.vmem [shape: f32[1,512], index: 4, kind: input, shape index: {}]
  %s5 = inlined_call_operand.hbm [shape: bf16[512,512], index: 5, kind: input, shape index: {}]
  %s6 = inlined_call_operand.vmem [shape: f32[1,512], index: 6, kind: input, shape index: {}]
  %s7 = inlined_call_operand.hbm [shape: bf16[512,128], index: 7, kind: input, shape index: {}]
  %s8 = inlined_call_operand.vmem [shape: f32[1,128], index: 8, kind: input, shape index: {}]
  %s9 = inlined_call_operand.vmem [shape: bf16[128,128], index: 9, kind: input, shape index: {}]
  %s10 = inlined_call_operand.vmem [shape: f32[1,128], index: 10, kind: input, shape index: {}]
  %s11 = inlined_call_operand.vmem [shape: f32[1,128], index: 11, kind: input, shape index: {}]
  %s12 = inlined_call_operand.<no memory space> [shape: f32[1,1], index: 12, kind: input, shape index: {}]
  %s13 = inlined_call_operand.vmem [shape: f32[256,1], index: 13, kind: output, shape index: {}]
  %s14 = sld [smem:[#allocation0]]
  $region97: #{mlp3_forward.1} parent=0
    _
  %s16 = ssub.s32 1, %s14
  %s17 = scalar_select 0, %s16, %s14
  %v18 = vstv %s12
  %19 = vst [vmem:[#allocation2] sm:$0x1] %v18
  $region1: #{mlp3_forward.1} parent=0
    #allocation3 [shape = 'u8[262144]{0}', space=vmem, size = 0x40000, scoped, tag = 'input window, operand 3, single buffered']
    #allocation4 [shape = 's32[2]{0}', space=sflag, size = 0x8, scoped, tag = 'scoped memory for mlp3_forward.1']
    #allocation5 [shape = 'u8[524288]{0}', space=vmem, size = 0x80000, scoped, tag = 'input window, operand 5, single buffered']
    #allocation6 [shape = 's32[1]{0}', space=sflag, size = 0x4, scoped, tag = 'scoped memory for mlp3_forward.1']
    #allocation7 [shape = 'u8[131072]{0}', space=vmem, size = 0x20000, scoped, tag = 'input window, operand 7, single buffered']
    %20 = vsyncpa [#allocation4], 0
    %21 = vsyncpa [#allocation6], 0
    loop: start=0, step=1, limit=4
    $region2: #{mlp3_forward.1} parent=1 // loop_pre_header
      _
    $region3: #{mlp3_forward.1} parent=1 // loop_header
      %s23 = sphi 0, %s27
      %p24 = scmp.ge.s32.totalorder %s23, 4
      %s33 = sphi 0, %s35
      %s36 = sphi 0, %s33
      %s37 = sphi 0, %s36
      %s53 = sphi 0, %s37
      %s57 = sphi 0, %s57
      %s59 = sphi 0, %s57
      %s60 = sphi 0, %s59
      %s74 = sphi 0, %s60
      %s78 = sphi 0, %s78
      %s80 = sphi 0, %s78
      %s81 = sphi 0, %s80
      %s95 = sphi 0, %s81
      %s99 = sphi 0, %s99
      %s101 = sphi 0, %s99
      %s102 = sphi 0, %s101
      %s116 = sphi 0, %s102
      %s120 = sphi 0, %s120
      %s122 = sphi 0, %s120
      %s123 = sphi 0, %s122
      %s137 = sphi 0, %s123
      %s141 = sphi 0, %s141
      %s143 = sphi 0, %s141
      %s144 = sphi 0, %s143
      %s158 = sphi 0, %s144
      %s162 = sphi 0, %s162
      %s164 = sphi 0, %s162
      %s165 = sphi 0, %s164
      %s179 = sphi 0, %s165
      %s183 = sphi 0, %s183
      %s185 = sphi 0, %s183
      %s186 = sphi 0, %s185
      %s200 = sphi 0, %s186
      %s204 = sphi 0, %s204
      %s206 = sphi 0, %s204
      %s207 = sphi 0, %s206
      %s221 = sphi 0, %s207
      %s225 = sphi 0, %s225
      %s227 = sphi 0, %s225
      %s228 = sphi 0, %s227
      %s242 = sphi 0, %s228
      %s246 = sphi 0, %s246
      %s248 = sphi 0, %s246
      %s249 = sphi 0, %s248
      %s263 = sphi 0, %s249
      %s267 = sphi 0, %s267
      %s269 = sphi 0, %s267
      %s270 = sphi 0, %s269
      %s284 = sphi 0, %s270
      %s288 = sphi 0, %s288
      %s290 = sphi 0, %s288
      %s291 = sphi 0, %s290
      %s305 = sphi 0, %s291
      %s311 = sphi 0, %s313
      %s314 = sphi 0, %s311
      %s315 = sphi 0, %s314
      %s331 = sphi 0, %s315
    $region4: #{mlp3_forward.1} parent=1 // loop_header_branch
      %26 = sbr.rel (%p24) target = $region8
    $region5: #{mlp3_forward.1} parent=1 // loop_body
      %s28 = ssub.s32 %s23, 1
      %s29 = ssub.s32 %s23, 2
      %s30 = sadd.s32 %s23, 1
      %s31 = ssub.s32 %s23, %s30
      %p32 = scmp.eq.s32.totalorder %s31, 0
      %s34 = sadd.s32 %s33, 1
      %s35 = scalar_select %p32, %s33, %s34
      %p38 = pneg %p32
      %p39 = scmp.eq.s32.totalorder %s23, 1
      %p40 = por %p38, %p39
      %p41 = scmp.ne.s32.totalorder %s33, %s36
      %p42 = scmp.eq.s32.totalorder %s23, 0
      %p43 = por %p41, %p42
      %p44 = scmp.ne.s32.totalorder %s33, %s36
      %p45 = scmp.eq.s32.totalorder %s28, 1
      %p46 = por %p44, %p45
      %p47 = scmp.ne.s32.totalorder %s36, %s37
      %p48 = scmp.eq.s32.totalorder %s28, 0
      %p49 = por %p47, %p48
      %p50 = scmp.ne.s32.totalorder %s36, %s37
      %p51 = scmp.eq.s32.totalorder %s29, 1
      %p52 = por %p50, %p51
      %p54 = scmp.ne.s32.totalorder %s37, %s53
      %p55 = scmp.eq.s32.totalorder %s29, 0
      %p56 = por %p54, %p55
      %s58 = sadd.s32 %s57, 1
      %p61 = scmp.eq.s32.totalorder %s23, 1
      %p62 = scmp.ne.s32.totalorder %s57, %s59
      %p63 = scmp.eq.s32.totalorder %s23, 0
      %p64 = por %p62, %p63
      %p65 = scmp.ne.s32.totalorder %s57, %s59
      %p66 = scmp.eq.s32.totalorder %s28, 1
      %p67 = por %p65, %p66
      %p68 = scmp.ne.s32.totalorder %s59, %s60
      %p69 = scmp.eq.s32.totalorder %s28, 0
      %p70 = por %p68, %p69
      %p71 = scmp.ne.s32.totalorder %s59, %s60
      %p72 = scmp.eq.s32.totalorder %s29, 1
      %p73 = por %p71, %p72
      %p75 = scmp.ne.s32.totalorder %s60, %s74
      %p76 = scmp.eq.s32.totalorder %s29, 0
      %p77 = por %p75, %p76
      %s79 = sadd.s32 %s78, 1
      %p82 = scmp.eq.s32.totalorder %s23, 1
      %p83 = scmp.ne.s32.totalorder %s78, %s80
      %p84 = scmp.eq.s32.totalorder %s23, 0
      %p85 = por %p83, %p84
      %p86 = scmp.ne.s32.totalorder %s78, %s80
      %p87 = scmp.eq.s32.totalorder %s28, 1
      %p88 = por %p86, %p87
      %p89 = scmp.ne.s32.totalorder %s80, %s81
      %p90 = scmp.eq.s32.totalorder %s28, 0
      %p91 = por %p89, %p90
      %p92 = scmp.ne.s32.totalorder %s80, %s81
      %p93 = scmp.eq.s32.totalorder %s29, 1
      %p94 = por %p92, %p93
      %p96 = scmp.ne.s32.totalorder %s81, %s95
      %p97 = scmp.eq.s32.totalorder %s29, 0
      %p98 = por %p96, %p97
      %s100 = sadd.s32 %s99, 1
      %p103 = scmp.eq.s32.totalorder %s23, 1
      %p104 = scmp.ne.s32.totalorder %s99, %s101
      %p105 = scmp.eq.s32.totalorder %s23, 0
      %p106 = por %p104, %p105
      %p107 = scmp.ne.s32.totalorder %s99, %s101
      %p108 = scmp.eq.s32.totalorder %s28, 1
      %p109 = por %p107, %p108
      %p110 = scmp.ne.s32.totalorder %s101, %s102
      %p111 = scmp.eq.s32.totalorder %s28, 0
      %p112 = por %p110, %p111
      %p113 = scmp.ne.s32.totalorder %s101, %s102
      %p114 = scmp.eq.s32.totalorder %s29, 1
      %p115 = por %p113, %p114
      %p117 = scmp.ne.s32.totalorder %s102, %s116
      %p118 = scmp.eq.s32.totalorder %s29, 0
      %p119 = por %p117, %p118
      %s121 = sadd.s32 %s120, 1
      %p124 = scmp.eq.s32.totalorder %s23, 1
      %p125 = scmp.ne.s32.totalorder %s120, %s122
      %p126 = scmp.eq.s32.totalorder %s23, 0
      %p127 = por %p125, %p126
      %p128 = scmp.ne.s32.totalorder %s120, %s122
      %p129 = scmp.eq.s32.totalorder %s28, 1
      %p130 = por %p128, %p129
      %p131 = scmp.ne.s32.totalorder %s122, %s123
      %p132 = scmp.eq.s32.totalorder %s28, 0
      %p133 = por %p131, %p132
      %p134 = scmp.ne.s32.totalorder %s122, %s123
      %p135 = scmp.eq.s32.totalorder %s29, 1
      %p136 = por %p134, %p135
      %p138 = scmp.ne.s32.totalorder %s123, %s137
      %p139 = scmp.eq.s32.totalorder %s29, 0
      %p140 = por %p138, %p139
      %s142 = sadd.s32 %s141, 1
      %p145 = scmp.eq.s32.totalorder %s23, 1
      %p146 = scmp.ne.s32.totalorder %s141, %s143
      %p147 = scmp.eq.s32.totalorder %s23, 0
      %p148 = por %p146, %p147
      %p149 = scmp.ne.s32.totalorder %s141, %s143
      %p150 = scmp.eq.s32.totalorder %s28, 1
      %p151 = por %p149, %p150
      %p152 = scmp.ne.s32.totalorder %s143, %s144
      %p153 = scmp.eq.s32.totalorder %s28, 0
      %p154 = por %p152, %p153
      %p155 = scmp.ne.s32.totalorder %s143, %s144
      %p156 = scmp.eq.s32.totalorder %s29, 1
      %p157 = por %p155, %p156
      %p159 = scmp.ne.s32.totalorder %s144, %s158
      %p160 = scmp.eq.s32.totalorder %s29, 0
      %p161 = por %p159, %p160
      %s163 = sadd.s32 %s162, 1
      %p166 = scmp.eq.s32.totalorder %s23, 1
      %p167 = scmp.ne.s32.totalorder %s162, %s164
      %p168 = scmp.eq.s32.totalorder %s23, 0
      %p169 = por %p167, %p168
      %p170 = scmp.ne.s32.totalorder %s162, %s164
      %p171 = scmp.eq.s32.totalorder %s28, 1
      %p172 = por %p170, %p171
      %p173 = scmp.ne.s32.totalorder %s164, %s165
      %p174 = scmp.eq.s32.totalorder %s28, 0
      %p175 = por %p173, %p174
      %p176 = scmp.ne.s32.totalorder %s164, %s165
      %p177 = scmp.eq.s32.totalorder %s29, 1
      %p178 = por %p176, %p177
      %p180 = scmp.ne.s32.totalorder %s165, %s179
      %p181 = scmp.eq.s32.totalorder %s29, 0
      %p182 = por %p180, %p181
      %s184 = sadd.s32 %s183, 1
      %p187 = scmp.eq.s32.totalorder %s23, 1
      %p188 = scmp.ne.s32.totalorder %s183, %s185
      %p189 = scmp.eq.s32.totalorder %s23, 0
      %p190 = por %p188, %p189
      %p191 = scmp.ne.s32.totalorder %s183, %s185
      %p192 = scmp.eq.s32.totalorder %s28, 1
      %p193 = por %p191, %p192
      %p194 = scmp.ne.s32.totalorder %s185, %s186
      %p195 = scmp.eq.s32.totalorder %s28, 0
      %p196 = por %p194, %p195
      %p197 = scmp.ne.s32.totalorder %s185, %s186
      %p198 = scmp.eq.s32.totalorder %s29, 1
      %p199 = por %p197, %p198
      %p201 = scmp.ne.s32.totalorder %s186, %s200
      %p202 = scmp.eq.s32.totalorder %s29, 0
      %p203 = por %p201, %p202
      %s205 = sadd.s32 %s204, 1
      %p208 = scmp.eq.s32.totalorder %s23, 1
      %p209 = scmp.ne.s32.totalorder %s204, %s206
      %p210 = scmp.eq.s32.totalorder %s23, 0
      %p211 = por %p209, %p210
      %p212 = scmp.ne.s32.totalorder %s204, %s206
      %p213 = scmp.eq.s32.totalorder %s28, 1
      %p214 = por %p212, %p213
      %p215 = scmp.ne.s32.totalorder %s206, %s207
      %p216 = scmp.eq.s32.totalorder %s28, 0
      %p217 = por %p215, %p216
      %p218 = scmp.ne.s32.totalorder %s206, %s207
      %p219 = scmp.eq.s32.totalorder %s29, 1
      %p220 = por %p218, %p219
      %p222 = scmp.ne.s32.totalorder %s207, %s221
      %p223 = scmp.eq.s32.totalorder %s29, 0
      %p224 = por %p222, %p223
      %s226 = sadd.s32 %s225, 1
      %p229 = scmp.eq.s32.totalorder %s23, 1
      %p230 = scmp.ne.s32.totalorder %s225, %s227
      %p231 = scmp.eq.s32.totalorder %s23, 0
      %p232 = por %p230, %p231
      %p233 = scmp.ne.s32.totalorder %s225, %s227
      %p234 = scmp.eq.s32.totalorder %s28, 1
      %p235 = por %p233, %p234
      %p236 = scmp.ne.s32.totalorder %s227, %s228
      %p237 = scmp.eq.s32.totalorder %s28, 0
      %p238 = por %p236, %p237
      %p239 = scmp.ne.s32.totalorder %s227, %s228
      %p240 = scmp.eq.s32.totalorder %s29, 1
      %p241 = por %p239, %p240
      %p243 = scmp.ne.s32.totalorder %s228, %s242
      %p244 = scmp.eq.s32.totalorder %s29, 0
      %p245 = por %p243, %p244
      %s247 = sadd.s32 %s246, 1
      %p250 = scmp.eq.s32.totalorder %s23, 1
      %p251 = scmp.ne.s32.totalorder %s246, %s248
      %p252 = scmp.eq.s32.totalorder %s23, 0
      %p253 = por %p251, %p252
      %p254 = scmp.ne.s32.totalorder %s246, %s248
      %p255 = scmp.eq.s32.totalorder %s28, 1
      %p256 = por %p254, %p255
      %p257 = scmp.ne.s32.totalorder %s248, %s249
      %p258 = scmp.eq.s32.totalorder %s28, 0
      %p259 = por %p257, %p258
      %p260 = scmp.ne.s32.totalorder %s248, %s249
      %p261 = scmp.eq.s32.totalorder %s29, 1
      %p262 = por %p260, %p261
      %p264 = scmp.ne.s32.totalorder %s249, %s263
      %p265 = scmp.eq.s32.totalorder %s29, 0
      %p266 = por %p264, %p265
      %s268 = sadd.s32 %s267, 1
      %p271 = scmp.eq.s32.totalorder %s23, 1
      %p272 = scmp.ne.s32.totalorder %s267, %s269
      %p273 = scmp.eq.s32.totalorder %s23, 0
      %p274 = por %p272, %p273
      %p275 = scmp.ne.s32.totalorder %s267, %s269
      %p276 = scmp.eq.s32.totalorder %s28, 1
      %p277 = por %p275, %p276
      %p278 = scmp.ne.s32.totalorder %s269, %s270
      %p279 = scmp.eq.s32.totalorder %s28, 0
      %p280 = por %p278, %p279
      %p281 = scmp.ne.s32.totalorder %s269, %s270
      %p282 = scmp.eq.s32.totalorder %s29, 1
      %p283 = por %p281, %p282
      %p285 = scmp.ne.s32.totalorder %s270, %s284
      %p286 = scmp.eq.s32.totalorder %s29, 0
      %p287 = por %p285, %p286
      %s289 = sadd.s32 %s288, 1
      %p292 = scmp.eq.s32.totalorder %s23, 1
      %p293 = scmp.ne.s32.totalorder %s288, %s290
      %p294 = scmp.eq.s32.totalorder %s23, 0
      %p295 = por %p293, %p294
      %p296 = scmp.ne.s32.totalorder %s288, %s290
      %p297 = scmp.eq.s32.totalorder %s28, 1
      %p298 = por %p296, %p297
      %p299 = scmp.ne.s32.totalorder %s290, %s291
      %p300 = scmp.eq.s32.totalorder %s28, 0
      %p301 = por %p299, %p300
      %p302 = scmp.ne.s32.totalorder %s290, %s291
      %p303 = scmp.eq.s32.totalorder %s29, 1
      %p304 = por %p302, %p303
      %p306 = scmp.ne.s32.totalorder %s291, %s305
      %p307 = scmp.eq.s32.totalorder %s29, 0
      %p308 = por %p306, %p307
      %s309 = ssub.s32 %s23, %s30
      %p310 = scmp.eq.s32.totalorder %s309, 0
      %s312 = sadd.s32 %s311, 1
      %s313 = scalar_select %p310, %s311, %s312
      %p316 = pneg %p310
      %p317 = scmp.eq.s32.totalorder %s23, 1
      %p318 = por %p316, %p317
      %p319 = scmp.ne.s32.totalorder %s311, %s314
      %p320 = scmp.eq.s32.totalorder %s23, 0
      %p321 = por %p319, %p320
      %p322 = scmp.ne.s32.totalorder %s311, %s314
      %p323 = scmp.eq.s32.totalorder %s28, 1
      %p324 = por %p322, %p323
      %p325 = scmp.ne.s32.totalorder %s314, %s315
      %p326 = scmp.eq.s32.totalorder %s28, 0
      %p327 = por %p325, %p326
      %p328 = scmp.ne.s32.totalorder %s314, %s315
      %p329 = scmp.eq.s32.totalorder %s29, 1
      %p330 = por %p328, %p329
      %p332 = scmp.ne.s32.totalorder %s315, %s331
      %p333 = scmp.eq.s32.totalorder %s29, 0
      %p334 = por %p332, %p333
      %p335 = scmp.le.s32.totalorder 1, %s23
      %p336 = scmp.lt.s32.totalorder %s23, 3
      %p337 = pnand %p335, %p336
      %p338 = pneg %p337
      // Predicated region
      $region9: #{mlp3_forward.1} parent=5 // pred_check
        _
      $region10: #{mlp3_forward.1} parent=5 // pred_check_branch
        %340 = sbr.rel (%p337) target = $region12
      $region11: #{mlp3_forward.1} parent=5 // pred_region
        %s341 = ssub.s32 %s23, 1
        // Predicated region
        $region13: #{mlp3_forward.1} parent=11 // pred_check
          %p342 = pneg %p70
        $region14: #{mlp3_forward.1} parent=11 // pred_check_branch
          %344 = sbr.rel (%p342) target = $region16
        $region15: #{mlp3_forward.1} parent=11 // pred_region
          _
        $region16: #{mlp3_forward.1} parent=11 // pred_fallthru
          _
        // Predicated region
        $region17: #{mlp3_forward.1} parent=11 // pred_check
          %p345 = pneg %p91
        $region18: #{mlp3_forward.1} parent=11 // pred_check_branch
          %347 = sbr.rel (%p345) target = $region20
        $region19: #{mlp3_forward.1} parent=11 // pred_region
          _
        $region20: #{mlp3_forward.1} parent=11 // pred_fallthru
          _
        // Predicated region
        $region21: #{mlp3_forward.1} parent=11 // pred_check
          %p348 = pneg %p112
        $region22: #{mlp3_forward.1} parent=11 // pred_check_branch
          %350 = sbr.rel (%p348) target = $region24
        $region23: #{mlp3_forward.1} parent=11 // pred_region
          %s352 = ssub.s32 8192, 8192
          %353 = vsyncadd [#allocation4], %s352
          %s354 = sshll.u32 [#allocation3], 4
          %s355 = int_to_ptr.vmem [resolvable:$true] %s354
          %360 = dma.hbm_to_vmem [thread:$0]  %s3, 8192, %s355, [#allocation4], 256, 256, 16
        $region24: #{mlp3_forward.1} parent=11 // pred_fallthru
          _
        // Predicated region
        $region25: #{mlp3_forward.1} parent=11 // pred_check
          %p361 = pneg %p133
        $region26: #{mlp3_forward.1} parent=11 // pred_check_branch
          %363 = sbr.rel (%p361) target = $region28
        $region27: #{mlp3_forward.1} parent=11 // pred_region
          _
        $region28: #{mlp3_forward.1} parent=11 // pred_fallthru
          _
        // Predicated region
        $region29: #{mlp3_forward.1} parent=11 // pred_check
          %p364 = pneg %p154
        $region30: #{mlp3_forward.1} parent=11 // pred_check_branch
          %366 = sbr.rel (%p364) target = $region32
        $region31: #{mlp3_forward.1} parent=11 // pred_region
          %s368 = ssub.s32 16384, 16384
          %369 = vsyncadd [#allocation6], %s368
          %s370 = sshll.u32 [#allocation5], 4
          %s371 = int_to_ptr.vmem [resolvable:$true] %s370
          %376 = dma.hbm_to_vmem [thread:$0]  %s5, 16384, %s371, [#allocation6], 256, 256, 16
        $region32: #{mlp3_forward.1} parent=11 // pred_fallthru
          _
        // Predicated region
        $region33: #{mlp3_forward.1} parent=11 // pred_check
          %p377 = pneg %p175
        $region34: #{mlp3_forward.1} parent=11 // pred_check_branch
          %379 = sbr.rel (%p377) target = $region36
        $region35: #{mlp3_forward.1} parent=11 // pred_region
          _
        $region36: #{mlp3_forward.1} parent=11 // pred_fallthru
          _
        // Predicated region
        $region37: #{mlp3_forward.1} parent=11 // pred_check
          %p380 = pneg %p196
        $region38: #{mlp3_forward.1} parent=11 // pred_check_branch
          %382 = sbr.rel (%p380) target = $region40
        $region39: #{mlp3_forward.1} parent=11 // pred_region
          %s384 = ssub.s32 4096, 4096
          %385 = vsyncadd [#allocation6], %s384
          %s386 = sshll.u32 [#allocation7], 4
          %s387 = int_to_ptr.vmem [resolvable:$true] %s386
          %392 = dma.hbm_to_vmem [thread:$0]  %s7, 4096, %s387, [#allocation6], 64, 64, 4
        $region40: #{mlp3_forward.1} parent=11 // pred_fallthru
          _
        // Predicated region
        $region41: #{mlp3_forward.1} parent=11 // pred_check
          %p393 = pneg %p217
        $region42: #{mlp3_forward.1} parent=11 // pred_check_branch
          %395 = sbr.rel (%p393) target = $region44
        $region43: #{mlp3_forward.1} parent=11 // pred_region
          _
        $region44: #{mlp3_forward.1} parent=11 // pred_fallthru
          _
        // Predicated region
        $region45: #{mlp3_forward.1} parent=11 // pred_check
          %p396 = pneg %p238
        $region46: #{mlp3_forward.1} parent=11 // pred_check_branch
          %398 = sbr.rel (%p396) target = $region48
        $region47: #{mlp3_forward.1} parent=11 // pred_region
          _
        $region48: #{mlp3_forward.1} parent=11 // pred_fallthru
          _
        // Predicated region
        $region49: #{mlp3_forward.1} parent=11 // pred_check
          %p399 = pneg %p259
        $region50: #{mlp3_forward.1} parent=11 // pred_check_branch
          %401 = sbr.rel (%p399) target = $region52
        $region51: #{mlp3_forward.1} parent=11 // pred_region
          _
        $region52: #{mlp3_forward.1} parent=11 // pred_fallthru
          _
        // Predicated region
        $region53: #{mlp3_forward.1} parent=11 // pred_check
          %p402 = pneg %p280
        $region54: #{mlp3_forward.1} parent=11 // pred_check_branch
          %404 = sbr.rel (%p402) target = $region56
        $region55: #{mlp3_forward.1} parent=11 // pred_region
          _
        $region56: #{mlp3_forward.1} parent=11 // pred_fallthru
          _
        // Predicated region
        $region57: #{mlp3_forward.1} parent=11 // pred_check
          %p405 = pneg %p301
        $region58: #{mlp3_forward.1} parent=11 // pred_check_branch
          %407 = sbr.rel (%p405) target = $region60
        $region59: #{mlp3_forward.1} parent=11 // pred_region
          _
        $region60: #{mlp3_forward.1} parent=11 // pred_fallthru
          _
      $region12: #{mlp3_forward.1} parent=5 // pred_fallthru
        _
      %p408 = scmp.lt.s32.totalorder %s23, 2
      // Predicated region
      $region61: #{mlp3_forward.1} parent=5 // pred_check
        %p409 = pneg %p408
      $region62: #{mlp3_forward.1} parent=5 // pred_check_branch
        %411 = sbr.rel (%p409) target = $region64
      $region63: #{mlp3_forward.1} parent=5 // pred_region
        // Predicated region
        $region65: #{mlp3_forward.1} parent=63 // pred_check
          %p412 = pneg %p43
        $region66: #{mlp3_forward.1} parent=63 // pred_check_branch
          %414 = sbr.rel (%p412) target = $region68
        $region67: #{mlp3_forward.1} parent=63 // pred_region
          %s415 = smul.u32 16, %s23
          %p416 = scmp.lt.s32.totalorder %s415, 31
          %s417 = scalar_select %p416, %s415, 31
          %s418 = smul.addr %s417, 4
          %s419 = scalar_lea.vmem %s0, %s418
          %s420 = smul.u32 16, %s23
        $region68: #{mlp3_forward.1} parent=63 // pred_fallthru
          _
      $region64: #{mlp3_forward.1} parent=5 // pred_fallthru
        _
      %p421 = scmp.le.s32.totalorder 1, %s23
      %p422 = scmp.lt.s32.totalorder %s23, 3
      %p423 = pnand %p421, %p422
      %p424 = pneg %p423
      // Predicated region
      $region69: #{mlp3_forward.1} parent=5 // pred_check
        _
      $region70: #{mlp3_forward.1} parent=5 // pred_check_branch
        %426 = sbr.rel (%p423) target = $region72
      $region71: #{mlp3_forward.1} parent=5 // pred_region
        %s427 = ssub.s32 %s23, 1
        // Predicated region
        $region73: #{mlp3_forward.1} parent=71 // pred_check
          %p428 = pneg %p112
        $region74: #{mlp3_forward.1} parent=71 // pred_check_branch
          %430 = sbr.rel (%p428) target = $region76
        $region75: #{mlp3_forward.1} parent=71 // pred_region
          %431 = dma.done [#allocation4], 8192
        $region76: #{mlp3_forward.1} parent=71 // pred_fallthru
          _
        // Predicated region
        $region77: #{mlp3_forward.1} parent=71 // pred_check
          %p432 = pneg %p154
        $region78: #{mlp3_forward.1} parent=71 // pred_check_branch
          %434 = sbr.rel (%p432) target = $region80
        $region79: #{mlp3_forward.1} parent=71 // pred_region
          %435 = dma.done [#allocation6], 16384
        $region80: #{mlp3_forward.1} parent=71 // pred_fallthru
          _
        // Predicated region
        $region81: #{mlp3_forward.1} parent=71 // pred_check
          %p436 = pneg %p196
        $region82: #{mlp3_forward.1} parent=71 // pred_check_branch
          %438 = sbr.rel (%p436) target = $region84
        $region83: #{mlp3_forward.1} parent=71 // pred_region
          %439 = dma.done [#allocation6], 4096
        $region84: #{mlp3_forward.1} parent=71 // pred_fallthru
          _
        %s440 = smul.u32 16, %s28
        %p441 = scmp.lt.s32.totalorder %s440, 31
        %s442 = scalar_select %p441, %s440, 31
        %s443 = smul.addr %s442, 4
        %s444 = scalar_lea.vmem %s0, %s443
        %p445 = pneg %p49
        %p446 = pneg %p46
        %p447 = pneg %p70
        %p448 = pneg %p67
        %p449 = pneg %p91
        %p450 = pneg %p88
        %p451 = pneg %p112
        %p452 = pneg %p109
        %p453 = pneg %p133
        %p454 = pneg %p130
        %p455 = pneg %p154
        %p456 = pneg %p151
        %p457 = pneg %p175
        %p458 = pneg %p172
        %p459 = pneg %p196
        %p460 = pneg %p193
        %p461 = pneg %p217
        %p462 = pneg %p214
        %p463 = pneg %p238
        %p464 = pneg %p235
        %p465 = pneg %p259
        %p466 = pneg %p256
        %p467 = pneg %p280
        %p468 = pneg %p277
        %p469 = pneg %p301
        %p470 = pneg %p298
        %p471 = pneg %p327
        %p472 = pneg %p324
        %s473 = smul.u32 16, %s28
        %p474 = scmp.lt.s32.totalorder %s473, 31
        %s475 = scalar_select %p474, %s473, 31
        %s476 = smul.addr %s475, 8
        %s477 = scalar_lea.vmem %s13, %s476
        %s478 = smul.u32 16, %s28
        %p479 = scmp.lt.s32.totalorder %s478, 31
        %s480 = scalar_select %p479, %s478, 31
        %s481 = smul.addr %s480, 4
        %s482 = scalar_lea.vmem %s0, %s481
        %s483 = smul.u32 16, %s28
        %s484 = smul.u32 16, %s28
        %p485 = scmp.lt.s32.totalorder %s484, 31
        %s486 = scalar_select %p485, %s484, 31
        %s487 = smul.addr %s486, 8
        %s488 = scalar_lea.vmem %s13, %s487
        %s489 = smul.u32 16, %s28
        %v491 = vld [vmem:[%s482] sm:$0xf]
        %v492 = vld [vmem:[%s482 + $0x4] sm:$0xf]
        %v493 = vld [vmem:[%s482 + $0x8] sm:$0xf]
        %v494 = vld [vmem:[%s482 + $0xc] sm:$0xf]
        %v495 = vld [vmem:[%s482 + $0x10] sm:$0xf]
        %v496 = vld [vmem:[%s482 + $0x14] sm:$0xf]
        %v497 = vld [vmem:[%s482 + $0x18] sm:$0xf]
        %v498 = vld [vmem:[%s482 + $0x1c] sm:$0xf]
        %v499 = vld [vmem:[%s482 + $0x20] sm:$0xf]
        %v500 = vld [vmem:[%s482 + $0x24] sm:$0xf]
        %v501 = vld [vmem:[%s482 + $0x28] sm:$0xf]
        %v502 = vld [vmem:[%s482 + $0x2c] sm:$0xf]
        %v503 = vld [vmem:[%s482 + $0x30] sm:$0xf]
        %v504 = vld [vmem:[%s482 + $0x34] sm:$0xf]
        %v505 = vld [vmem:[%s482 + $0x38] sm:$0xf]
        %v506 = vld [vmem:[%s482 + $0x3c] sm:$0xf]
        %v507 = vld [vmem:[%s1] sm:$0xff]
        %v508 = vld [vmem:[%s1 + $0x8] sm:$0x11]
        %v509 = vld [vmem:[%s2] sm:$0x3]
        %v511 = vlaneseq
        %v512 = vshrl.u32 %v511, 7
        %v513 = vsub.s32 0, %v512
        %v514 = vrot.slane %v509, %v513
        %v515 = vlaneseq
        %v516 = vshrl.u32 %v515, 7
        %v517 = vsub.s32 1, %v516
        %v518 = vrot.slane %v509, %v517
        %v537 = vunpack.c.l.b16 %v491
        %v538 = vunpack.c.l.b16 %v492
        %v539 = vunpack.c.l.b16 %v493
        %v540 = vunpack.c.l.b16 %v494
        %v541 = vunpack.c.l.b16 %v495
        %v542 = vunpack.c.l.b16 %v496
        %v543 = vunpack.c.l.b16 %v497
        %v544 = vunpack.c.l.b16 %v498
        %v545 = vunpack.c.l.b16 %v499
        %v546 = vunpack.c.l.b16 %v500
        %v547 = vunpack.c.l.b16 %v501
        %v548 = vunpack.c.l.b16 %v502
        %v549 = vunpack.c.l.b16 %v503
        %v550 = vunpack.c.l.b16 %v504
        %v551 = vunpack.c.l.b16 %v505
        %v552 = vunpack.c.l.b16 %v506
        %v553 = vpack.c.b16 %v538, %v537
        %v554 = vpack.c.b16 %v540, %v539
        %v555 = vpack.c.b16 %v542, %v541
        %v556 = vpack.c.b16 %v544, %v543
        %v557 = vpack.c.b16 %v546, %v545
        %v558 = vpack.c.b16 %v548, %v547
        %v559 = vpack.c.b16 %v550, %v549
        %v560 = vpack.c.b16 %v552, %v551
        %v563 = vunpack.c.l.b16 %v507
        %v564 = vunpack.c.h.b16 %v507
        %v565 = vunpack.c.l.b16 %v508
        %v566 = vunpack.c.h.b16 %v508
        %v567 = vpack.c.b16 %v565, %v563
        %v568 = vpack.c.b16 %v566, %v564
        %vm569 = vcmask 80896
        %v571 = vsel %vm569, %v553, 0
        %v574 = vsel %vm569, %v554, 0
        %v577 = vsel %vm569, %v555, 0
        %v580 = vsel %vm569, %v556, 0
        %v583 = vsel %vm569, %v557, 0
        %v586 = vsel %vm569, %v558, 0
        %v589 = vsel %vm569, %v559, 0
        %v592 = vsel %vm569, %v560, 0
        %vm594 = vcmask 1044480
        %v596 = vsel %vm594, %v567, 0
        %v599 = vsel %vm594, %v568, 0
        %601 = vmatprep.subr.bf16.mxu0 %v599
        %602 = vmatpush1.bf16.msra.mxu0 %v596
        %603 = vmatprep.subr.bf16.mxu0 0
        %604 = vmatpush1.bf16.msra.mxu0 0
        %605 = vmatprep.subr.bf16.mxu0 0
        %606 = vmatpush1.bf16.msra.mxu0 0
        %607 = vmatprep.subr.bf16.mxu0 0
        %608 = vmatpush1.bf16.msra.mxu0 0
        %609 = vmatprep.subr.bf16.mxu0 0
        %610 = vmatpush1.bf16.msra.mxu0 0
        %611 = vmatprep.subr.bf16.mxu0 0
        %612 = vmatpush1.bf16.msra.mxu0 0
        %613 = vmatprep.subr.bf16.mxu0 0
        %614 = vmatpush1.bf16.msra.mxu0 0
        %615 = vmatprep.subr.bf16.mxu0 0
        %616 = vmatpush1.bf16.msra.mxu0 0
        %617 = vmatprep.subr.bf16.mxu0 0
        %618 = vmatpush1.bf16.msra.mxu0 0
        %619 = vmatprep.subr.bf16.mxu0 0
        %620 = vmatpush1.bf16.msra.mxu0 0
        %621 = vmatprep.subr.bf16.mxu0 0
        %622 = vmatpush1.bf16.msra.mxu0 0
        %623 = vmatprep.subr.bf16.mxu0 0
        %624 = vmatpush1.bf16.msra.mxu0 0
        %625 = vmatprep.subr.bf16.mxu0 0
        %626 = vmatpush1.bf16.msra.mxu0 0
        %627 = vmatprep.subr.bf16.mxu0 0
        %628 = vmatpush1.bf16.msra.mxu0 0
        %629 = vmatprep.subr.bf16.mxu0 0
        %630 = vmatpush1.bf16.msra.mxu0 0
        %631 = vmatprep.subr.bf16.mxu0 0
        %632 = vmatpush1.bf16.msra.mxu0 0
        %633 = vmatprep.mubr.bf16.mxu0 0
        %634 = vmatmul.mubr.bf16.gmra.mrb[0].mxu0 %v571
        %v635 = vpop.f32.mrb[0].mxu0
        %v636 = vadd.f32 %v514, %v635
        %v637 = vpop.f32.mrb[0].mxu0
        %v638 = vadd.f32 %v518, %v637
        %v639 = vpop.f32.mrb[0].mxu0
        %v640 = vadd.f32 %v514, %v639
        %v641 = vpop.f32.mrb[0].mxu0
        %v642 = vadd.f32 %v518, %v641
        %643 = vmatprep.mubr.bf16.mxu0 0
        %644 = vmatmul.mubr.bf16.gmra.mrb[0].mxu0 %v574
        %v645 = vpop.f32.mrb[0].mxu0
        %v646 = vadd.f32 %v514, %v645
        %v647 = vpop.f32.mrb[0].mxu0
        %v648 = vadd.f32 %v518, %v647
        %v649 = vpop.f32.mrb[0].mxu0
        %v650 = vadd.f32 %v514, %v649
        %v651 = vpop.f32.mrb[0].mxu0
        %v652 = vadd.f32 %v518, %v651
        %653 = vmatprep.mubr.bf16.mxu0 0
        %654 = vmatmul.mubr.bf16.gmra.mrb[0].mxu0 %v577
        %v655 = vpop.f32.mrb[0].mxu0
        %v656 = vadd.f32 %v514, %v655
        %v657 = vpop.f32.mrb[0].mxu0
        %v658 = vadd.f32 %v518, %v657
        %v659 = vpop.f32.mrb[0].mxu0
        %v660 = vadd.f32 %v514, %v659
        %v661 = vpop.f32.mrb[0].mxu0
        %v662 = vadd.f32 %v518, %v661
        %663 = vmatprep.mubr.bf16.mxu0 0
        %664 = vmatmul.mubr.bf16.gmra.mrb[0].mxu0 %v580
        %v665 = vpop.f32.mrb[0].mxu0
        %v666 = vadd.f32 %v514, %v665
        %v667 = vpop.f32.mrb[0].mxu0
        %v668 = vadd.f32 %v518, %v667
        %v669 = vpop.f32.mrb[0].mxu0
        %v670 = vadd.f32 %v514, %v669
        %v671 = vpop.f32.mrb[0].mxu0
        %v672 = vadd.f32 %v518, %v671
        %673 = vmatprep.mubr.bf16.mxu0 0
        %674 = vmatmul.mubr.bf16.gmra.mrb[0].mxu0 %v583
        %v675 = vpop.f32.mrb[0].mxu0
        %v676 = vadd.f32 %v514, %v675
        %v677 = vpop.f32.mrb[0].mxu0
        %v678 = vadd.f32 %v518, %v677
        %v679 = vpop.f32.mrb[0].mxu0
        %v680 = vadd.f32 %v514, %v679
        %v681 = vpop.f32.mrb[0].mxu0
        %v682 = vadd.f32 %v518, %v681
        %683 = vmatprep.mubr.bf16.mxu0 0
        %684 = vmatmul.mubr.bf16.gmra.mrb[0].mxu0 %v586
        %v685 = vpop.f32.mrb[0].mxu0
        %v686 = vadd.f32 %v514, %v685
        %v687 = vpop.f32.mrb[0].mxu0
        %v688 = vadd.f32 %v518, %v687
        %v689 = vpop.f32.mrb[0].mxu0
        %v690 = vadd.f32 %v514, %v689
        %v691 = vpop.f32.mrb[0].mxu0
        %v692 = vadd.f32 %v518, %v691
        %693 = vmatprep.mubr.bf16.mxu0 0
        %694 = vmatmul.mubr.bf16.gmra.mrb[0].mxu0 %v589
        %v695 = vpop.f32.mrb[0].mxu0
        %v696 = vadd.f32 %v514, %v695
        %v697 = vpop.f32.mrb[0].mxu0
        %v698 = vadd.f32 %v518, %v697
        %v699 = vpop.f32.mrb[0].mxu0
        %v700 = vadd.f32 %v514, %v699
        %v701 = vpop.f32.mrb[0].mxu0
        %v702 = vadd.f32 %v518, %v701
        %703 = vmatprep.mubr.bf16.mxu0 0
        %704 = vmatmul.mubr.bf16.gmra.mrb[0].mxu0 %v592
        %v705 = vpop.f32.mrb[0].mxu0
        %v706 = vadd.f32 %v514, %v705
        %v707 = vpop.f32.mrb[0].mxu0
        %v708 = vadd.f32 %v518, %v707
        %v709 = vpop.f32.mrb[0].mxu0
        %v710 = vadd.f32 %v514, %v709
        %v711 = vpop.f32.mrb[0].mxu0
        %v712 = vadd.f32 %v518, %v711
        %713 = vdwg.mxu0
        %v714 = vmax.f32 %v636, 0.0
        %v715 = vmax.f32 %v638, 0.0
        %v716 = vmax.f32 %v640, 0.0
        %v717 = vmax.f32 %v642, 0.0
        %v718 = vmax.f32 %v646, 0.0
        %v719 = vmax.f32 %v648, 0.0
        %v720 = vmax.f32 %v650, 0.0
        %v721 = vmax.f32 %v652, 0.0
        %v722 = vmax.f32 %v656, 0.0
        %v723 = vmax.f32 %v658, 0.0
        %v724 = vmax.f32 %v660, 0.0
        %v725 = vmax.f32 %v662, 0.0
        %v726 = vmax.f32 %v666, 0.0
        %v727 = vmax.f32 %v668, 0.0
        %v728 = vmax.f32 %v670, 0.0
        %v729 = vmax.f32 %v672, 0.0
        %v730 = vmax.f32 %v676, 0.0
        %v731 = vmax.f32 %v678, 0.0
        %v732 = vmax.f32 %v680, 0.0
        %v733 = vmax.f32 %v682, 0.0
        %v734 = vmax.f32 %v686, 0.0
        %v735 = vmax.f32 %v688, 0.0
        %v736 = vmax.f32 %v690, 0.0
        %v737 = vmax.f32 %v692, 0.0
        %v738 = vmax.f32 %v696, 0.0
        %v739 = vmax.f32 %v698, 0.0
        %v740 = vmax.f32 %v700, 0.0
        %v741 = vmax.f32 %v702, 0.0
        %v742 = vmax.f32 %v706, 0.0
        %v743 = vmax.f32 %v708, 0.0
        %v744 = vmax.f32 %v710, 0.0
        %v745 = vmax.f32 %v712, 0.0
        %v746 = vpack.c.bf16 %v716, %v714
        %v747 = vpack.c.bf16 %v717, %v715
        %v748 = vpack.c.bf16 %v720, %v718
        %v749 = vpack.c.bf16 %v721, %v719
        %v750 = vpack.c.bf16 %v724, %v722
        %v751 = vpack.c.bf16 %v725, %v723
        %v752 = vpack.c.bf16 %v728, %v726
        %v753 = vpack.c.bf16 %v729, %v727
        %v754 = vpack.c.bf16 %v732, %v730
        %v755 = vpack.c.bf16 %v733, %v731
        %v756 = vpack.c.bf16 %v736, %v734
        %v757 = vpack.c.bf16 %v737, %v735
        %v758 = vpack.c.bf16 %v740, %v738
        %v759 = vpack.c.bf16 %v741, %v739
        %v760 = vpack.c.bf16 %v744, %v742
        %v761 = vpack.c.bf16 %v745, %v743
        %v762 = vld [vmem:[#allocation3] sm:$0xff]
        %v763 = vld [vmem:[#allocation3 + $0x8] sm:$0xff]
        %v764 = vld [vmem:[#allocation3 + $0x10] sm:$0xff]
        %v765 = vld [vmem:[#allocation3 + $0x18] sm:$0xff]
        %v766 = vld [vmem:[#allocation3 + $0x20] sm:$0xff]
        %v767 = vld [vmem:[#allocation3 + $0x28] sm:$0xff]
        %v768 = vld [vmem:[#allocation3 + $0x30] sm:$0xff]
        %v769 = vld [vmem:[#allocation3 + $0x38] sm:$0xff]
        %v770 = vld [vmem:[#allocation3 + $0x40] sm:$0xff]
        %v771 = vld [vmem:[#allocation3 + $0x48] sm:$0xff]
        %v772 = vld [vmem:[#allocation3 + $0x50] sm:$0xff]
        %v773 = vld [vmem:[#allocation3 + $0x58] sm:$0xff]
        %v774 = vld [vmem:[#allocation3 + $0x60] sm:$0xff]
        %v775 = vld [vmem:[#allocation3 + $0x68] sm:$0xff]
        %v776 = vld [vmem:[#allocation3 + $0x70] sm:$0xff]
        %v777 = vld [vmem:[#allocation3 + $0x78] sm:$0xff]
        %v778 = vld [vmem:[#allocation3 + $0x80] sm:$0xff]
        %v779 = vld [vmem:[#allocation3 + $0x88] sm:$0xff]
        %v780 = vld [vmem:[#allocation3 + $0x90] sm:$0xff]
        %v781 = vld [vmem:[#allocation3 + $0x98] sm:$0xff]
        %v782 = vld [vmem:[#allocation3 + $0xa0] sm:$0xff]
        %v783 = vld [vmem:[#allocation3 + $0xa8] sm:$0xff]
        %v784 = vld [vmem:[#allocation3 + $0xb0] sm:$0xff]
        %v785 = vld [vmem:[#allocation3 + $0xb8] sm:$0xff]
        %v786 = vld [vmem:[#allocation3 + $0xc0] sm:$0xff]
        %v787 = vld [vmem:[#allocation3 + $0xc8] sm:$0xff]
        %v788 = vld [vmem:[#allocation3 + $0xd0] sm:$0xff]
        %v789 = vld [vmem:[#allocation3 + $0xd8] sm:$0xff]
        %v790 = vld [vmem:[#allocation3 + $0xe0] sm:$0xff]
        %v791 = vld [vmem:[#allocation3 + $0xe8] sm:$0xff]
        %v792 = vld [vmem:[#allocation3 + $0xf0] sm:$0xff]
        %v793 = vld [vmem:[#allocation3 + $0xf8] sm:$0xff]
        %v794 = vld [vmem:[#allocation3 + $0x100] sm:$0xff]
        %v795 = vld [vmem:[#allocation3 + $0x108] sm:$0xff]
        %v796 = vld [vmem:[#allocation3 + $0x110] sm:$0xff]
        %v797 = vld [vmem:[#allocation3 + $0x118] sm:$0xff]
        %v798 = vld [vmem:[#allocation3 + $0x120] sm:$0xff]
        %v799 = vld [vmem:[#allocation3 + $0x128] sm:$0xff]
        %v800 = vld [vmem:[#allocation3 + $0x130] sm:$0xff]
        %v801 = vld [vmem:[#allocation3 + $0x138] sm:$0xff]
        %v802 = vld [vmem:[#allocation3 + $0x140] sm:$0xff]
        %v803 = vld [vmem:[#allocation3 + $0x148] sm:$0xff]
        %v804 = vld [vmem:[#allocation3 + $0x150] sm:$0xff]
        %v805 = vld [vmem:[#allocation3 + $0x158] sm:$0xff]
        %v806 = vld [vmem:[#allocation3 + $0x160] sm:$0xff]
        %v807 = vld [vmem:[#allocation3 + $0x168] sm:$0xff]
        %v808 = vld [vmem:[#allocation3 + $0x170] sm:$0xff]
        %v809 = vld [vmem:[#allocation3 + $0x178] sm:$0xff]
        %v810 = vld [vmem:[#allocation3 + $0x180] sm:$0xff]
        %v811 = vld [vmem:[#allocation3 + $0x188] sm:$0xff]
        %v812 = vld [vmem:[#allocation3 + $0x190] sm:$0xff]
        %v813 = vld [vmem:[#allocation3 + $0x198] sm:$0xff]
        %v814 = vld [vmem:[#allocation3 + $0x1a0] sm:$0xff]
        %v815 = vld [vmem:[#allocation3 + $0x1a8] sm:$0xff]
        %v816 = vld [vmem:[#allocation3 + $0x1b0] sm:$0xff]
        %v817 = vld [vmem:[#allocation3 + $0x1b8] sm:$0xff]
        %v818 = vld [vmem:[#allocation3 + $0x1c0] sm:$0xff]
        %v819 = vld [vmem:[#allocation3 + $0x1c8] sm:$0xff]
        %v820 = vld [vmem:[#allocation3 + $0x1d0] sm:$0xff]
        %v821 = vld [vmem:[#allocation3 + $0x1d8] sm:$0xff]
        %v822 = vld [vmem:[#allocation3 + $0x1e0] sm:$0xff]
        %v823 = vld [vmem:[#allocation3 + $0x1e8] sm:$0xff]
        %v824 = vld [vmem:[#allocation3 + $0x1f0] sm:$0xff]
        %v825 = vld [vmem:[#allocation3 + $0x1f8] sm:$0xff]
        %v826 = vld [vmem:[%s4] sm:$0xf]
        %v828 = vlaneseq
        %v829 = vshrl.u32 %v828, 7
        %v830 = vsub.s32 0, %v829
        %v831 = vrot.slane %v826, %v830
        %v832 = vlaneseq
        %v833 = vshrl.u32 %v832, 7
        %v834 = vsub.s32 1, %v833
        %v835 = vrot.slane %v826, %v834
        %v836 = vlaneseq
        %v837 = vshrl.u32 %v836, 7
        %v838 = vsub.s32 2, %v837
        %v839 = vrot.slane %v826, %v838
        %v840 = vlaneseq
        %v841 = vshrl.u32 %v840, 7
        %v842 = vsub.s32 3, %v841
        %v843 = vrot.slane %v826, %v842
        %v912 = vunpack.c.l.b16 %v762
        %v913 = vunpack.c.h.b16 %v762
        %v914 = vunpack.c.l.b16 %v763
        %v915 = vunpack.c.h.b16 %v763
        %v916 = vunpack.c.l.b16 %v764
        %v917 = vunpack.c.h.b16 %v764
        %v918 = vunpack.c.l.b16 %v765
        %v919 = vunpack.c.h.b16 %v765
        %v920 = vunpack.c.l.b16 %v766
        %v921 = vunpack.c.h.b16 %v766
        %v922 = vunpack.c.l.b16 %v767
        %v923 = vunpack.c.h.b16 %v767
        %v924 = vunpack.c.l.b16 %v768
        %v925 = vunpack.c.h.b16 %v768
        %v926 = vunpack.c.l.b16 %v769
        %v927 = vunpack.c.h.b16 %v769
        %v928 = vunpack.c.l.b16 %v770
        %v929 = vunpack.c.h.b16 %v770
        %v930 = vunpack.c.l.b16 %v771
        %v931 = vunpack.c.h.b16 %v771
        %v932 = vunpack.c.l.b16 %v772
        %v933 = vunpack.c.h.b16 %v772
        %v934 = vunpack.c.l.b16 %v773
        %v935 = vunpack.c.h.b16 %v773
        %v936 = vunpack.c.l.b16 %v774
        %v937 = vunpack.c.h.b16 %v774
        %v938 = vunpack.c.l.b16 %v775
        %v939 = vunpack.c.h.b16 %v775
        %v940 = vunpack.c.l.b16 %v776
        %v941 = vunpack.c.h.b16 %v776
        %v942 = vunpack.c.l.b16 %v777
        %v943 = vunpack.c.h.b16 %v777
        %v944 = vunpack.c.l.b16 %v778
        %v945 = vunpack.c.h.b16 %v778
        %v946 = vunpack.c.l.b16 %v779
        %v947 = vunpack.c.h.b16 %v779
        %v948 = vunpack.c.l.b16 %v780
        %v949 = vunpack.c.h.b16 %v780
        %v950 = vunpack.c.l.b16 %v781
        %v951 = vunpack.c.h.b16 %v781
        %v952 = vunpack.c.l.b16 %v782
        %v953 = vunpack.c.h.b16 %v782
        %v954 = vunpack.c.l.b16 %v783
        %v955 = vunpack.c.h.b16 %v783
        %v956 = vunpack.c.l.b16 %v784
        %v957 = vunpack.c.h.b16 %v784
        %v958 = vunpack.c.l.b16 %v785
        %v959 = vunpack.c.h.b16 %v785
        %v960 = vunpack.c.l.b16 %v786
        %v961 = vunpack.c.h.b16 %v786
        %v962 = vunpack.c.l.b16 %v787
        %v963 = vunpack.c.h.b16 %v787
        %v964 = vunpack.c.l.b16 %v788
        %v965 = vunpack.c.h.b16 %v788
        %v966 = vunpack.c.l.b16 %v789
        %v967 = vunpack.c.h.b16 %v789
        %v968 = vunpack.c.l.b16 %v790
        %v969 = vunpack.c.h.b16 %v790
        %v970 = vunpack.c.l.b16 %v791
        %v971 = vunpack.c.h.b16 %v791
        %v972 = vunpack.c.l.b16 %v792
        %v973 = vunpack.c.h.b16 %v792
        %v974 = vunpack.c.l.b16 %v793
        %v975 = vunpack.c.h.b16 %v793
        %v976 = vunpack.c.l.b16 %v794
        %v977 = vunpack.c.h.b16 %v794
        %v978 = vunpack.c.l.b16 %v795
        %v979 = vunpack.c.h.b16 %v795
        %v980 = vunpack.c.l.b16 %v796
        %v981 = vunpack.c.h.b16 %v796
        %v982 = vunpack.c.l.b16 %v797
        %v983 = vunpack.c.h.b16 %v797
        %v984 = vunpack.c.l.b16 %v798
        %v985 = vunpack.c.h.b16 %v798
        %v986 = vunpack.c.l.b16 %v799
        %v987 = vunpack.c.h.b16 %v799
        %v988 = vunpack.c.l.b16 %v800
        %v989 = vunpack.c.h.b16 %v800
        %v990 = vunpack.c.l.b16 %v801
        %v991 = vunpack.c.h.b16 %v801
        %v992 = vunpack.c.l.b16 %v802
        %v993 = vunpack.c.h.b16 %v802
        %v994 = vunpack.c.l.b16 %v803
        %v995 = vunpack.c.h.b16 %v803
        %v996 = vunpack.c.l.b16 %v804
        %v997 = vunpack.c.h.b16 %v804
        %v998 = vunpack.c.l.b16 %v805
        %v999 = vunpack.c.h.b16 %v805
        %v1000 = vunpack.c.l.b16 %v806
        %v1001 = vunpack.c.h.b16 %v806
        %v1002 = vunpack.c.l.b16 %v807
        %v1003 = vunpack.c.h.b16 %v807
        %v1004 = vunpack.c.l.b16 %v808
        %v1005 = vunpack.c.h.b16 %v808
        %v1006 = vunpack.c.l.b16 %v809
        %v1007 = vunpack.c.h.b16 %v809
        %v1008 = vunpack.c.l.b16 %v810
        %v1009 = vunpack.c.h.b16 %v810
        %v1010 = vunpack.c.l.b16 %v811
        %v1011 = vunpack.c.h.b16 %v811
        %v1012 = vunpack.c.l.b16 %v812
        %v1013 = vunpack.c.h.b16 %v812
        %v1014 = vunpack.c.l.b16 %v813
        %v1015 = vunpack.c.h.b16 %v813
        %v1016 = vunpack.c.l.b16 %v814
        %v1017 = vunpack.c.h.b16 %v814
        %v1018 = vunpack.c.l.b16 %v815
        %v1019 = vunpack.c.h.b16 %v815
        %v1020 = vunpack.c.l.b16 %v816
        %v1021 = vunpack.c.h.b16 %v816
        %v1022 = vunpack.c.l.b16 %v817
        %v1023 = vunpack.c.h.b16 %v817
        %v1024 = vunpack.c.l.b16 %v818
        %v1025 = vunpack.c.h.b16 %v818
        %v1026 = vunpack.c.l.b16 %v819
        %v1027 = vunpack.c.h.b16 %v819
        %v1028 = vunpack.c.l.b16 %v820
        %v1029 = vunpack.c.h.b16 %v820
        %v1030 = vunpack.c.l.b16 %v821
        %v1031 = vunpack.c.h.b16 %v821
        %v1032 = vunpack.c.l.b16 %v822
        %v1033 = vunpack.c.h.b16 %v822
        %v1034 = vunpack.c.l.b16 %v823
        %v1035 = vunpack.c.h.b16 %v823
        %v1036 = vunpack.c.l.b16 %v824
        %v1037 = vunpack.c.h.b16 %v824
        %v1038 = vunpack.c.l.b16 %v825
        %v1039 = vunpack.c.h.b16 %v825
        %v1040 = vpack.c.b16 %v916, %v912
        %v1041 = vpack.c.b16 %v917, %v913
        %v1042 = vpack.c.b16 %v918, %v914
        %v1043 = vpack.c.b16 %v919, %v915
        %v1044 = vpack.c.b16 %v924, %v920
        %v1045 = vpack.c.b16 %v925, %v921
        %v1046 = vpack.c.b16 %v926, %v922
        %v1047 = vpack.c.b16 %v927, %v923
        %v1048 = vpack.c.b16 %v932, %v928
        %v1049 = vpack.c.b16 %v933, %v929
        %v1050 = vpack.c.b16 %v934, %v930
        %v1051 = vpack.c.b16 %v935, %v931
        %v1052 = vpack.c.b16 %v940, %v936
        %v1053 = vpack.c.b16 %v941, %v937
        %v1054 = vpack.c.b16 %v942, %v938
        %v1055 = vpack.c.b16 %v943, %v939
        %v1056 = vpack.c.b16 %v948, %v944
        %v1057 = vpack.c.b16 %v949, %v945
        %v1058 = vpack.c.b16 %v950, %v946
        %v1059 = vpack.c.b16 %v951, %v947
        %v1060 = vpack.c.b16 %v956, %v952
        %v1061 = vpack.c.b16 %v957, %v953
        %v1062 = vpack.c.b16 %v958, %v954
        %v1063 = vpack.c.b16 %v959, %v955
        %v1064 = vpack.c.b16 %v964, %v960
        %v1065 = vpack.c.b16 %v965, %v961
        %v1066 = vpack.c.b16 %v966, %v962
        %v1067 = vpack.c.b16 %v967, %v963
        %v1068 = vpack.c.b16 %v972, %v968
        %v1069 = vpack.c.b16 %v973, %v969
        %v1070 = vpack.c.b16 %v974, %v970
        %v1071 = vpack.c.b16 %v975, %v971
        %v1072 = vpack.c.b16 %v980, %v976
        %v1073 = vpack.c.b16 %v981, %v977
        %v1074 = vpack.c.b16 %v982, %v978
        %v1075 = vpack.c.b16 %v983, %v979
        %v1076 = vpack.c.b16 %v988, %v984
        %v1077 = vpack.c.b16 %v989, %v985
        %v1078 = vpack.c.b16 %v990, %v986
        %v1079 = vpack.c.b16 %v991, %v987
        %v1080 = vpack.c.b16 %v996, %v992
        %v1081 = vpack.c.b16 %v997, %v993
        %v1082 = vpack.c.b16 %v998, %v994
        %v1083 = vpack.c.b16 %v999, %v995
        %v1084 = vpack.c.b16 %v1004, %v1000
        %v1085 = vpack.c.b16 %v1005, %v1001
        %v1086 = vpack.c.b16 %v1006, %v1002
        %v1087 = vpack.c.b16 %v1007, %v1003
        %v1088 = vpack.c.b16 %v1012, %v1008
        %v1089 = vpack.c.b16 %v1013, %v1009
        %v1090 = vpack.c.b16 %v1014, %v1010
        %v1091 = vpack.c.b16 %v1015, %v1011
        %v1092 = vpack.c.b16 %v1020, %v1016
        %v1093 = vpack.c.b16 %v1021, %v1017
        %v1094 = vpack.c.b16 %v1022, %v1018
        %v1095 = vpack.c.b16 %v1023, %v1019
        %v1096 = vpack.c.b16 %v1028, %v1024
        %v1097 = vpack.c.b16 %v1029, %v1025
        %v1098 = vpack.c.b16 %v1030, %v1026
        %v1099 = vpack.c.b16 %v1031, %v1027
        %v1100 = vpack.c.b16 %v1036, %v1032
        %v1101 = vpack.c.b16 %v1037, %v1033
        %v1102 = vpack.c.b16 %v1038, %v1034
        %v1103 = vpack.c.b16 %v1039, %v1035
        %1168 = vmatprep.subr.bf16.mxu0 %v1041
        %1169 = vmatpush1.bf16.msra.mxu0 %v1040
        %1170 = vmatprep.subr.bf16.mxu0 %v1045
        %1171 = vmatpush1.bf16.msra.mxu0 %v1044
        %1172 = vmatprep.subr.bf16.mxu0 %v1049
        %1173 = vmatpush1.bf16.msra.mxu0 %v1048
        %1174 = vmatprep.subr.bf16.mxu0 %v1053
        %1175 = vmatpush1.bf16.msra.mxu0 %v1052
        %1176 = vmatprep.subr.bf16.mxu0 %v1057
        %1177 = vmatpush1.bf16.msra.mxu0 %v1056
        %1178 = vmatprep.subr.bf16.mxu0 %v1061
        %1179 = vmatpush1.bf16.msra.mxu0 %v1060
        %1180 = vmatprep.subr.bf16.mxu0 %v1065
        %1181 = vmatpush1.bf16.msra.mxu0 %v1064
        %1182 = vmatprep.subr.bf16.mxu0 %v1069
        %1183 = vmatpush1.bf16.msra.mxu0 %v1068
        %1184 = vmatprep.subr.bf16.mxu0 %v1073
        %1185 = vmatpush1.bf16.msra.mxu0 %v1072
        %1186 = vmatprep.subr.bf16.mxu0 %v1077
        %1187 = vmatpush1.bf16.msra.mxu0 %v1076
        %1188 = vmatprep.subr.bf16.mxu0 %v1081
        %1189 = vmatpush1.bf16.msra.mxu0 %v1080
        %1190 = vmatprep.subr.bf16.mxu0 %v1085
        %1191 = vmatpush1.bf16.msra.mxu0 %v1084
        %1192 = vmatprep.subr.bf16.mxu0 %v1089
        %1193 = vmatpush1.bf16.msra.mxu0 %v1088
        %1194 = vmatprep.subr.bf16.mxu0 %v1093
        %1195 = vmatpush1.bf16.msra.mxu0 %v1092
        %1196 = vmatprep.subr.bf16.mxu0 %v1097
        %1197 = vmatpush1.bf16.msra.mxu0 %v1096
        %1198 = vmatprep.subr.bf16.mxu0 %v1101
        %1199 = vmatpush1.bf16.msra.mxu0 %v1100
        %1200 = vmatprep.mubr.bf16.mxu0 %v747
        %1201 = vmatmul.mubr.bf16.gmra.mrb[0].mxu0 %v746
        %v1202 = vpop.f32.mrb[0].mxu0
        %v1203 = vadd.f32 %v831, %v1202
        %v1204 = vpop.f32.mrb[0].mxu0
        %v1205 = vadd.f32 %v835, %v1204
        %v1206 = vpop.f32.mrb[0].mxu0
        %v1207 = vadd.f32 %v831, %v1206
        %v1208 = vpop.f32.mrb[0].mxu0
        %v1209 = vadd.f32 %v835, %v1208
        %1210 = vmatprep.mubr.bf16.mxu0 %v749
        %1211 = vmatmul.mubr.bf16.gmra.mrb[0].mxu0 %v748
        %v1212 = vpop.f32.mrb[0].mxu0
        %v1213 = vadd.f32 %v831, %v1212
        %v1214 = vpop.f32.mrb[0].mxu0
        %v1215 = vadd.f32 %v835, %v1214
        %v1216 = vpop.f32.mrb[0].mxu0
        %v1217 = vadd.f32 %v831, %v1216
        %v1218 = vpop.f32.mrb[0].mxu0
        %v1219 = vadd.f32 %v835, %v1218
        %1220 = vmatprep.mubr.bf16.mxu0 %v751
        %1221 = vmatmul.mubr.bf16.gmra.mrb[0].mxu0 %v750
        %v1222 = vpop.f32.mrb[0].mxu0
        %v1223 = vadd.f32 %v831, %v1222
        %v1224 = vpop.f32.mrb[0].mxu0
        %v1225 = vadd.f32 %v835, %v1224
        %v1226 = vpop.f32.mrb[0].mxu0
        %v1227 = vadd.f32 %v831, %v1226
        %v1228 = vpop.f32.mrb[0].mxu0
        %v1229 = vadd.f32 %v835, %v1228
        %1230 = vmatprep.mubr.bf16.mxu0 %v753
        %1231 = vmatmul.mubr.bf16.gmra.mrb[0].mxu0 %v752
        %v1232 = vpop.f32.mrb[0].mxu0
        %v1233 = vadd.f32 %v831, %v1232
        %v1234 = vpop.f32.mrb[0].mxu0
        %v1235 = vadd.f32 %v835, %v1234
        %v1236 = vpop.f32.mrb[0].mxu0
        %v1237 = vadd.f32 %v831, %v1236
        %v1238 = vpop.f32.mrb[0].mxu0
        %v1239 = vadd.f32 %v835, %v1238
        %1240 = vmatprep.mubr.bf16.mxu0 %v755
        %1241 = vmatmul.mubr.bf16.gmra.mrb[0].mxu0 %v754
        %v1242 = vpop.f32.mrb[0].mxu0
        %v1243 = vadd.f32 %v831, %v1242
        %v1244 = vpop.f32.mrb[0].mxu0
        %v1245 = vadd.f32 %v835, %v1244
        %v1246 = vpop.f32.mrb[0].mxu0
        %v1247 = vadd.f32 %v831, %v1246
        %v1248 = vpop.f32.mrb[0].mxu0
        %v1249 = vadd.f32 %v835, %v1248
        %1250 = vmatprep.mubr.bf16.mxu0 %v757
        %1251 = vmatmul.mubr.bf16.gmra.mrb[0].mxu0 %v756
        %v1252 = vpop.f32.mrb[0].mxu0
        %v1253 = vadd.f32 %v831, %v1252
        %v1254 = vpop.f32.mrb[0].mxu0
        %v1255 = vadd.f32 %v835, %v1254
        %v1256 = vpop.f32.mrb[0].mxu0
        %v1257 = vadd.f32 %v831, %v1256
        %v1258 = vpop.f32.mrb[0].mxu0
        %v1259 = vadd.f32 %v835, %v1258
        %1260 = vmatprep.mubr.bf16.mxu0 %v759
        %1261 = vmatmul.mubr.bf16.gmra.mrb[0].mxu0 %v758
        %v1262 = vpop.f32.mrb[0].mxu0
        %v1263 = vadd.f32 %v831, %v1262
        %v1264 = vpop.f32.mrb[0].mxu0
        %v1265 = vadd.f32 %v835, %v1264
        %v1266 = vpop.f32.mrb[0].mxu0
        %v1267 = vadd.f32 %v831, %v1266
        %v1268 = vpop.f32.mrb[0].mxu0
        %v1269 = vadd.f32 %v835, %v1268
        %1270 = vmatprep.mubr.bf16.mxu0 %v761
        %1271 = vmatmul.mubr.bf16.gmra.mrb[0].mxu0 %v760
        %v1272 = vpop.f32.mrb[0].mxu0
        %v1273 = vadd.f32 %v831, %v1272
        %v1274 = vpop.f32.mrb[0].mxu0
        %v1275 = vadd.f32 %v835, %v1274
        %v1276 = vpop.f32.mrb[0].mxu0
        %v1277 = vadd.f32 %v831, %v1276
        %v1278 = vpop.f32.mrb[0].mxu0
        %v1279 = vadd.f32 %v835, %v1278
        %1280 = vdwg.mxu0
        %1281 = vmatprep.subr.bf16.mxu0 %v1043
        %1282 = vmatpush1.bf16.msra.mxu0 %v1042
        %1283 = vmatprep.subr.bf16.mxu0 %v1047
        %1284 = vmatpush1.bf16.msra.mxu0 %v1046
        %1285 = vmatprep.subr.bf16.mxu0 %v1051
        %1286 = vmatpush1.bf16.msra.mxu0 %v1050
        %1287 = vmatprep.subr.bf16.mxu0 %v1055
        %1288 = vmatpush1.bf16.msra.mxu0 %v1054
        %1289 = vmatprep.subr.bf16.mxu0 %v1059
        %1290 = vmatpush1.bf16.msra.mxu0 %v1058
        %1291 = vmatprep.subr.bf16.mxu0 %v1063
        %1292 = vmatpush1.bf16.msra.mxu0 %v1062
        %1293 = vmatprep.subr.bf16.mxu0 %v1067
        %1294 = vmatpush1.bf16.msra.mxu0 %v1066
        %1295 = vmatprep.subr.bf16.mxu0 %v1071
        %1296 = vmatpush1.bf16.msra.mxu0 %v1070
        %1297 = vmatprep.subr.bf16.mxu0 %v1075
        %1298 = vmatpush1.bf16.msra.mxu0 %v1074
        %1299 = vmatprep.subr.bf16.mxu0 %v1079
        %1300 = vmatpush1.bf16.msra.mxu0 %v1078
        %1301 = vmatprep.subr.bf16.mxu0 %v1083
        %1302 = vmatpush1.bf16.msra.mxu0 %v1082
        %1303 = vmatprep.subr.bf16.mxu0 %v1087
        %1304 = vmatpush1.bf16.msra.mxu0 %v1086
        %1305 = vmatprep.subr.bf16.mxu0 %v1091
        %1306 = vmatpush1.bf16.msra.mxu0 %v1090
        %1307 = vmatprep.subr.bf16.mxu0 %v1095
        %1308 = vmatpush1.bf16.msra.mxu0 %v1094
        %1309 = vmatprep.subr.bf16.mxu0 %v1099
        %1310 = vmatpush1.bf16.msra.mxu0 %v1098
        %1311 = vmatprep.subr.bf16.mxu0 %v1103
        %1312 = vmatpush1.bf16.msra.mxu0 %v1102
        %1313 = vmatprep.mubr.bf16.mxu0 %v747
        %1314 = vmatmul.mubr.bf16.gmra.mrb[0].mxu0 %v746
        %v1315 = vpop.f32.mrb[0].mxu0
        %v1316 = vadd.f32 %v839, %v1315
        %v1317 = vpop.f32.mrb[0].mxu0
        %v1318 = vadd.f32 %v843, %v1317
        %v1319 = vpop.f32.mrb[0].mxu0
        %v1320 = vadd.f32 %v839, %v1319
        %v1321 = vpop.f32.mrb[0].mxu0
        %v1322 = vadd.f32 %v843, %v1321
        %1323 = vmatprep.mubr.bf16.mxu0 %v749
        %1324 = vmatmul.mubr.bf16.gmra.mrb[0].mxu0 %v748
        %v1325 = vpop.f32.mrb[0].mxu0
        %v1326 = vadd.f32 %v839, %v1325
        %v1327 = vpop.f32.mrb[0].mxu0
        %v1328 = vadd.f32 %v843, %v1327
        %v1329 = vpop.f32.mrb[0].mxu0
        %v1330 = vadd.f32 %v839, %v1329
        %v1331 = vpop.f32.mrb[0].mxu0
        %v1332 = vadd.f32 %v843, %v1331
        %1333 = vmatprep.mubr.bf16.mxu0 %v751
        %1334 = vmatmul.mubr.bf16.gmra.mrb[0].mxu0 %v750
        %v1335 = vpop.f32.mrb[0].mxu0
        %v1336 = vadd.f32 %v839, %v1335
        %v1337 = vpop.f32.mrb[0].mxu0
        %v1338 = vadd.f32 %v843, %v1337
        %v1339 = vpop.f32.mrb[0].mxu0
        %v1340 = vadd.f32 %v839, %v1339
        %v1341 = vpop.f32.mrb[0].mxu0
        %v1342 = vadd.f32 %v843, %v1341
        %1343 = vmatprep.mubr.bf16.mxu0 %v753
        %1344 = vmatmul.mubr.bf16.gmra.mrb[0].mxu0 %v752
        %v1345 = vpop.f32.mrb[0].mxu0
        %v1346 = vadd.f32 %v839, %v1345
        %v1347 = vpop.f32.mrb[0].mxu0
        %v1348 = vadd.f32 %v843, %v1347
        %v1349 = vpop.f32.mrb[0].mxu0
        %v1350 = vadd.f32 %v839, %v1349
        %v1351 = vpop.f32.mrb[0].mxu0
        %v1352 = vadd.f32 %v843, %v1351
        %1353 = vmatprep.mubr.bf16.mxu0 %v755
        %1354 = vmatmul.mubr.bf16.gmra.mrb[0].mxu0 %v754
        %v1355 = vpop.f32.mrb[0].mxu0
        %v1356 = vadd.f32 %v839, %v1355
        %v1357 = vpop.f32.mrb[0].mxu0
        %v1358 = vadd.f32 %v843, %v1357
        %v1359 = vpop.f32.mrb[0].mxu0
        %v1360 = vadd.f32 %v839, %v1359
        %v1361 = vpop.f32.mrb[0].mxu0
        %v1362 = vadd.f32 %v843, %v1361
        %1363 = vmatprep.mubr.bf16.mxu0 %v757
        %1364 = vmatmul.mubr.bf16.gmra.mrb[0].mxu0 %v756
        %v1365 = vpop.f32.mrb[0].mxu0
        %v1366 = vadd.f32 %v839, %v1365
        %v1367 = vpop.f32.mrb[0].mxu0
        %v1368 = vadd.f32 %v843, %v1367
        %v1369 = vpop.f32.mrb[0].mxu0
        %v1370 = vadd.f32 %v839, %v1369
        %v1371 = vpop.f32.mrb[0].mxu0
        %v1372 = vadd.f32 %v843, %v1371
        %1373 = vmatprep.mubr.bf16.mxu0 %v759
        %1374 = vmatmul.mubr.bf16.gmra.mrb[0].mxu0 %v758
        %v1375 = vpop.f32.mrb[0].mxu0
        %v1376 = vadd.f32 %v839, %v1375
        %v1377 = vpop.f32.mrb[0].mxu0
        %v1378 = vadd.f32 %v843, %v1377
        %v1379 = vpop.f32.mrb[0].mxu0
        %v1380 = vadd.f32 %v839, %v1379
        %v1381 = vpop.f32.mrb[0].mxu0
        %v1382 = vadd.f32 %v843, %v1381
        %1383 = vmatprep.mubr.bf16.mxu0 %v761
        %1384 = vmatmul.mubr.bf16.gmra.mrb[0].mxu0 %v760
        %v1385 = vpop.f32.mrb[0].mxu0
        %v1386 = vadd.f32 %v839, %v1385
        %v1387 = vpop.f32.mrb[0].mxu0
        %v1388 = vadd.f32 %v843, %v1387
        %v1389 = vpop.f32.mrb[0].mxu0
        %v1390 = vadd.f32 %v839, %v1389
        %v1391 = vpop.f32.mrb[0].mxu0
        %v1392 = vadd.f32 %v843, %v1391
        %1393 = vdwg.mxu0
        %v1394 = vmax.f32 %v1203, 0.0
        %v1395 = vmax.f32 %v1205, 0.0
        %v1396 = vmax.f32 %v1316, 0.0
        %v1397 = vmax.f32 %v1318, 0.0
        %v1398 = vmax.f32 %v1207, 0.0
        %v1399 = vmax.f32 %v1209, 0.0
        %v1400 = vmax.f32 %v1320, 0.0
        %v1401 = vmax.f32 %v1322, 0.0
        %v1402 = vmax.f32 %v1213, 0.0
        %v1403 = vmax.f32 %v1215, 0.0
        %v1404 = vmax.f32 %v1326, 0.0
        %v1405 = vmax.f32 %v1328, 0.0
        %v1406 = vmax.f32 %v1217, 0.0
        %v1407 = vmax.f32 %v1219, 0.0
        %v1408 = vmax.f32 %v1330, 0.0
        %v1409 = vmax.f32 %v1332, 0.0
        %v1410 = vmax.f32 %v1223, 0.0
        %v1411 = vmax.f32 %v1225, 0.0
        %v1412 = vmax.f32 %v1336, 0.0
        %v1413 = vmax.f32 %v1338, 0.0
        %v1414 = vmax.f32 %v1227, 0.0
        %v1415 = vmax.f32 %v1229, 0.0
        %v1416 = vmax.f32 %v1340, 0.0
        %v1417 = vmax.f32 %v1342, 0.0
        %v1418 = vmax.f32 %v1233, 0.0
        %v1419 = vmax.f32 %v1235, 0.0
        %v1420 = vmax.f32 %v1346, 0.0
        %v1421 = vmax.f32 %v1348, 0.0
        %v1422 = vmax.f32 %v1237, 0.0
        %v1423 = vmax.f32 %v1239, 0.0
        %v1424 = vmax.f32 %v1350, 0.0
        %v1425 = vmax.f32 %v1352, 0.0
        %v1426 = vmax.f32 %v1243, 0.0
        %v1427 = vmax.f32 %v1245, 0.0
        %v1428 = vmax.f32 %v1356, 0.0
        %v1429 = vmax.f32 %v1358, 0.0
        %v1430 = vmax.f32 %v1247, 0.0
        %v1431 = vmax.f32 %v1249, 0.0
        %v1432 = vmax.f32 %v1360, 0.0
        %v1433 = vmax.f32 %v1362, 0.0
        %v1434 = vmax.f32 %v1253, 0.0
        %v1435 = vmax.f32 %v1255, 0.0
        %v1436 = vmax.f32 %v1366, 0.0
        %v1437 = vmax.f32 %v1368, 0.0
        %v1438 = vmax.f32 %v1257, 0.0
        %v1439 = vmax.f32 %v1259, 0.0
        %v1440 = vmax.f32 %v1370, 0.0
        %v1441 = vmax.f32 %v1372, 0.0
        %v1442 = vmax.f32 %v1263, 0.0
        %v1443 = vmax.f32 %v1265, 0.0
        %v1444 = vmax.f32 %v1376, 0.0
        %v1445 = vmax.f32 %v1378, 0.0
        %v1446 = vmax.f32 %v1267, 0.0
        %v1447 = vmax.f32 %v1269, 0.0
        %v1448 = vmax.f32 %v1380, 0.0
        %v1449 = vmax.f32 %v1382, 0.0
        %v1450 = vmax.f32 %v1273, 0.0
        %v1451 = vmax.f32 %v1275, 0.0
        %v1452 = vmax.f32 %v1386, 0.0
        %v1453 = vmax.f32 %v1388, 0.0
        %v1454 = vmax.f32 %v1277, 0.0
        %v1455 = vmax.f32 %v1279, 0.0
        %v1456 = vmax.f32 %v1390, 0.0
        %v1457 = vmax.f32 %v1392, 0.0
        %v1458 = vpack.c.bf16 %v1398, %v1394
        %v1459 = vpack.c.bf16 %v1399, %v1395
        %v1460 = vpack.c.bf16 %v1400, %v1396
        %v1461 = vpack.c.bf16 %v1401, %v1397
        %v1462 = vpack.c.bf16 %v1406, %v1402
        %v1463 = vpack.c.bf16 %v1407, %v1403
        %v1464 = vpack.c.bf16 %v1408, %v1404
        %v1465 = vpack.c.bf16 %v1409, %v1405
        %v1466 = vpack.c.bf16 %v1414, %v1410
        %v1467 = vpack.c.bf16 %v1415, %v1411
        %v1468 = vpack.c.bf16 %v1416, %v1412
        %v1469 = vpack.c.bf16 %v1417, %v1413
        %v1470 = vpack.c.bf16 %v1422, %v1418
        %v1471 = vpack.c.bf16 %v1423, %v1419
        %v1472 = vpack.c.bf16 %v1424, %v1420
        %v1473 = vpack.c.bf16 %v1425, %v1421
        %v1474 = vpack.c.bf16 %v1430, %v1426
        %v1475 = vpack.c.bf16 %v1431, %v1427
        %v1476 = vpack.c.bf16 %v1432, %v1428
        %v1477 = vpack.c.bf16 %v1433, %v1429
        %v1478 = vpack.c.bf16 %v1438, %v1434
        %v1479 = vpack.c.bf16 %v1439, %v1435
        %v1480 = vpack.c.bf16 %v1440, %v1436
        %v1481 = vpack.c.bf16 %v1441, %v1437
        %v1482 = vpack.c.bf16 %v1446, %v1442
        %v1483 = vpack.c.bf16 %v1447, %v1443
        %v1484 = vpack.c.bf16 %v1448, %v1444
        %v1485 = vpack.c.bf16 %v1449, %v1445
        %v1486 = vpack.c.bf16 %v1454, %v1450
        %v1487 = vpack.c.bf16 %v1455, %v1451
        %v1488 = vpack.c.bf16 %v1456, %v1452
        %v1489 = vpack.c.bf16 %v1457, %v1453
        %v1490 = vld [vmem:[#allocation5] sm:$0xff]
        %v1491 = vld [vmem:[#allocation5 + $0x8] sm:$0xff]
        %v1492 = vld [vmem:[#allocation5 + $0x10] sm:$0xff]
        %v1493 = vld [vmem:[#allocation5 + $0x18] sm:$0xff]
        %v1494 = vld [vmem:[#allocation5 + $0x20] sm:$0xff]
        %v1495 = vld [vmem:[#allocation5 + $0x28] sm:$0xff]
        %v1496 = vld [vmem:[#allocation5 + $0x30] sm:$0xff]
        %v1497 = vld [vmem:[#allocation5 + $0x38] sm:$0xff]
        %v1498 = vld [vmem:[#allocation5 + $0x40] sm:$0xff]
        %v1499 = vld [vmem:[#allocation5 + $0x48] sm:$0xff]
        %v1500 = vld [vmem:[#allocation5 + $0x50] sm:$0xff]
        %v1501 = vld [vmem:[#allocation5 + $0x58] sm:$0xff]
        %v1502 = vld [vmem:[#allocation5 + $0x60] sm:$0xff]
        %v1503 = vld [vmem:[#allocation5 + $0x68] sm:$0xff]
        %v1504 = vld [vmem:[#allocation5 + $0x70] sm:$0xff]
        %v1505 = vld [vmem:[#allocation5 + $0x78] sm:$0xff]
        %v1506 = vld [vmem:[#allocation5 + $0x80] sm:$0xff]
        %v1507 = vld [vmem:[#allocation5 + $0x88] sm:$0xff]
        %v1508 = vld [vmem:[#allocation5 + $0x90] sm:$0xff]
        %v1509 = vld [vmem:[#allocation5 + $0x98] sm:$0xff]
        %v1510 = vld [vmem:[#allocation5 + $0xa0] sm:$0xff]
        %v1511 = vld [vmem:[#allocation5 + $0xa8] sm:$0xff]
        %v1512 = vld [vmem:[#allocation5 + $0xb0] sm:$0xff]
        %v1513 = vld [vmem:[#allocation5 + $0xb8] sm:$0xff]
        %v1514 = vld [vmem:[#allocation5 + $0xc0] sm:$0xff]
        %v1515 = vld [vmem:[#allocation5 + $0xc8] sm:$0xff]
        %v1516 = vld [vmem:[#allocation5 + $0xd0] sm:$0xff]
        %v1517 = vld [vmem:[#allocation5 + $0xd8] sm:$0xff]
        %v1518 = vld [vmem:[#allocation5 + $0xe0] sm:$0xff]
        %v1519 = vld [vmem:[#allocation5 + $0xe8] sm:$0xff]
        %v1520 = vld [vmem:[#allocation5 + $0xf0] sm:$0xff]
        %v1521 = vld [vmem:[#allocation5 + $0xf8] sm:$0xff]
        %v1522 = vld [vmem:[#allocation5 + $0x100] sm:$0xff]
        %v1523 = vld [vmem:[#allocation5 + $0x108] sm:$0xff]
        %v1524 = vld [vmem:[#allocation5 + $0x110] sm:$0xff]
        %v1525 = vld [vmem:[#allocation5 + $0x118] sm:$0xff]
        %v1526 = vld [vmem:[#allocation5 + $0x120] sm:$0xff]
        %v1527 = vld [vmem:[#allocation5 + $0x128] sm:$0xff]
        %v1528 = vld [vmem:[#allocation5 + $0x130] sm:$0xff]
        %v1529 = vld [vmem:[#allocation5 + $0x138] sm:$0xff]
        %v1530 = vld [vmem:[#allocation5 + $0x140] sm:$0xff]
        %v1531 = vld [vmem:[#allocation5 + $0x148] sm:$0xff]
        %v1532 = vld [vmem:[#allocation5 + $0x150] sm:$0xff]
        %v1533 = vld [vmem:[#allocation5 + $0x158] sm:$0xff]
        %v1534 = vld [vmem:[#allocation5 + $0x160] sm:$0xff]
        %v1535 = vld [vmem:[#allocation5 + $0x168] sm:$0xff]
        %v1536 = vld [vmem:[#allocation5 + $0x170] sm:$0xff]
        %v1537 = vld [vmem:[#allocation5 + $0x178] sm:$0xff]
        %v1538 = vld [vmem:[#allocation5 + $0x180] sm:$0xff]
        %v1539 = vld [vmem:[#allocation5 + $0x188] sm:$0xff]
        %v1540 = vld [vmem:[#allocation5 + $0x190] sm:$0xff]
        %v1541 = vld [vmem:[#allocation5 + $0x198] sm:$0xff]
        %v1542 = vld [vmem:[#allocation5 + $0x1a0] sm:$0xff]
        %v1543 = vld [vmem:[#allocation5 + $0x1a8] sm:$0xff]
        %v1544 = vld [vmem:[#allocation5 + $0x1b0] sm:$0xff]
        %v1545 = vld [vmem:[#allocation5 + $0x1b8] sm:$0xff]
        %v1546 = vld [vmem:[#allocation5 + $0x1c0] sm:$0xff]
        %v1547 = vld [vmem:[#allocation5 + $0x1c8] sm:$0xff]
        %v1548 = vld [vmem:[#allocation5 + $0x1d0] sm:$0xff]
        %v1549 = vld [vmem:[#allocation5 + $0x1d8] sm:$0xff]
        %v1550 = vld [vmem:[#allocation5 + $0x1e0] sm:$0xff]
        %v1551 = vld [vmem:[#allocation5 + $0x1e8] sm:$0xff]
        %v1552 = vld [vmem:[#allocation5 + $0x1f0] sm:$0xff]
        %v1553 = vld [vmem:[#allocation5 + $0x1f8] sm:$0xff]
        %v1554 = vld [vmem:[#allocation5 + $0x200] sm:$0xff]
        %v1555 = vld [vmem:[#allocation5 + $0x208] sm:$0xff]
        %v1556 = vld [vmem:[#allocation5 + $0x210] sm:$0xff]
        %v1557 = vld [vmem:[#allocation5 + $0x218] sm:$0xff]
        %v1558 = vld [vmem:[#allocation5 + $0x220] sm:$0xff]
        %v1559 = vld [vmem:[#allocation5 + $0x228] sm:$0xff]
        %v1560 = vld [vmem:[#allocation5 + $0x230] sm:$0xff]
        %v1561 = vld [vmem:[#allocation5 + $0x238] sm:$0xff]
        %v1562 = vld [vmem:[#allocation5 + $0x240] sm:$0xff]
        %v1563 = vld [vmem:[#allocation5 + $0x248] sm:$0xff]
        %v1564 = vld [vmem:[#allocation5 + $0x250] sm:$0xff]
        %v1565 = vld [vmem:[#allocation5 + $0x258] sm:$0xff]
        %v1566 = vld [vmem:[#allocation5 + $0x260] sm:$0xff]
        %v1567 = vld [vmem:[#allocation5 + $0x268] sm:$0xff]
        %v1568 = vld [vmem:[#allocation5 + $0x270] sm:$0xff]
        %v1569 = vld [vmem:[#allocation5 + $0x278] sm:$0xff]
        %v1570 = vld [vmem:[#allocation5 + $0x280] sm:$0xff]
        %v1571 = vld [vmem:[#allocation5 + $0x288] sm:$0xff]
        %v1572 = vld [vmem:[#allocation5 + $0x290] sm:$0xff]
        %v1573 = vld [vmem:[#allocation5 + $0x298] sm:$0xff]
        %v1574 = vld [vmem:[#allocation5 + $0x2a0] sm:$0xff]
        %v1575 = vld [vmem:[#allocation5 + $0x2a8] sm:$0xff]
        %v1576 = vld [vmem:[#allocation5 + $0x2b0] sm:$0xff]
        %v1577 = vld [vmem:[#allocation5 + $0x2b8] sm:$0xff]
        %v1578 = vld [vmem:[#allocation5 + $0x2c0] sm:$0xff]
        %v1579 = vld [vmem:[#allocation5 + $0x2c8] sm:$0xff]
        %v1580 = vld [vmem:[#allocation5 + $0x2d0] sm:$0xff]
        %v1581 = vld [vmem:[#allocation5 + $0x2d8] sm:$0xff]
        %v1582 = vld [vmem:[#allocation5 + $0x2e0] sm:$0xff]
        %v1583 = vld [vmem:[#allocation5 + $0x2e8] sm:$0xff]
        %v1584 = vld [vmem:[#allocation5 + $0x2f0] sm:$0xff]
        %v1585 = vld [vmem:[#allocation5 + $0x2f8] sm:$0xff]
        %v1586 = vld [vmem:[#allocation5 + $0x300] sm:$0xff]
        %v1587 = vld [vmem:[#allocation5 + $0x308] sm:$0xff]
        %v1588 = vld [vmem:[#allocation5 + $0x310] sm:$0xff]
        %v1589 = vld [vmem:[#allocation5 + $0x318] sm:$0xff]
        %v1590 = vld [vmem:[#allocation5 + $0x320] sm:$0xff]
        %v1591 = vld [vmem:[#allocation5 + $0x328] sm:$0xff]
        %v1592 = vld [vmem:[#allocation5 + $0x330] sm:$0xff]
        %v1593 = vld [vmem:[#allocation5 + $0x338] sm:$0xff]
        %v1594 = vld [vmem:[#allocation5 + $0x340] sm:$0xff]
        %v1595 = vld [vmem:[#allocation5 + $0x348] sm:$0xff]
        %v1596 = vld [vmem:[#allocation5 + $0x350] sm:$0xff]
        %v1597 = vld [vmem:[#allocation5 + $0x358] sm:$0xff]
        %v1598 = vld [vmem:[#allocation5 + $0x360] sm:$0xff]
        %v1599 = vld [vmem:[#allocation5 + $0x368] sm:$0xff]
        %v1600 = vld [vmem:[#allocation5 + $0x370] sm:$0xff]
        %v1601 = vld [vmem:[#allocation5 + $0x378] sm:$0xff]
        %v1602 = vld [vmem:[#allocation5 + $0x380] sm:$0xff]
        %v1603 = vld [vmem:[#allocation5 + $0x388] sm:$0xff]
        %v1604 = vld [vmem:[#allocation5 + $0x390] sm:$0xff]
        %v1605 = vld [vmem:[#allocation5 + $0x398] sm:$0xff]
        %v1606 = vld [vmem:[#allocation5 + $0x3a0] sm:$0xff]
        %v1607 = vld [vmem:[#allocation5 + $0x3a8] sm:$0xff]
        %v1608 = vld [vmem:[#allocation5 + $0x3b0] sm:$0xff]
        %v1609 = vld [vmem:[#allocation5 + $0x3b8] sm:$0xff]
        %v1610 = vld [vmem:[#allocation5 + $0x3c0] sm:$0xff]
        %v1611 = vld [vmem:[#allocation5 + $0x3c8] sm:$0xff]
        %v1612 = vld [vmem:[#allocation5 + $0x3d0] sm:$0xff]
        %v1613 = vld [vmem:[#allocation5 + $0x3d8] sm:$0xff]
        %v1614 = vld [vmem:[#allocation5 + $0x3e0] sm:$0xff]
        %v1615 = vld [vmem:[#allocation5 + $0x3e8] sm:$0xff]
        %v1616 = vld [vmem:[#allocation5 + $0x3f0] sm:$0xff]
        %v1617 = vld [vmem:[#allocation5 + $0x3f8] sm:$0xff]
        %v1618 = vld [vmem:[%s6] sm:$0xf]
        %v1620 = vlaneseq
        %v1621 = vshrl.u32 %v1620, 7
        %v1622 = vsub.s32 0, %v1621
        %v1623 = vrot.slane %v1618, %v1622
        %v1624 = vlaneseq
        %v1625 = vshrl.u32 %v1624, 7
        %v1626 = vsub.s32 1, %v1625
        %v1627 = vrot.slane %v1618, %v1626
        %v1628 = vlaneseq
        %v1629 = vshrl.u32 %v1628, 7
        %v1630 = vsub.s32 2, %v1629
        %v1631 = vrot.slane %v1618, %v1630
        %v1632 = vlaneseq
        %v1633 = vshrl.u32 %v1632, 7
        %v1634 = vsub.s32 3, %v1633
        %v1635 = vrot.slane %v1618, %v1634
        %v1768 = vunpack.c.l.b16 %v1490
        %v1769 = vunpack.c.h.b16 %v1490
        %v1770 = vunpack.c.l.b16 %v1491
        %v1771 = vunpack.c.h.b16 %v1491
        %v1772 = vunpack.c.l.b16 %v1492
        %v1773 = vunpack.c.h.b16 %v1492
        %v1774 = vunpack.c.l.b16 %v1493
        %v1775 = vunpack.c.h.b16 %v1493
        %v1776 = vunpack.c.l.b16 %v1494
        %v1777 = vunpack.c.h.b16 %v1494
        %v1778 = vunpack.c.l.b16 %v1495
        %v1779 = vunpack.c.h.b16 %v1495
        %v1780 = vunpack.c.l.b16 %v1496
        %v1781 = vunpack.c.h.b16 %v1496
        %v1782 = vunpack.c.l.b16 %v1497
        %v1783 = vunpack.c.h.b16 %v1497
        %v1784 = vunpack.c.l.b16 %v1498
        %v1785 = vunpack.c.h.b16 %v1498
        %v1786 = vunpack.c.l.b16 %v1499
        %v1787 = vunpack.c.h.b16 %v1499
        %v1788 = vunpack.c.l.b16 %v1500
        %v1789 = vunpack.c.h.b16 %v1500
        %v1790 = vunpack.c.l.b16 %v1501
        %v1791 = vunpack.c.h.b16 %v1501
        %v1792 = vunpack.c.l.b16 %v1502
        %v1793 = vunpack.c.h.b16 %v1502
        %v1794 = vunpack.c.l.b16 %v1503
        %v1795 = vunpack.c.h.b16 %v1503
        %v1796 = vunpack.c.l.b16 %v1504
        %v1797 = vunpack.c.h.b16 %v1504
        %v1798 = vunpack.c.l.b16 %v1505
        %v1799 = vunpack.c.h.b16 %v1505
        %v1800 = vunpack.c.l.b16 %v1506
        %v1801 = vunpack.c.h.b16 %v1506
        %v1802 = vunpack.c.l.b16 %v1507
        %v1803 = vunpack.c.h.b16 %v1507
        %v1804 = vunpack.c.l.b16 %v1508
        %v1805 = vunpack.c.h.b16 %v1508
        %v1806 = vunpack.c.l.b16 %v1509
        %v1807 = vunpack.c.h.b16 %v1509
        %v1808 = vunpack.c.l.b16 %v1510
        %v1809 = vunpack.c.h.b16 %v1510
        %v1810 = vunpack.c.l.b16 %v1511
        %v1811 = vunpack.c.h.b16 %v1511
        %v1812 = vunpack.c.l.b16 %v1512
        %v1813 = vunpack.c.h.b16 %v1512
        %v1814 = vunpack.c.l.b16 %v1513
        %v1815 = vunpack.c.h.b16 %v1513
        %v1816 = vunpack.c.l.b16 %v1514
        %v1817 = vunpack.c.h.b16 %v1514
        %v1818 = vunpack.c.l.b16 %v1515
        %v1819 = vunpack.c.h.b16 %v1515
        %v1820 = vunpack.c.l.b16 %v1516
        %v1821 = vunpack.c.h.b16 %v1516
        %v1822 = vunpack.c.l.b16 %v1517
        %v1823 = vunpack.c.h.b16 %v1517
        %v1824 = vunpack.c.l.b16 %v1518
        %v1825 = vunpack.c.h.b16 %v1518
        %v1826 = vunpack.c.l.b16 %v1519
        %v1827 = vunpack.c.h.b16 %v1519
        %v1828 = vunpack.c.l.b16 %v1520
        %v1829 = vunpack.c.h.b16 %v1520
        %v1830 = vunpack.c.l.b16 %v1521
        %v1831 = vunpack.c.h.b16 %v1521
        %v1832 = vunpack.c.l.b16 %v1522
        %v1833 = vunpack.c.h.b16 %v1522
        %v1834 = vunpack.c.l.b16 %v1523
        %v1835 = vunpack.c.h.b16 %v1523
        %v1836 = vunpack.c.l.b16 %v1524
        %v1837 = vunpack.c.h.b16 %v1524
        %v1838 = vunpack.c.l.b16 %v1525
        %v1839 = vunpack.c.h.b16 %v1525
        %v1840 = vunpack.c.l.b16 %v1526
        %v1841 = vunpack.c.h.b16 %v1526
        %v1842 = vunpack.c.l.b16 %v1527
        %v1843 = vunpack.c.h.b16 %v1527
        %v1844 = vunpack.c.l.b16 %v1528
        %v1845 = vunpack.c.h.b16 %v1528
        %v1846 = vunpack.c.l.b16 %v1529
        %v1847 = vunpack.c.h.b16 %v1529
        %v1848 = vunpack.c.l.b16 %v1530
        %v1849 = vunpack.c.h.b16 %v1530
        %v1850 = vunpack.c.l.b16 %v1531
        %v1851 = vunpack.c.h.b16 %v1531
        %v1852 = vunpack.c.l.b16 %v1532
        %v1853 = vunpack.c.h.b16 %v1532
        %v1854 = vunpack.c.l.b16 %v1533
        %v1855 = vunpack.c.h.b16 %v1533
        %v1856 = vunpack.c.l.b16 %v1534
        %v1857 = vunpack.c.h.b16 %v1534
        %v1858 = vunpack.c.l.b16 %v1535
        %v1859 = vunpack.c.h.b16 %v1535
        %v1860 = vunpack.c.l.b16 %v1536
        %v1861 = vunpack.c.h.b16 %v1536
        %v1862 = vunpack.c.l.b16 %v1537
        %v1863 = vunpack.c.h.b16 %v1537
        %v1864 = vunpack.c.l.b16 %v1538
        %v1865 = vunpack.c.h.b16 %v1538
        %v1866 = vunpack.c.l.b16 %v1539
        %v1867 = vunpack.c.h.b16 %v1539
        %v1868 = vunpack.c.l.b16 %v1540
        %v1869 = vunpack.c.h.b16 %v1540
        %v1870 = vunpack.c.l.b16 %v1541
        %v1871 = vunpack.c.h.b16 %v1541
        %v1872 = vunpack.c.l.b16 %v1542
        %v1873 = vunpack.c.h.b16 %v1542
        %v1874 = vunpack.c.l.b16 %v1543
        %v1875 = vunpack.c.h.b16 %v1543
        %v1876 = vunpack.c.l.b16 %v1544
        %v1877 = vunpack.c.h.b16 %v1544
        %v1878 = vunpack.c.l.b16 %v1545
        %v1879 = vunpack.c.h.b16 %v1545
        %v1880 = vunpack.c.l.b16 %v1546
        %v1881 = vunpack.c.h.b16 %v1546
        %v1882 = vunpack.c.l.b16 %v1547
        %v1883 = vunpack.c.h.b16 %v1547
        %v1884 = vunpack.c.l.b16 %v1548
        %v1885 = vunpack.c.h.b16 %v1548
        %v1886 = vunpack.c.l.b16 %v1549
        %v1887 = vunpack.c.h.b16 %v1549
        %v1888 = vunpack.c.l.b16 %v1550
        %v1889 = vunpack.c.h.b16 %v1550
        %v1890 = vunpack.c.l.b16 %v1551
        %v1891 = vunpack.c.h.b16 %v1551
        %v1892 = vunpack.c.l.b16 %v1552
        %v1893 = vunpack.c.h.b16 %v1552
        %v1894 = vunpack.c.l.b16 %v1553
        %v1895 = vunpack.c.h.b16 %v1553
        %v1896 = vunpack.c.l.b16 %v1554
        %v1897 = vunpack.c.h.b16 %v1554
        %v1898 = vunpack.c.l.b16 %v1555
        %v1899 = vunpack.c.h.b16 %v1555
        %v1900 = vunpack.c.l.b16 %v1556
        %v1901 = vunpack.c.h.b16 %v1556
        %v1902 = vunpack.c.l.b16 %v1557
        %v1903 = vunpack.c.h.b16 %v1557
        %v1904 = vunpack.c.l.b16 %v1558
        %v1905 = vunpack.c.h.b16 %v1558
        %v1906 = vunpack.c.l.b16 %v1559
        %v1907 = vunpack.c.h.b16 %v1559
        %v1908 = vunpack.c.l.b16 %v1560
        %v1909 = vunpack.c.h.b16 %v1560
        %v1910 = vunpack.c.l.b16 %v1561
        %v1911 = vunpack.c.h.b16 %v1561
        %v1912 = vunpack.c.l.b16 %v1562
        %v1913 = vunpack.c.h.b16 %v1562
        %v1914 = vunpack.c.l.b16 %v1563
        %v1915 = vunpack.c.h.b16 %v1563
        %v1916 = vunpack.c.l.b16 %v1564
        %v1917 = vunpack.c.h.b16 %v1564
        %v1918 = vunpack.c.l.b16 %v1565
        %v1919 = vunpack.c.h.b16 %v1565
        %v1920 = vunpack.c.l.b16 %v1566
        %v1921 = vunpack.c.h.b16 %v1566
        %v1922 = vunpack.c.l.b16 %v1567
        %v1923 = vunpack.c.h.b16 %v1567
        %v1924 = vunpack.c.l.b16 %v1568
        %v1925 = vunpack.c.h.b16 %v1568
        %v1926 = vunpack.c.l.b16 %v1569
        %v1927 = vunpack.c.h.b16 %v1569
        %v1928 = vunpack.c.l.b16 %v1570
        %v1929 = vunpack.c.h.b16 %v1570
        %v1930 = vunpack.c.l.b16 %v1571
        %v1931 = vunpack.c.h.b16 %v1571
        %v1932 = vunpack.c.l.b16 %v1572
        %v1933 = vunpack.c.h.b16 %v1572
        %v1934 = vunpack.c.l.b16 %v1573
        %v1935 = vunpack.c.h.b16 %v1573
        %v1936 = vunpack.c.l.b16 %v1574
        %v1937 = vunpack.c.h.b16 %v1574
        %v1938 = vunpack.c.l.b16 %v1575
        %v1939 = vunpack.c.h.b16 %v1575
        %v1940 = vunpack.c.l.b16 %v1576
        %v1941 = vunpack.c.h.b16 %v1576
        %v1942 = vunpack.c.l.b16 %v1577
        %v1943 = vunpack.c.h.b16 %v1577
        %v1944 = vunpack.c.l.b16 %v1578
        %v1945 = vunpack.c.h.b16 %v1578
        %v1946 = vunpack.c.l.b16 %v1579
        %v1947 = vunpack.c.h.b16 %v1579
        %v1948 = vunpack.c.l.b16 %v1580
        %v1949 = vunpack.c.h.b16 %v1580
        %v1950 = vunpack.c.l.b16 %v1581
        %v1951 = vunpack.c.h.b16 %v1581
        %v1952 = vunpack.c.l.b16 %v1582
        %v1953 = vunpack.c.h.b16 %v1582
        %v1954 = vunpack.c.l.b16 %v1583
        %v1955 = vunpack.c.h.b16 %v1583
        %v1956 = vunpack.c.l.b16 %v1584
        %v1957 = vunpack.c.h.b16 %v1584
        %v1958 = vunpack.c.l.b16 %v1585
        %v1959 = vunpack.c.h.b16 %v1585
        %v1960 = vunpack.c.l.b16 %v1586
        %v1961 = vunpack.c.h.b16 %v1586
        %v1962 = vunpack.c.l.b16 %v1587
        %v1963 = vunpack.c.h.b16 %v1587
        %v1964 = vunpack.c.l.b16 %v1588
        %v1965 = vunpack.c.h.b16 %v1588
        %v1966 = vunpack.c.l.b16 %v1589
        %v1967 = vunpack.c.h.b16 %v1589
        %v1968 = vunpack.c.l.b16 %v1590
        %v1969 = vunpack.c.h.b16 %v1590
        %v1970 = vunpack.c.l.b16 %v1591
        %v1971 = vunpack.c.h.b16 %v1591
        %v1972 = vunpack.c.l.b16 %v1592
        %v1973 = vunpack.c.h.b16 %v1592
        %v1974 = vunpack.c.l.b16 %v1593
        %v1975 = vunpack.c.h.b16 %v1593
        %v1976 = vunpack.c.l.b16 %v1594
        %v1977 = vunpack.c.h.b16 %v1594
        %v1978 = vunpack.c.l.b16 %v1595
        %v1979 = vunpack.c.h.b16 %v1595
        %v1980 = vunpack.c.l.b16 %v1596
        %v1981 = vunpack.c.h.b16 %v1596
        %v1982 = vunpack.c.l.b16 %v1597
        %v1983 = vunpack.c.h.b16 %v1597
        %v1984 = vunpack.c.l.b16 %v1598
        %v1985 = vunpack.c.h.b16 %v1598
        %v1986 = vunpack.c.l.b16 %v1599
        %v1987 = vunpack.c.h.b16 %v1599
        %v1988 = vunpack.c.l.b16 %v1600
        %v1989 = vunpack.c.h.b16 %v1600
        %v1990 = vunpack.c.l.b16 %v1601
        %v1991 = vunpack.c.h.b16 %v1601
        %v1992 = vunpack.c.l.b16 %v1602
        %v1993 = vunpack.c.h.b16 %v1602
        %v1994 = vunpack.c.l.b16 %v1603
        %v1995 = vunpack.c.h.b16 %v1603
        %v1996 = vunpack.c.l.b16 %v1604
        %v1997 = vunpack.c.h.b16 %v1604
        %v1998 = vunpack.c.l.b16 %v1605
        %v1999 = vunpack.c.h.b16 %v1605
        %v2000 = vunpack.c.l.b16 %v1606
        %v2001 = vunpack.c.h.b16 %v1606
        %v2002 = vunpack.c.l.b16 %v1607
        %v2003 = vunpack.c.h.b16 %v1607
        %v2004 = vunpack.c.l.b16 %v1608
        %v2005 = vunpack.c.h.b16 %v1608
        %v2006 = vunpack.c.l.b16 %v1609
        %v2007 = vunpack.c.h.b16 %v1609
        %v2008 = vunpack.c.l.b16 %v1610
        %v2009 = vunpack.c.h.b16 %v1610
        %v2010 = vunpack.c.l.b16 %v1611
        %v2011 = vunpack.c.h.b16 %v1611
        %v2012 = vunpack.c.l.b16 %v1612
        %v2013 = vunpack.c.h.b16 %v1612
        %v2014 = vunpack.c.l.b16 %v1613
        %v2015 = vunpack.c.h.b16 %v1613
        %v2016 = vunpack.c.l.b16 %v1614
        %v2017 = vunpack.c.h.b16 %v1614
        %v2018 = vunpack.c.l.b16 %v1615
        %v2019 = vunpack.c.h.b16 %v1615
        %v2020 = vunpack.c.l.b16 %v1616
        %v2021 = vunpack.c.h.b16 %v1616
        %v2022 = vunpack.c.l.b16 %v1617
        %v2023 = vunpack.c.h.b16 %v1617
        %v2024 = vpack.c.b16 %v1772, %v1768
        %v2025 = vpack.c.b16 %v1773, %v1769
        %v2026 = vpack.c.b16 %v1774, %v1770
        %v2027 = vpack.c.b16 %v1775, %v1771
        %v2028 = vpack.c.b16 %v1780, %v1776
        %v2029 = vpack.c.b16 %v1781, %v1777
        %v2030 = vpack.c.b16 %v1782, %v1778
        %v2031 = vpack.c.b16 %v1783, %v1779
        %v2032 = vpack.c.b16 %v1788, %v1784
        %v2033 = vpack.c.b16 %v1789, %v1785
        %v2034 = vpack.c.b16 %v1790, %v1786
        %v2035 = vpack.c.b16 %v1791, %v1787
        %v2036 = vpack.c.b16 %v1796, %v1792
        %v2037 = vpack.c.b16 %v1797, %v1793
        %v2038 = vpack.c.b16 %v1798, %v1794
        %v2039 = vpack.c.b16 %v1799, %v1795
        %v2040 = vpack.c.b16 %v1804, %v1800
        %v2041 = vpack.c.b16 %v1805, %v1801
        %v2042 = vpack.c.b16 %v1806, %v1802
        %v2043 = vpack.c.b16 %v1807, %v1803
        %v2044 = vpack.c.b16 %v1812, %v1808
        %v2045 = vpack.c.b16 %v1813, %v1809
        %v2046 = vpack.c.b16 %v1814, %v1810
        %v2047 = vpack.c.b16 %v1815, %v1811
        %v2048 = vpack.c.b16 %v1820, %v1816
        %v2049 = vpack.c.b16 %v1821, %v1817
        %v2050 = vpack.c.b16 %v1822, %v1818
        %v2051 = vpack.c.b16 %v1823, %v1819
        %v2052 = vpack.c.b16 %v1828, %v1824
        %v2053 = vpack.c.b16 %v1829, %v1825
        %v2054 = vpack.c.b16 %v1830, %v1826
        %v2055 = vpack.c.b16 %v1831, %v1827
        %v2056 = vpack.c.b16 %v1836, %v1832
        %v2057 = vpack.c.b16 %v1837, %v1833
        %v2058 = vpack.c.b16 %v1838, %v1834
        %v2059 = vpack.c.b16 %v1839, %v1835
        %v2060 = vpack.c.b16 %v1844, %v1840
        %v2061 = vpack.c.b16 %v1845, %v1841
        %v2062 = vpack.c.b16 %v1846, %v1842
        %v2063 = vpack.c.b16 %v1847, %v1843
        %v2064 = vpack.c.b16 %v1852, %v1848
        %v2065 = vpack.c.b16 %v1853, %v1849
        %v2066 = vpack.c.b16 %v1854, %v1850
        %v2067 = vpack.c.b16 %v1855, %v1851
        %v2068 = vpack.c.b16 %v1860, %v1856
        %v2069 = vpack.c.b16 %v1861, %v1857
        %v2070 = vpack.c.b16 %v1862, %v1858
        %v2071 = vpack.c.b16 %v1863, %v1859
        %v2072 = vpack.c.b16 %v1868, %v1864
        %v2073 = vpack.c.b16 %v1869, %v1865
        %v2074 = vpack.c.b16 %v1870, %v1866
        %v2075 = vpack.c.b16 %v1871, %v1867
        %v2076 = vpack.c.b16 %v1876, %v1872
        %v2077 = vpack.c.b16 %v1877, %v1873
        %v2078 = vpack.c.b16 %v1878, %v1874
        %v2079 = vpack.c.b16 %v1879, %v1875
        %v2080 = vpack.c.b16 %v1884, %v1880
        %v2081 = vpack.c.b16 %v1885, %v1881
        %v2082 = vpack.c.b16 %v1886, %v1882
        %v2083 = vpack.c.b16 %v1887, %v1883
        %v2084 = vpack.c.b16 %v1892, %v1888
        %v2085 = vpack.c.b16 %v1893, %v1889
        %v2086 = vpack.c.b16 %v1894, %v1890
        %v2087 = vpack.c.b16 %v1895, %v1891
        %v2088 = vpack.c.b16 %v1900, %v1896
        %v2089 = vpack.c.b16 %v1901, %v1897
        %v2090 = vpack.c.b16 %v1902, %v1898
        %v2091 = vpack.c.b16 %v1903, %v1899
        %v2092 = vpack.c.b16 %v1908, %v1904
        %v2093 = vpack.c.b16 %v1909, %v1905
        %v2094 = vpack.c.b16 %v1910, %v1906
        %v2095 = vpack.c.b16 %v1911, %v1907
        %v2096 = vpack.c.b16 %v1916, %v1912
        %v2097 = vpack.c.b16 %v1917, %v1913
        %v2098 = vpack.c.b16 %v1918, %v1914
        %v2099 = vpack.c.b16 %v1919, %v1915
        %v2100 = vpack.c.b16 %v1924, %v1920
        %v2101 = vpack.c.b16 %v1925, %v1921
        %v2102 = vpack.c.b16 %v1926, %v1922
        %v2103 = vpack.c.b16 %v1927, %v1923
        %v2104 = vpack.c.b16 %v1932, %v1928
        %v2105 = vpack.c.b16 %v1933, %v1929
        %v2106 = vpack.c.b16 %v1934, %v1930
        %v2107 = vpack.c.b16 %v1935, %v1931
        %v2108 = vpack.c.b16 %v1940, %v1936
        %v2109 = vpack.c.b16 %v1941, %v1937
        %v2110 = vpack.c.b16 %v1942, %v1938
        %v2111 = vpack.c.b16 %v1943, %v1939
        %v2112 = vpack.c.b16 %v1948, %v1944
        %v2113 = vpack.c.b16 %v1949, %v1945
        %v2114 = vpack.c.b16 %v1950, %v1946
        %v2115 = vpack.c.b16 %v1951, %v1947
        %v2116 = vpack.c.b16 %v1956, %v1952
        %v2117 = vpack.c.b16 %v1957, %v1953
        %v2118 = vpack.c.b16 %v1958, %v1954
        %v2119 = vpack.c.b16 %v1959, %v1955
        %v2120 = vpack.c.b16 %v1964, %v1960
        %v2121 = vpack.c.b16 %v1965, %v1961
        %v2122 = vpack.c.b16 %v1966, %v1962
        %v2123 = vpack.c.b16 %v1967, %v1963
        %v2124 = vpack.c.b16 %v1972, %v1968
        %v2125 = vpack.c.b16 %v1973, %v1969
        %v2126 = vpack.c.b16 %v1974, %v1970
        %v2127 = vpack.c.b16 %v1975, %v1971
        %v2128 = vpack.c.b16 %v1980, %v1976
        %v2129 = vpack.c.b16 %v1981, %v1977
        %v2130 = vpack.c.b16 %v1982, %v1978
        %v2131 = vpack.c.b16 %v1983, %v1979
        %v2132 = vpack.c.b16 %v1988, %v1984
        %v2133 = vpack.c.b16 %v1989, %v1985
        %v2134 = vpack.c.b16 %v1990, %v1986
        %v2135 = vpack.c.b16 %v1991, %v1987
        %v2136 = vpack.c.b16 %v1996, %v1992
        %v2137 = vpack.c.b16 %v1997, %v1993
        %v2138 = vpack.c.b16 %v1998, %v1994
        %v2139 = vpack.c.b16 %v1999, %v1995
        %v2140 = vpack.c.b16 %v2004, %v2000
        %v2141 = vpack.c.b16 %v2005, %v2001
        %v2142 = vpack.c.b16 %v2006, %v2002
        %v2143 = vpack.c.b16 %v2007, %v2003
        %v2144 = vpack.c.b16 %v2012, %v2008
        %v2145 = vpack.c.b16 %v2013, %v2009
        %v2146 = vpack.c.b16 %v2014, %v2010
        %v2147 = vpack.c.b16 %v2015, %v2011
        %v2148 = vpack.c.b16 %v2020, %v2016
        %v2149 = vpack.c.b16 %v2021, %v2017
        %v2150 = vpack.c.b16 %v2022, %v2018
        %v2151 = vpack.c.b16 %v2023, %v2019
        %2280 = vmatprep.subr.bf16.mxu0 %v2025
        %2281 = vmatpush1.bf16.msra.mxu0 %v2024
        %2282 = vmatprep.subr.bf16.mxu0 %v2029
        %2283 = vmatpush1.bf16.msra.mxu0 %v2028
        %2284 = vmatprep.subr.bf16.mxu0 %v2033
        %2285 = vmatpush1.bf16.msra.mxu0 %v2032
        %2286 = vmatprep.subr.bf16.mxu0 %v2037
        %2287 = vmatpush1.bf16.msra.mxu0 %v2036
        %2288 = vmatprep.subr.bf16.mxu0 %v2041
        %2289 = vmatpush1.bf16.msra.mxu0 %v2040
        %2290 = vmatprep.subr.bf16.mxu0 %v2045
        %2291 = vmatpush1.bf16.msra.mxu0 %v2044
        %2292 = vmatprep.subr.bf16.mxu0 %v2049
        %2293 = vmatpush1.bf16.msra.mxu0 %v2048
        %2294 = vmatprep.subr.bf16.mxu0 %v2053
        %2295 = vmatpush1.bf16.msra.mxu0 %v2052
        %2296 = vmatprep.subr.bf16.mxu0 %v2057
        %2297 = vmatpush1.bf16.msra.mxu0 %v2056
        %2298 = vmatprep.subr.bf16.mxu0 %v2061
        %2299 = vmatpush1.bf16.msra.mxu0 %v2060
        %2300 = vmatprep.subr.bf16.mxu0 %v2065
        %2301 = vmatpush1.bf16.msra.mxu0 %v2064
        %2302 = vmatprep.subr.bf16.mxu0 %v2069
        %2303 = vmatpush1.bf16.msra.mxu0 %v2068
        %2304 = vmatprep.subr.bf16.mxu0 %v2073
        %2305 = vmatpush1.bf16.msra.mxu0 %v2072
        %2306 = vmatprep.subr.bf16.mxu0 %v2077
        %2307 = vmatpush1.bf16.msra.mxu0 %v2076
        %2308 = vmatprep.subr.bf16.mxu0 %v2081
        %2309 = vmatpush1.bf16.msra.mxu0 %v2080
        %2310 = vmatprep.subr.bf16.mxu0 %v2085
        %2311 = vmatpush1.bf16.msra.mxu0 %v2084
        %2312 = vmatprep.mubr.bf16.mxu0 %v1459
        %2313 = vmatmul.mubr.bf16.gmra.mrb[0].mxu0 %v1458
        %v2314 = vpop.f32.mrb[0].mxu0
        %v2315 = vadd.f32 %v1623, %v2314
        %v2316 = vpop.f32.mrb[0].mxu0
        %v2317 = vadd.f32 %v1627, %v2316
        %v2318 = vpop.f32.mrb[0].mxu0
        %v2319 = vadd.f32 %v1623, %v2318
        %v2320 = vpop.f32.mrb[0].mxu0
        %v2321 = vadd.f32 %v1627, %v2320
        %2322 = vmatprep.mubr.bf16.mxu0 %v1463
        %2323 = vmatmul.mubr.bf16.gmra.mrb[0].mxu0 %v1462
        %v2324 = vpop.f32.mrb[0].mxu0
        %v2325 = vadd.f32 %v1623, %v2324
        %v2326 = vpop.f32.mrb[0].mxu0
        %v2327 = vadd.f32 %v1627, %v2326
        %v2328 = vpop.f32.mrb[0].mxu0
        %v2329 = vadd.f32 %v1623, %v2328
        %v2330 = vpop.f32.mrb[0].mxu0
        %v2331 = vadd.f32 %v1627, %v2330
        %2332 = vmatprep.mubr.bf16.mxu0 %v1467
        %2333 = vmatmul.mubr.bf16.gmra.mrb[0].mxu0 %v1466
        %v2334 = vpop.f32.mrb[0].mxu0
        %v2335 = vadd.f32 %v1623, %v2334
        %v2336 = vpop.f32.mrb[0].mxu0
        %v2337 = vadd.f32 %v1627, %v2336
        %v2338 = vpop.f32.mrb[0].mxu0
        %v2339 = vadd.f32 %v1623, %v2338
        %v2340 = vpop.f32.mrb[0].mxu0
        %v2341 = vadd.f32 %v1627, %v2340
        %2342 = vmatprep.mubr.bf16.mxu0 %v1471
        %2343 = vmatmul.mubr.bf16.gmra.mrb[0].mxu0 %v1470
        %v2344 = vpop.f32.mrb[0].mxu0
        %v2345 = vadd.f32 %v1623, %v2344
        %v2346 = vpop.f32.mrb[0].mxu0
        %v2347 = vadd.f32 %v1627, %v2346
        %v2348 = vpop.f32.mrb[0].mxu0
        %v2349 = vadd.f32 %v1623, %v2348
        %v2350 = vpop.f32.mrb[0].mxu0
        %v2351 = vadd.f32 %v1627, %v2350
        %2352 = vmatprep.mubr.bf16.mxu0 %v1475
        %2353 = vmatmul.mubr.bf16.gmra.mrb[0].mxu0 %v1474
        %v2354 = vpop.f32.mrb[0].mxu0
        %v2355 = vadd.f32 %v1623, %v2354
        %v2356 = vpop.f32.mrb[0].mxu0
        %v2357 = vadd.f32 %v1627, %v2356
        %v2358 = vpop.f32.mrb[0].mxu0
        %v2359 = vadd.f32 %v1623, %v2358
        %v2360 = vpop.f32.mrb[0].mxu0
        %v2361 = vadd.f32 %v1627, %v2360
        %2362 = vmatprep.mubr.bf16.mxu0 %v1479
        %2363 = vmatmul.mubr.bf16.gmra.mrb[0].mxu0 %v1478
        %v2364 = vpop.f32.mrb[0].mxu0
        %v2365 = vadd.f32 %v1623, %v2364
        %v2366 = vpop.f32.mrb[0].mxu0
        %v2367 = vadd.f32 %v1627, %v2366
        %v2368 = vpop.f32.mrb[0].mxu0
        %v2369 = vadd.f32 %v1623, %v2368
        %v2370 = vpop.f32.mrb[0].mxu0
        %v2371 = vadd.f32 %v1627, %v2370
        %2372 = vmatprep.mubr.bf16.mxu0 %v1483
        %2373 = vmatmul.mubr.bf16.gmra.mrb[0].mxu0 %v1482
        %v2374 = vpop.f32.mrb[0].mxu0
        %v2375 = vadd.f32 %v1623, %v2374
        %v2376 = vpop.f32.mrb[0].mxu0
        %v2377 = vadd.f32 %v1627, %v2376
        %v2378 = vpop.f32.mrb[0].mxu0
        %v2379 = vadd.f32 %v1623, %v2378
        %v2380 = vpop.f32.mrb[0].mxu0
        %v2381 = vadd.f32 %v1627, %v2380
        %2382 = vmatprep.mubr.bf16.mxu0 %v1487
        %2383 = vmatmul.mubr.bf16.gmra.mrb[0].mxu0 %v1486
        %v2384 = vpop.f32.mrb[0].mxu0
        %v2385 = vadd.f32 %v1623, %v2384
        %v2386 = vpop.f32.mrb[0].mxu0
        %v2387 = vadd.f32 %v1627, %v2386
        %v2388 = vpop.f32.mrb[0].mxu0
        %v2389 = vadd.f32 %v1623, %v2388
        %v2390 = vpop.f32.mrb[0].mxu0
        %v2391 = vadd.f32 %v1627, %v2390
        %2392 = vdwg.mxu0
        %2393 = vmatprep.subr.bf16.mxu0 %v2089
        %2394 = vmatpush1.bf16.msra.mxu0 %v2088
        %2395 = vmatprep.subr.bf16.mxu0 %v2093
        %2396 = vmatpush1.bf16.msra.mxu0 %v2092
        %2397 = vmatprep.subr.bf16.mxu0 %v2097
        %2398 = vmatpush1.bf16.msra.mxu0 %v2096
        %2399 = vmatprep.subr.bf16.mxu0 %v2101
        %2400 = vmatpush1.bf16.msra.mxu0 %v2100
        %2401 = vmatprep.subr.bf16.mxu0 %v2105
        %2402 = vmatpush1.bf16.msra.mxu0 %v2104
        %2403 = vmatprep.subr.bf16.mxu0 %v2109
        %2404 = vmatpush1.bf16.msra.mxu0 %v2108
        %2405 = vmatprep.subr.bf16.mxu0 %v2113
        %2406 = vmatpush1.bf16.msra.mxu0 %v2112
        %2407 = vmatprep.subr.bf16.mxu0 %v2117
        %2408 = vmatpush1.bf16.msra.mxu0 %v2116
        %2409 = vmatprep.subr.bf16.mxu0 %v2121
        %2410 = vmatpush1.bf16.msra.mxu0 %v2120
        %2411 = vmatprep.subr.bf16.mxu0 %v2125
        %2412 = vmatpush1.bf16.msra.mxu0 %v2124
        %2413 = vmatprep.subr.bf16.mxu0 %v2129
        %2414 = vmatpush1.bf16.msra.mxu0 %v2128
        %2415 = vmatprep.subr.bf16.mxu0 %v2133
        %2416 = vmatpush1.bf16.msra.mxu0 %v2132
        %2417 = vmatprep.subr.bf16.mxu0 %v2137
        %2418 = vmatpush1.bf16.msra.mxu0 %v2136
        %2419 = vmatprep.subr.bf16.mxu0 %v2141
        %2420 = vmatpush1.bf16.msra.mxu0 %v2140
        %2421 = vmatprep.subr.bf16.mxu0 %v2145
        %2422 = vmatpush1.bf16.msra.mxu0 %v2144
        %2423 = vmatprep.subr.bf16.mxu0 %v2149
        %2424 = vmatpush1.bf16.msra.mxu0 %v2148
        %2425 = vmatprep.mubr.bf16.mxu0 %v1461
        %2426 = vmatmul.mubr.bf16.gmra.mrb[0].mxu0 %v1460
        %v2427 = vpop.f32.mrb[0].mxu0
        %v2428 = vadd.f32 %v2315, %v2427
        %v2429 = vpop.f32.mrb[0].mxu0
        %v2430 = vadd.f32 %v2317, %v2429
        %v2431 = vpop.f32.mrb[0].mxu0
        %v2432 = vadd.f32 %v2319, %v2431
        %v2433 = vpop.f32.mrb[0].mxu0
        %v2434 = vadd.f32 %v2321, %v2433
        %2435 = vmatprep.mubr.bf16.mxu0 %v1465
        %2436 = vmatmul.mubr.bf16.gmra.mrb[0].mxu0 %v1464
        %v2437 = vpop.f32.mrb[0].mxu0
        %v2438 = vadd.f32 %v2325, %v2437
        %v2439 = vpop.f32.mrb[0].mxu0
        %v2440 = vadd.f32 %v2327, %v2439
        %v2441 = vpop.f32.mrb[0].mxu0
        %v2442 = vadd.f32 %v2329, %v2441
        %v2443 = vpop.f32.mrb[0].mxu0
        %v2444 = vadd.f32 %v2331, %v2443
        %2445 = vmatprep.mubr.bf16.mxu0 %v1469
        %2446 = vmatmul.mubr.bf16.gmra.mrb[0].mxu0 %v1468
        %v2447 = vpop.f32.mrb[0].mxu0
        %v2448 = vadd.f32 %v2335, %v2447
        %v2449 = vpop.f32.mrb[0].mxu0
        %v2450 = vadd.f32 %v2337, %v2449
        %v2451 = vpop.f32.mrb[0].mxu0
        %v2452 = vadd.f32 %v2339, %v2451
        %v2453 = vpop.f32.mrb[0].mxu0
        %v2454 = vadd.f32 %v2341, %v2453
        %2455 = vmatprep.mubr.bf16.mxu0 %v1473
        %2456 = vmatmul.mubr.bf16.gmra.mrb[0].mxu0 %v1472
        %v2457 = vpop.f32.mrb[0].mxu0
        %v2458 = vadd.f32 %v2345, %v2457
        %v2459 = vpop.f32.mrb[0].mxu0
        %v2460 = vadd.f32 %v2347, %v2459
        %v2461 = vpop.f32.mrb[0].mxu0
        %v2462 = vadd.f32 %v2349, %v2461
        %v2463 = vpop.f32.mrb[0].mxu0
        %v2464 = vadd.f32 %v2351, %v2463
        %2465 = vmatprep.mubr.bf16.mxu0 %v1477
        %2466 = vmatmul.mubr.bf16.gmra.mrb[0].mxu0 %v1476
        %v2467 = vpop.f32.mrb[0].mxu0
        %v2468 = vadd.f32 %v2355, %v2467
        %v2469 = vpop.f32.mrb[0].mxu0
        %v2470 = vadd.f32 %v2357, %v2469
        %v2471 = vpop.f32.mrb[0].mxu0
        %v2472 = vadd.f32 %v2359, %v2471
        %v2473 = vpop.f32.mrb[0].mxu0
        %v2474 = vadd.f32 %v2361, %v2473
        %2475 = vmatprep.mubr.bf16.mxu0 %v1481
        %2476 = vmatmul.mubr.bf16.gmra.mrb[0].mxu0 %v1480
        %v2477 = vpop.f32.mrb[0].mxu0
        %v2478 = vadd.f32 %v2365, %v2477
        %v2479 = vpop.f32.mrb[0].mxu0
        %v2480 = vadd.f32 %v2367, %v2479
        %v2481 = vpop.f32.mrb[0].mxu0
        %v2482 = vadd.f32 %v2369, %v2481
        %v2483 = vpop.f32.mrb[0].mxu0
        %v2484 = vadd.f32 %v2371, %v2483
        %2485 = vmatprep.mubr.bf16.mxu0 %v1485
        %2486 = vmatmul.mubr.bf16.gmra.mrb[0].mxu0 %v1484
        %v2487 = vpop.f32.mrb[0].mxu0
        %v2488 = vadd.f32 %v2375, %v2487
        %v2489 = vpop.f32.mrb[0].mxu0
        %v2490 = vadd.f32 %v2377, %v2489
        %v2491 = vpop.f32.mrb[0].mxu0
        %v2492 = vadd.f32 %v2379, %v2491
        %v2493 = vpop.f32.mrb[0].mxu0
        %v2494 = vadd.f32 %v2381, %v2493
        %2495 = vmatprep.mubr.bf16.mxu0 %v1489
        %2496 = vmatmul.mubr.bf16.gmra.mrb[0].mxu0 %v1488
        %v2497 = vpop.f32.mrb[0].mxu0
        %v2498 = vadd.f32 %v2385, %v2497
        %v2499 = vpop.f32.mrb[0].mxu0
        %v2500 = vadd.f32 %v2387, %v2499
        %v2501 = vpop.f32.mrb[0].mxu0
        %v2502 = vadd.f32 %v2389, %v2501
        %v2503 = vpop.f32.mrb[0].mxu0
        %v2504 = vadd.f32 %v2391, %v2503
        %2505 = vdwg.mxu0
        %2506 = vmatprep.subr.bf16.mxu0 %v2027
        %2507 = vmatpush1.bf16.msra.mxu0 %v2026
        %2508 = vmatprep.subr.bf16.mxu0 %v2031
        %2509 = vmatpush1.bf16.msra.mxu0 %v2030
        %2510 = vmatprep.subr.bf16.mxu0 %v2035
        %2511 = vmatpush1.bf16.msra.mxu0 %v2034
        %2512 = vmatprep.subr.bf16.mxu0 %v2039
        %2513 = vmatpush1.bf16.msra.mxu0 %v2038
        %2514 = vmatprep.subr.bf16.mxu0 %v2043
        %2515 = vmatpush1.bf16.msra.mxu0 %v2042
        %2516 = vmatprep.subr.bf16.mxu0 %v2047
        %2517 = vmatpush1.bf16.msra.mxu0 %v2046
        %2518 = vmatprep.subr.bf16.mxu0 %v2051
        %2519 = vmatpush1.bf16.msra.mxu0 %v2050
        %2520 = vmatprep.subr.bf16.mxu0 %v2055
        %2521 = vmatpush1.bf16.msra.mxu0 %v2054
        %2522 = vmatprep.subr.bf16.mxu0 %v2059
        %2523 = vmatpush1.bf16.msra.mxu0 %v2058
        %2524 = vmatprep.subr.bf16.mxu0 %v2063
        %2525 = vmatpush1.bf16.msra.mxu0 %v2062
        %2526 = vmatprep.subr.bf16.mxu0 %v2067
        %2527 = vmatpush1.bf16.msra.mxu0 %v2066
        %2528 = vmatprep.subr.bf16.mxu0 %v2071
        %2529 = vmatpush1.bf16.msra.mxu0 %v2070
        %2530 = vmatprep.subr.bf16.mxu0 %v2075
        %2531 = vmatpush1.bf16.msra.mxu0 %v2074
        %2532 = vmatprep.subr.bf16.mxu0 %v2079
        %2533 = vmatpush1.bf16.msra.mxu0 %v2078
        %2534 = vmatprep.subr.bf16.mxu0 %v2083
        %2535 = vmatpush1.bf16.msra.mxu0 %v2082
        %2536 = vmatprep.subr.bf16.mxu0 %v2087
        %2537 = vmatpush1.bf16.msra.mxu0 %v2086
        %2538 = vmatprep.mubr.bf16.mxu0 %v1459
        %2539 = vmatmul.mubr.bf16.gmra.mrb[0].mxu0 %v1458
        %v2540 = vpop.f32.mrb[0].mxu0
        %v2541 = vadd.f32 %v1631, %v2540
        %v2542 = vpop.f32.mrb[0].mxu0
        %v2543 = vadd.f32 %v1635, %v2542
        %v2544 = vpop.f32.mrb[0].mxu0
        %v2545 = vadd.f32 %v1631, %v2544
        %v2546 = vpop.f32.mrb[0].mxu0
        %v2547 = vadd.f32 %v1635, %v2546
        %2548 = vmatprep.mubr.bf16.mxu0 %v1463
        %2549 = vmatmul.mubr.bf16.gmra.mrb[0].mxu0 %v1462
        %v2550 = vpop.f32.mrb[0].mxu0
        %v2551 = vadd.f32 %v1631, %v2550
        %v2552 = vpop.f32.mrb[0].mxu0
        %v2553 = vadd.f32 %v1635, %v2552
        %v2554 = vpop.f32.mrb[0].mxu0
        %v2555 = vadd.f32 %v1631, %v2554
        %v2556 = vpop.f32.mrb[0].mxu0
        %v2557 = vadd.f32 %v1635, %v2556
        %2558 = vmatprep.mubr.bf16.mxu0 %v1467
        %2559 = vmatmul.mubr.bf16.gmra.mrb[0].mxu0 %v1466
        %v2560 = vpop.f32.mrb[0].mxu0
        %v2561 = vadd.f32 %v1631, %v2560
        %v2562 = vpop.f32.mrb[0].mxu0
        %v2563 = vadd.f32 %v1635, %v2562
        %v2564 = vpop.f32.mrb[0].mxu0
        %v2565 = vadd.f32 %v1631, %v2564
        %v2566 = vpop.f32.mrb[0].mxu0
        %v2567 = vadd.f32 %v1635, %v2566
        %2568 = vmatprep.mubr.bf16.mxu0 %v1471
        %2569 = vmatmul.mubr.bf16.gmra.mrb[0].mxu0 %v1470
        %v2570 = vpop.f32.mrb[0].mxu0
        %v2571 = vadd.f32 %v1631, %v2570
        %v2572 = vpop.f32.mrb[0].mxu0
        %v2573 = vadd.f32 %v1635, %v2572
        %v2574 = vpop.f32.mrb[0].mxu0
        %v2575 = vadd.f32 %v1631, %v2574
        %v2576 = vpop.f32.mrb[0].mxu0
        %v2577 = vadd.f32 %v1635, %v2576
        %2578 = vmatprep.mubr.bf16.mxu0 %v1475
        %2579 = vmatmul.mubr.bf16.gmra.mrb[0].mxu0 %v1474
        %v2580 = vpop.f32.mrb[0].mxu0
        %v2581 = vadd.f32 %v1631, %v2580
        %v2582 = vpop.f32.mrb[0].mxu0
        %v2583 = vadd.f32 %v1635, %v2582
        %v2584 = vpop.f32.mrb[0].mxu0
        %v2585 = vadd.f32 %v1631, %v2584
        %v2586 = vpop.f32.mrb[0].mxu0
        %v2587 = vadd.f32 %v1635, %v2586
        %2588 = vmatprep.mubr.bf16.mxu0 %v1479
        %2589 = vmatmul.mubr.bf16.gmra.mrb[0].mxu0 %v1478
        %v2590 = vpop.f32.mrb[0].mxu0
        %v2591 = vadd.f32 %v1631, %v2590
        %v2592 = vpop.f32.mrb[0].mxu0
        %v2593 = vadd.f32 %v1635, %v2592
        %v2594 = vpop.f32.mrb[0].mxu0
        %v2595 = vadd.f32 %v1631, %v2594
        %v2596 = vpop.f32.mrb[0].mxu0
        %v2597 = vadd.f32 %v1635, %v2596
        %2598 = vmatprep.mubr.bf16.mxu0 %v1483
        %2599 = vmatmul.mubr.bf16.gmra.mrb[0].mxu0 %v1482
        %v2600 = vpop.f32.mrb[0].mxu0
        %v2601 = vadd.f32 %v1631, %v2600
        %v2602 = vpop.f32.mrb[0].mxu0
        %v2603 = vadd.f32 %v1635, %v2602
        %v2604 = vpop.f32.mrb[0].mxu0
        %v2605 = vadd.f32 %v1631, %v2604
        %v2606 = vpop.f32.mrb[0].mxu0
        %v2607 = vadd.f32 %v1635, %v2606
        %2608 = vmatprep.mubr.bf16.mxu0 %v1487
        %2609 = vmatmul.mubr.bf16.gmra.mrb[0].mxu0 %v1486
        %v2610 = vpop.f32.mrb[0].mxu0
        %v2611 = vadd.f32 %v1631, %v2610
        %v2612 = vpop.f32.mrb[0].mxu0
        %v2613 = vadd.f32 %v1635, %v2612
        %v2614 = vpop.f32.mrb[0].mxu0
        %v2615 = vadd.f32 %v1631, %v2614
        %v2616 = vpop.f32.mrb[0].mxu0
        %v2617 = vadd.f32 %v1635, %v2616
        %2618 = vdwg.mxu0
        %2619 = vmatprep.subr.bf16.mxu0 %v2091
        %2620 = vmatpush1.bf16.msra.mxu0 %v2090
        %2621 = vmatprep.subr.bf16.mxu0 %v2095
        %2622 = vmatpush1.bf16.msra.mxu0 %v2094
        %2623 = vmatprep.subr.bf16.mxu0 %v2099
        %2624 = vmatpush1.bf16.msra.mxu0 %v2098
        %2625 = vmatprep.subr.bf16.mxu0 %v2103
        %2626 = vmatpush1.bf16.msra.mxu0 %v2102
        %2627 = vmatprep.subr.bf16.mxu0 %v2107
        %2628 = vmatpush1.bf16.msra.mxu0 %v2106
        %2629 = vmatprep.subr.bf16.mxu0 %v2111
        %2630 = vmatpush1.bf16.msra.mxu0 %v2110
        %2631 = vmatprep.subr.bf16.mxu0 %v2115
        %2632 = vmatpush1.bf16.msra.mxu0 %v2114
        %2633 = vmatprep.subr.bf16.mxu0 %v2119
        %2634 = vmatpush1.bf16.msra.mxu0 %v2118
        %2635 = vmatprep.subr.bf16.mxu0 %v2123
        %2636 = vmatpush1.bf16.msra.mxu0 %v2122
        %2637 = vmatprep.subr.bf16.mxu0 %v2127
        %2638 = vmatpush1.bf16.msra.mxu0 %v2126
        %2639 = vmatprep.subr.bf16.mxu0 %v2131
        %2640 = vmatpush1.bf16.msra.mxu0 %v2130
        %2641 = vmatprep.subr.bf16.mxu0 %v2135
        %2642 = vmatpush1.bf16.msra.mxu0 %v2134
        %2643 = vmatprep.subr.bf16.mxu0 %v2139
        %2644 = vmatpush1.bf16.msra.mxu0 %v2138
        %2645 = vmatprep.subr.bf16.mxu0 %v2143
        %2646 = vmatpush1.bf16.msra.mxu0 %v2142
        %2647 = vmatprep.subr.bf16.mxu0 %v2147
        %2648 = vmatpush1.bf16.msra.mxu0 %v2146
        %2649 = vmatprep.subr.bf16.mxu0 %v2151
        %2650 = vmatpush1.bf16.msra.mxu0 %v2150
        %2651 = vmatprep.mubr.bf16.mxu0 %v1461
        %2652 = vmatmul.mubr.bf16.gmra.mrb[0].mxu0 %v1460
        %v2653 = vpop.f32.mrb[0].mxu0
        %v2654 = vadd.f32 %v2541, %v2653
        %v2655 = vpop.f32.mrb[0].mxu0
        %v2656 = vadd.f32 %v2543, %v2655
        %v2657 = vpop.f32.mrb[0].mxu0
        %v2658 = vadd.f32 %v2545, %v2657
        %v2659 = vpop.f32.mrb[0].mxu0
        %v2660 = vadd.f32 %v2547, %v2659
        %2661 = vmatprep.mubr.bf16.mxu0 %v1465
        %2662 = vmatmul.mubr.bf16.gmra.mrb[0].mxu0 %v1464
        %v2663 = vpop.f32.mrb[0].mxu0
        %v2664 = vadd.f32 %v2551, %v2663
        %v2665 = vpop.f32.mrb[0].mxu0
        %v2666 = vadd.f32 %v2553, %v2665
        %v2667 = vpop.f32.mrb[0].mxu0
        %v2668 = vadd.f32 %v2555, %v2667
        %v2669 = vpop.f32.mrb[0].mxu0
        %v2670 = vadd.f32 %v2557, %v2669
        %2671 = vmatprep.mubr.bf16.mxu0 %v1469
        %2672 = vmatmul.mubr.bf16.gmra.mrb[0].mxu0 %v1468
        %v2673 = vpop.f32.mrb[0].mxu0
        %v2674 = vadd.f32 %v2561, %v2673
        %v2675 = vpop.f32.mrb[0].mxu0
        %v2676 = vadd.f32 %v2563, %v2675
        %v2677 = vpop.f32.mrb[0].mxu0
        %v2678 = vadd.f32 %v2565, %v2677
        %v2679 = vpop.f32.mrb[0].mxu0
        %v2680 = vadd.f32 %v2567, %v2679
        %2681 = vmatprep.mubr.bf16.mxu0 %v1473
        %2682 = vmatmul.mubr.bf16.gmra.mrb[0].mxu0 %v1472
        %v2683 = vpop.f32.mrb[0].mxu0
        %v2684 = vadd.f32 %v2571, %v2683
        %v2685 = vpop.f32.mrb[0].mxu0
        %v2686 = vadd.f32 %v2573, %v2685
        %v2687 = vpop.f32.mrb[0].mxu0
        %v2688 = vadd.f32 %v2575, %v2687
        %v2689 = vpop.f32.mrb[0].mxu0
        %v2690 = vadd.f32 %v2577, %v2689
        %2691 = vmatprep.mubr.bf16.mxu0 %v1477
        %2692 = vmatmul.mubr.bf16.gmra.mrb[0].mxu0 %v1476
        %v2693 = vpop.f32.mrb[0].mxu0
        %v2694 = vadd.f32 %v2581, %v2693
        %v2695 = vpop.f32.mrb[0].mxu0
        %v2696 = vadd.f32 %v2583, %v2695
        %v2697 = vpop.f32.mrb[0].mxu0
        %v2698 = vadd.f32 %v2585, %v2697
        %v2699 = vpop.f32.mrb[0].mxu0
        %v2700 = vadd.f32 %v2587, %v2699
        %2701 = vmatprep.mubr.bf16.mxu0 %v1481
        %2702 = vmatmul.mubr.bf16.gmra.mrb[0].mxu0 %v1480
        %v2703 = vpop.f32.mrb[0].mxu0
        %v2704 = vadd.f32 %v2591, %v2703
        %v2705 = vpop.f32.mrb[0].mxu0
        %v2706 = vadd.f32 %v2593, %v2705
        %v2707 = vpop.f32.mrb[0].mxu0
        %v2708 = vadd.f32 %v2595, %v2707
        %v2709 = vpop.f32.mrb[0].mxu0
        %v2710 = vadd.f32 %v2597, %v2709
        %2711 = vmatprep.mubr.bf16.mxu0 %v1485
        %2712 = vmatmul.mubr.bf16.gmra.mrb[0].mxu0 %v1484
        %v2713 = vpop.f32.mrb[0].mxu0
        %v2714 = vadd.f32 %v2601, %v2713
        %v2715 = vpop.f32.mrb[0].mxu0
        %v2716 = vadd.f32 %v2603, %v2715
        %v2717 = vpop.f32.mrb[0].mxu0
        %v2718 = vadd.f32 %v2605, %v2717
        %v2719 = vpop.f32.mrb[0].mxu0
        %v2720 = vadd.f32 %v2607, %v2719
        %2721 = vmatprep.mubr.bf16.mxu0 %v1489
        %2722 = vmatmul.mubr.bf16.gmra.mrb[0].mxu0 %v1488
        %v2723 = vpop.f32.mrb[0].mxu0
        %v2724 = vadd.f32 %v2611, %v2723
        %v2725 = vpop.f32.mrb[0].mxu0
        %v2726 = vadd.f32 %v2613, %v2725
        %v2727 = vpop.f32.mrb[0].mxu0
        %v2728 = vadd.f32 %v2615, %v2727
        %v2729 = vpop.f32.mrb[0].mxu0
        %v2730 = vadd.f32 %v2617, %v2729
        %2731 = vdwg.mxu0
        %v2732 = vmax.f32 %v2428, 0.0
        %v2733 = vmax.f32 %v2430, 0.0
        %v2734 = vmax.f32 %v2654, 0.0
        %v2735 = vmax.f32 %v2656, 0.0
        %v2736 = vmax.f32 %v2432, 0.0
        %v2737 = vmax.f32 %v2434, 0.0
        %v2738 = vmax.f32 %v2658, 0.0
        %v2739 = vmax.f32 %v2660, 0.0
        %v2740 = vmax.f32 %v2438, 0.0
        %v2741 = vmax.f32 %v2440, 0.0
        %v2742 = vmax.f32 %v2664, 0.0
        %v2743 = vmax.f32 %v2666, 0.0
        %v2744 = vmax.f32 %v2442, 0.0
        %v2745 = vmax.f32 %v2444, 0.0
        %v2746 = vmax.f32 %v2668, 0.0
        %v2747 = vmax.f32 %v2670, 0.0
        %v2748 = vmax.f32 %v2448, 0.0
        %v2749 = vmax.f32 %v2450, 0.0
        %v2750 = vmax.f32 %v2674, 0.0
        %v2751 = vmax.f32 %v2676, 0.0
        %v2752 = vmax.f32 %v2452, 0.0
        %v2753 = vmax.f32 %v2454, 0.0
        %v2754 = vmax.f32 %v2678, 0.0
        %v2755 = vmax.f32 %v2680, 0.0
        %v2756 = vmax.f32 %v2458, 0.0
        %v2757 = vmax.f32 %v2460, 0.0
        %v2758 = vmax.f32 %v2684, 0.0
        %v2759 = vmax.f32 %v2686, 0.0
        %v2760 = vmax.f32 %v2462, 0.0
        %v2761 = vmax.f32 %v2464, 0.0
        %v2762 = vmax.f32 %v2688, 0.0
        %v2763 = vmax.f32 %v2690, 0.0
        %v2764 = vmax.f32 %v2468, 0.0
        %v2765 = vmax.f32 %v2470, 0.0
        %v2766 = vmax.f32 %v2694, 0.0
        %v2767 = vmax.f32 %v2696, 0.0
        %v2768 = vmax.f32 %v2472, 0.0
        %v2769 = vmax.f32 %v2474, 0.0
        %v2770 = vmax.f32 %v2698, 0.0
        %v2771 = vmax.f32 %v2700, 0.0
        %v2772 = vmax.f32 %v2478, 0.0
        %v2773 = vmax.f32 %v2480, 0.0
        %v2774 = vmax.f32 %v2704, 0.0
        %v2775 = vmax.f32 %v2706, 0.0
        %v2776 = vmax.f32 %v2482, 0.0
        %v2777 = vmax.f32 %v2484, 0.0
        %v2778 = vmax.f32 %v2708, 0.0
        %v2779 = vmax.f32 %v2710, 0.0
        %v2780 = vmax.f32 %v2488, 0.0
        %v2781 = vmax.f32 %v2490, 0.0
        %v2782 = vmax.f32 %v2714, 0.0
        %v2783 = vmax.f32 %v2716, 0.0
        %v2784 = vmax.f32 %v2492, 0.0
        %v2785 = vmax.f32 %v2494, 0.0
        %v2786 = vmax.f32 %v2718, 0.0
        %v2787 = vmax.f32 %v2720, 0.0
        %v2788 = vmax.f32 %v2498, 0.0
        %v2789 = vmax.f32 %v2500, 0.0
        %v2790 = vmax.f32 %v2724, 0.0
        %v2791 = vmax.f32 %v2726, 0.0
        %v2792 = vmax.f32 %v2502, 0.0
        %v2793 = vmax.f32 %v2504, 0.0
        %v2794 = vmax.f32 %v2728, 0.0
        %v2795 = vmax.f32 %v2730, 0.0
        %v2796 = vpack.c.bf16 %v2736, %v2732
        %v2797 = vpack.c.bf16 %v2737, %v2733
        %v2798 = vpack.c.bf16 %v2738, %v2734
        %v2799 = vpack.c.bf16 %v2739, %v2735
        %v2800 = vpack.c.bf16 %v2744, %v2740
        %v2801 = vpack.c.bf16 %v2745, %v2741
        %v2802 = vpack.c.bf16 %v2746, %v2742
        %v2803 = vpack.c.bf16 %v2747, %v2743
        %v2804 = vpack.c.bf16 %v2752, %v2748
        %v2805 = vpack.c.bf16 %v2753, %v2749
        %v2806 = vpack.c.bf16 %v2754, %v2750
        %v2807 = vpack.c.bf16 %v2755, %v2751
        %v2808 = vpack.c.bf16 %v2760, %v2756
        %v2809 = vpack.c.bf16 %v2761, %v2757
        %v2810 = vpack.c.bf16 %v2762, %v2758
        %v2811 = vpack.c.bf16 %v2763, %v2759
        %v2812 = vpack.c.bf16 %v2768, %v2764
        %v2813 = vpack.c.bf16 %v2769, %v2765
        %v2814 = vpack.c.bf16 %v2770, %v2766
        %v2815 = vpack.c.bf16 %v2771, %v2767
        %v2816 = vpack.c.bf16 %v2776, %v2772
        %v2817 = vpack.c.bf16 %v2777, %v2773
        %v2818 = vpack.c.bf16 %v2778, %v2774
        %v2819 = vpack.c.bf16 %v2779, %v2775
        %v2820 = vpack.c.bf16 %v2784, %v2780
        %v2821 = vpack.c.bf16 %v2785, %v2781
        %v2822 = vpack.c.bf16 %v2786, %v2782
        %v2823 = vpack.c.bf16 %v2787, %v2783
        %v2824 = vpack.c.bf16 %v2792, %v2788
        %v2825 = vpack.c.bf16 %v2793, %v2789
        %v2826 = vpack.c.bf16 %v2794, %v2790
        %v2827 = vpack.c.bf16 %v2795, %v2791
        %v2828 = vld [vmem:[#allocation7] sm:$0xf]
        %v2829 = vld [vmem:[#allocation7 + $0x4] sm:$0xf]
        %v2830 = vld [vmem:[#allocation7 + $0x8] sm:$0xf]
        %v2831 = vld [vmem:[#allocation7 + $0xc] sm:$0xf]
        %v2832 = vld [vmem:[#allocation7 + $0x10] sm:$0xf]
        %v2833 = vld [vmem:[#allocation7 + $0x14] sm:$0xf]
        %v2834 = vld [vmem:[#allocation7 + $0x18] sm:$0xf]
        %v2835 = vld [vmem:[#allocation7 + $0x1c] sm:$0xf]
        %v2836 = vld [vmem:[#allocation7 + $0x20] sm:$0xf]
        %v2837 = vld [vmem:[#allocation7 + $0x24] sm:$0xf]
        %v2838 = vld [vmem:[#allocation7 + $0x28] sm:$0xf]
        %v2839 = vld [vmem:[#allocation7 + $0x2c] sm:$0xf]
        %v2840 = vld [vmem:[#allocation7 + $0x30] sm:$0xf]
        %v2841 = vld [vmem:[#allocation7 + $0x34] sm:$0xf]
        %v2842 = vld [vmem:[#allocation7 + $0x38] sm:$0xf]
        %v2843 = vld [vmem:[#allocation7 + $0x3c] sm:$0xf]
        %v2844 = vld [vmem:[#allocation7 + $0x40] sm:$0xf]
        %v2845 = vld [vmem:[#allocation7 + $0x44] sm:$0xf]
        %v2846 = vld [vmem:[#allocation7 + $0x48] sm:$0xf]
        %v2847 = vld [vmem:[#allocation7 + $0x4c] sm:$0xf]
        %v2848 = vld [vmem:[#allocation7 + $0x50] sm:$0xf]
        %v2849 = vld [vmem:[#allocation7 + $0x54] sm:$0xf]
        %v2850 = vld [vmem:[#allocation7 + $0x58] sm:$0xf]
        %v2851 = vld [vmem:[#allocation7 + $0x5c] sm:$0xf]
        %v2852 = vld [vmem:[#allocation7 + $0x60] sm:$0xf]
        %v2853 = vld [vmem:[#allocation7 + $0x64] sm:$0xf]
        %v2854 = vld [vmem:[#allocation7 + $0x68] sm:$0xf]
        %v2855 = vld [vmem:[#allocation7 + $0x6c] sm:$0xf]
        %v2856 = vld [vmem:[#allocation7 + $0x70] sm:$0xf]
        %v2857 = vld [vmem:[#allocation7 + $0x74] sm:$0xf]
        %v2858 = vld [vmem:[#allocation7 + $0x78] sm:$0xf]
        %v2859 = vld [vmem:[#allocation7 + $0x7c] sm:$0xf]
        %v2860 = vld [vmem:[#allocation7 + $0x80] sm:$0xf]
        %v2861 = vld [vmem:[#allocation7 + $0x84] sm:$0xf]
        %v2862 = vld [vmem:[#allocation7 + $0x88] sm:$0xf]
        %v2863 = vld [vmem:[#allocation7 + $0x8c] sm:$0xf]
        %v2864 = vld [vmem:[#allocation7 + $0x90] sm:$0xf]
        %v2865 = vld [vmem:[#allocation7 + $0x94] sm:$0xf]
        %v2866 = vld [vmem:[#allocation7 + $0x98] sm:$0xf]
        %v2867 = vld [vmem:[#allocation7 + $0x9c] sm:$0xf]
        %v2868 = vld [vmem:[#allocation7 + $0xa0] sm:$0xf]
        %v2869 = vld [vmem:[#allocation7 + $0xa4] sm:$0xf]
        %v2870 = vld [vmem:[#allocation7 + $0xa8] sm:$0xf]
        %v2871 = vld [vmem:[#allocation7 + $0xac] sm:$0xf]
        %v2872 = vld [vmem:[#allocation7 + $0xb0] sm:$0xf]
        %v2873 = vld [vmem:[#allocation7 + $0xb4] sm:$0xf]
        %v2874 = vld [vmem:[#allocation7 + $0xb8] sm:$0xf]
        %v2875 = vld [vmem:[#allocation7 + $0xbc] sm:$0xf]
        %v2876 = vld [vmem:[#allocation7 + $0xc0] sm:$0xf]
        %v2877 = vld [vmem:[#allocation7 + $0xc4] sm:$0xf]
        %v2878 = vld [vmem:[#allocation7 + $0xc8] sm:$0xf]
        %v2879 = vld [vmem:[#allocation7 + $0xcc] sm:$0xf]
        %v2880 = vld [vmem:[#allocation7 + $0xd0] sm:$0xf]
        %v2881 = vld [vmem:[#allocation7 + $0xd4] sm:$0xf]
        %v2882 = vld [vmem:[#allocation7 + $0xd8] sm:$0xf]
        %v2883 = vld [vmem:[#allocation7 + $0xdc] sm:$0xf]
        %v2884 = vld [vmem:[#allocation7 + $0xe0] sm:$0xf]
        %v2885 = vld [vmem:[#allocation7 + $0xe4] sm:$0xf]
        %v2886 = vld [vmem:[#allocation7 + $0xe8] sm:$0xf]
        %v2887 = vld [vmem:[#allocation7 + $0xec] sm:$0xf]
        %v2888 = vld [vmem:[#allocation7 + $0xf0] sm:$0xf]
        %v2889 = vld [vmem:[#allocation7 + $0xf4] sm:$0xf]
        %v2890 = vld [vmem:[#allocation7 + $0xf8] sm:$0xf]
        %v2891 = vld [vmem:[#allocation7 + $0xfc] sm:$0xf]
        %v2892 = vld [vmem:[%s8] sm:$0x1]
        %v2894 = vlaneseq
        %v2895 = vshrl.u32 %v2894, 7
        %v2896 = vsub.s32 0, %v2895
        %v2897 = vrot.slane %v2892, %v2896
        %v2963 = vunpack.c.l.b16 %v2828
        %v2964 = vunpack.c.l.b16 %v2829
        %v2965 = vunpack.c.l.b16 %v2830
        %v2966 = vunpack.c.l.b16 %v2831
        %v2967 = vunpack.c.l.b16 %v2832
        %v2968 = vunpack.c.l.b16 %v2833
        %v2969 = vunpack.c.l.b16 %v2834
        %v2970 = vunpack.c.l.b16 %v2835
        %v2971 = vunpack.c.l.b16 %v2836
        %v2972 = vunpack.c.l.b16 %v2837
        %v2973 = vunpack.c.l.b16 %v2838
        %v2974 = vunpack.c.l.b16 %v2839
        %v2975 = vunpack.c.l.b16 %v2840
        %v2976 = vunpack.c.l.b16 %v2841
        %v2977 = vunpack.c.l.b16 %v2842
        %v2978 = vunpack.c.l.b16 %v2843
        %v2979 = vunpack.c.l.b16 %v2844
        %v2980 = vunpack.c.l.b16 %v2845
        %v2981 = vunpack.c.l.b16 %v2846
        %v2982 = vunpack.c.l.b16 %v2847
        %v2983 = vunpack.c.l.b16 %v2848
        %v2984 = vunpack.c.l.b16 %v2849
        %v2985 = vunpack.c.l.b16 %v2850
        %v2986 = vunpack.c.l.b16 %v2851
        %v2987 = vunpack.c.l.b16 %v2852
        %v2988 = vunpack.c.l.b16 %v2853
        %v2989 = vunpack.c.l.b16 %v2854
        %v2990 = vunpack.c.l.b16 %v2855
        %v2991 = vunpack.c.l.b16 %v2856
        %v2992 = vunpack.c.l.b16 %v2857
        %v2993 = vunpack.c.l.b16 %v2858
        %v2994 = vunpack.c.l.b16 %v2859
        %v2995 = vunpack.c.l.b16 %v2860
        %v2996 = vunpack.c.l.b16 %v2861
        %v2997 = vunpack.c.l.b16 %v2862
        %v2998 = vunpack.c.l.b16 %v2863
        %v2999 = vunpack.c.l.b16 %v2864
        %v3000 = vunpack.c.l.b16 %v2865
        %v3001 = vunpack.c.l.b16 %v2866
        %v3002 = vunpack.c.l.b16 %v2867
        %v3003 = vunpack.c.l.b16 %v2868
        %v3004 = vunpack.c.l.b16 %v2869
        %v3005 = vunpack.c.l.b16 %v2870
        %v3006 = vunpack.c.l.b16 %v2871
        %v3007 = vunpack.c.l.b16 %v2872
        %v3008 = vunpack.c.l.b16 %v2873
        %v3009 = vunpack.c.l.b16 %v2874
        %v3010 = vunpack.c.l.b16 %v2875
        %v3011 = vunpack.c.l.b16 %v2876
        %v3012 = vunpack.c.l.b16 %v2877
        %v3013 = vunpack.c.l.b16 %v2878
        %v3014 = vunpack.c.l.b16 %v2879
        %v3015 = vunpack.c.l.b16 %v2880
        %v3016 = vunpack.c.l.b16 %v2881
        %v3017 = vunpack.c.l.b16 %v2882
        %v3018 = vunpack.c.l.b16 %v2883
        %v3019 = vunpack.c.l.b16 %v2884
        %v3020 = vunpack.c.l.b16 %v2885
        %v3021 = vunpack.c.l.b16 %v2886
        %v3022 = vunpack.c.l.b16 %v2887
        %v3023 = vunpack.c.l.b16 %v2888
        %v3024 = vunpack.c.l.b16 %v2889
        %v3025 = vunpack.c.l.b16 %v2890
        %v3026 = vunpack.c.l.b16 %v2891
        %v3027 = vpack.c.b16 %v2964, %v2963
        %v3028 = vpack.c.b16 %v2966, %v2965
        %v3029 = vpack.c.b16 %v2968, %v2967
        %v3030 = vpack.c.b16 %v2970, %v2969
        %v3031 = vpack.c.b16 %v2972, %v2971
        %v3032 = vpack.c.b16 %v2974, %v2973
        %v3033 = vpack.c.b16 %v2976, %v2975
        %v3034 = vpack.c.b16 %v2978, %v2977
        %v3035 = vpack.c.b16 %v2980, %v2979
        %v3036 = vpack.c.b16 %v2982, %v2981
        %v3037 = vpack.c.b16 %v2984, %v2983
        %v3038 = vpack.c.b16 %v2986, %v2985
        %v3039 = vpack.c.b16 %v2988, %v2987
        %v3040 = vpack.c.b16 %v2990, %v2989
        %v3041 = vpack.c.b16 %v2992, %v2991
        %v3042 = vpack.c.b16 %v2994, %v2993
        %v3043 = vpack.c.b16 %v2996, %v2995
        %v3044 = vpack.c.b16 %v2998, %v2997
        %v3045 = vpack.c.b16 %v3000, %v2999
        %v3046 = vpack.c.b16 %v3002, %v3001
        %v3047 = vpack.c.b16 %v3004, %v3003
        %v3048 = vpack.c.b16 %v3006, %v3005
        %v3049 = vpack.c.b16 %v3008, %v3007
        %v3050 = vpack.c.b16 %v3010, %v3009
        %v3051 = vpack.c.b16 %v3012, %v3011
        %v3052 = vpack.c.b16 %v3014, %v3013
        %v3053 = vpack.c.b16 %v3016, %v3015
        %v3054 = vpack.c.b16 %v3018, %v3017
        %v3055 = vpack.c.b16 %v3020, %v3019
        %v3056 = vpack.c.b16 %v3022, %v3021
        %v3057 = vpack.c.b16 %v3024, %v3023
        %v3058 = vpack.c.b16 %v3026, %v3025
        %3091 = vmatprep.subr.bf16.mxu0 0
        %3092 = vmatpush1.bf16.msra.mxu0 %v3027
        %3093 = vmatprep.subr.bf16.mxu0 0
        %3094 = vmatpush1.bf16.msra.mxu0 %v3028
        %3095 = vmatprep.subr.bf16.mxu0 0
        %3096 = vmatpush1.bf16.msra.mxu0 %v3029
        %3097 = vmatprep.subr.bf16.mxu0 0
        %3098 = vmatpush1.bf16.msra.mxu0 %v3030
        %3099 = vmatprep.subr.bf16.mxu0 0
        %3100 = vmatpush1.bf16.msra.mxu0 %v3031
        %3101 = vmatprep.subr.bf16.mxu0 0
        %3102 = vmatpush1.bf16.msra.mxu0 %v3032
        %3103 = vmatprep.subr.bf16.mxu0 0
        %3104 = vmatpush1.bf16.msra.mxu0 %v3033
        %3105 = vmatprep.subr.bf16.mxu0 0
        %3106 = vmatpush1.bf16.msra.mxu0 %v3034
        %3107 = vmatprep.subr.bf16.mxu0 0
        %3108 = vmatpush1.bf16.msra.mxu0 %v3035
        %3109 = vmatprep.subr.bf16.mxu0 0
        %3110 = vmatpush1.bf16.msra.mxu0 %v3036
        %3111 = vmatprep.subr.bf16.mxu0 0
        %3112 = vmatpush1.bf16.msra.mxu0 %v3037
        %3113 = vmatprep.subr.bf16.mxu0 0
        %3114 = vmatpush1.bf16.msra.mxu0 %v3038
        %3115 = vmatprep.subr.bf16.mxu0 0
        %3116 = vmatpush1.bf16.msra.mxu0 %v3039
        %3117 = vmatprep.subr.bf16.mxu0 0
        %3118 = vmatpush1.bf16.msra.mxu0 %v3040
        %3119 = vmatprep.subr.bf16.mxu0 0
        %3120 = vmatpush1.bf16.msra.mxu0 %v3041
        %3121 = vmatprep.subr.bf16.mxu0 0
        %3122 = vmatpush1.bf16.msra.mxu0 %v3042
        %3123 = vmatprep.mubr.bf16.mxu0 %v2797
        %3124 = vmatmul.mubr.bf16.gmra.mrb[0].mxu0 %v2796
        %v3125 = vpop.f32.mrb[0].mxu0
        %v3126 = vadd.f32 %v2897, %v3125
        %v3127 = vpop.f32.mrb[0].mxu0
        %v3128 = vpop.f32.mrb[0].mxu0
        %v3129 = vadd.f32 %v2897, %v3128
        %v3130 = vpop.f32.mrb[0].mxu0
        %3131 = vmatprep.mubr.bf16.mxu0 %v2801
        %3132 = vmatmul.mubr.bf16.gmra.mrb[0].mxu0 %v2800
        %v3133 = vpop.f32.mrb[0].mxu0
        %v3134 = vadd.f32 %v2897, %v3133
        %v3135 = vpop.f32.mrb[0].mxu0
        %v3136 = vpop.f32.mrb[0].mxu0
        %v3137 = vadd.f32 %v2897, %v3136
        %v3138 = vpop.f32.mrb[0].mxu0
        %3139 = vmatprep.mubr.bf16.mxu0 %v2805
        %3140 = vmatmul.mubr.bf16.gmra.mrb[0].mxu0 %v2804
        %v3141 = vpop.f32.mrb[0].mxu0
        %v3142 = vadd.f32 %v2897, %v3141
        %v3143 = vpop.f32.mrb[0].mxu0
        %v3144 = vpop.f32.mrb[0].mxu0
        %v3145 = vadd.f32 %v2897, %v3144
        %v3146 = vpop.f32.mrb[0].mxu0
        %3147 = vmatprep.mubr.bf16.mxu0 %v2809
        %3148 = vmatmul.mubr.bf16.gmra.mrb[0].mxu0 %v2808
        %v3149 = vpop.f32.mrb[0].mxu0
        %v3150 = vadd.f32 %v2897, %v3149
        %v3151 = vpop.f32.mrb[0].mxu0
        %v3152 = vpop.f32.mrb[0].mxu0
        %v3153 = vadd.f32 %v2897, %v3152
        %v3154 = vpop.f32.mrb[0].mxu0
        %3155 = vmatprep.mubr.bf16.mxu0 %v2813
        %3156 = vmatmul.mubr.bf16.gmra.mrb[0].mxu0 %v2812
        %v3157 = vpop.f32.mrb[0].mxu0
        %v3158 = vadd.f32 %v2897, %v3157
        %v3159 = vpop.f32.mrb[0].mxu0
        %v3160 = vpop.f32.mrb[0].mxu0
        %v3161 = vadd.f32 %v2897, %v3160
        %v3162 = vpop.f32.mrb[0].mxu0
        %3163 = vmatprep.mubr.bf16.mxu0 %v2817
        %3164 = vmatmul.mubr.bf16.gmra.mrb[0].mxu0 %v2816
        %v3165 = vpop.f32.mrb[0].mxu0
        %v3166 = vadd.f32 %v2897, %v3165
        %v3167 = vpop.f32.mrb[0].mxu0
        %v3168 = vpop.f32.mrb[0].mxu0
        %v3169 = vadd.f32 %v2897, %v3168
        %v3170 = vpop.f32.mrb[0].mxu0
        %3171 = vmatprep.mubr.bf16.mxu0 %v2821
        %3172 = vmatmul.mubr.bf16.gmra.mrb[0].mxu0 %v2820
        %v3173 = vpop.f32.mrb[0].mxu0
        %v3174 = vadd.f32 %v2897, %v3173
        %v3175 = vpop.f32.mrb[0].mxu0
        %v3176 = vpop.f32.mrb[0].mxu0
        %v3177 = vadd.f32 %v2897, %v3176
        %v3178 = vpop.f32.mrb[0].mxu0
        %3179 = vmatprep.mubr.bf16.mxu0 %v2825
        %3180 = vmatmul.mubr.bf16.gmra.mrb[0].mxu0 %v2824
        %v3181 = vpop.f32.mrb[0].mxu0
        %v3182 = vadd.f32 %v2897, %v3181
        %v3183 = vpop.f32.mrb[0].mxu0
        %v3184 = vpop.f32.mrb[0].mxu0
        %v3185 = vadd.f32 %v2897, %v3184
        %v3186 = vpop.f32.mrb[0].mxu0
        %3187 = vdwg.mxu0
        %3188 = vmatprep.subr.bf16.mxu0 0
        %3189 = vmatpush1.bf16.msra.mxu0 %v3043
        %3190 = vmatprep.subr.bf16.mxu0 0
        %3191 = vmatpush1.bf16.msra.mxu0 %v3044
        %3192 = vmatprep.subr.bf16.mxu0 0
        %3193 = vmatpush1.bf16.msra.mxu0 %v3045
        %3194 = vmatprep.subr.bf16.mxu0 0
        %3195 = vmatpush1.bf16.msra.mxu0 %v3046
        %3196 = vmatprep.subr.bf16.mxu0 0
        %3197 = vmatpush1.bf16.msra.mxu0 %v3047
        %3198 = vmatprep.subr.bf16.mxu0 0
        %3199 = vmatpush1.bf16.msra.mxu0 %v3048
        %3200 = vmatprep.subr.bf16.mxu0 0
        %3201 = vmatpush1.bf16.msra.mxu0 %v3049
        %3202 = vmatprep.subr.bf16.mxu0 0
        %3203 = vmatpush1.bf16.msra.mxu0 %v3050
        %3204 = vmatprep.subr.bf16.mxu0 0
        %3205 = vmatpush1.bf16.msra.mxu0 %v3051
        %3206 = vmatprep.subr.bf16.mxu0 0
        %3207 = vmatpush1.bf16.msra.mxu0 %v3052
        %3208 = vmatprep.subr.bf16.mxu0 0
        %3209 = vmatpush1.bf16.msra.mxu0 %v3053
        %3210 = vmatprep.subr.bf16.mxu0 0
        %3211 = vmatpush1.bf16.msra.mxu0 %v3054
        %3212 = vmatprep.subr.bf16.mxu0 0
        %3213 = vmatpush1.bf16.msra.mxu0 %v3055
        %3214 = vmatprep.subr.bf16.mxu0 0
        %3215 = vmatpush1.bf16.msra.mxu0 %v3056
        %3216 = vmatprep.subr.bf16.mxu0 0
        %3217 = vmatpush1.bf16.msra.mxu0 %v3057
        %3218 = vmatprep.subr.bf16.mxu0 0
        %3219 = vmatpush1.bf16.msra.mxu0 %v3058
        %3220 = vmatprep.mubr.bf16.mxu0 %v2799
        %3221 = vmatmul.mubr.bf16.gmra.mrb[0].mxu0 %v2798
        %v3222 = vpop.f32.mrb[0].mxu0
        %v3223 = vadd.f32 %v3126, %v3222
        %v3224 = vpop.f32.mrb[0].mxu0
        %v3225 = vpop.f32.mrb[0].mxu0
        %v3226 = vadd.f32 %v3129, %v3225
        %v3227 = vpop.f32.mrb[0].mxu0
        %3228 = vmatprep.mubr.bf16.mxu0 %v2803
        %3229 = vmatmul.mubr.bf16.gmra.mrb[0].mxu0 %v2802
        %v3230 = vpop.f32.mrb[0].mxu0
        %v3231 = vadd.f32 %v3134, %v3230
        %v3232 = vpop.f32.mrb[0].mxu0
        %v3233 = vpop.f32.mrb[0].mxu0
        %v3234 = vadd.f32 %v3137, %v3233
        %v3235 = vpop.f32.mrb[0].mxu0
        %3236 = vmatprep.mubr.bf16.mxu0 %v2807
        %3237 = vmatmul.mubr.bf16.gmra.mrb[0].mxu0 %v2806
        %v3238 = vpop.f32.mrb[0].mxu0
        %v3239 = vadd.f32 %v3142, %v3238
        %v3240 = vpop.f32.mrb[0].mxu0
        %v3241 = vpop.f32.mrb[0].mxu0
        %v3242 = vadd.f32 %v3145, %v3241
        %v3243 = vpop.f32.mrb[0].mxu0
        %3244 = vmatprep.mubr.bf16.mxu0 %v2811
        %3245 = vmatmul.mubr.bf16.gmra.mrb[0].mxu0 %v2810
        %v3246 = vpop.f32.mrb[0].mxu0
        %v3247 = vadd.f32 %v3150, %v3246
        %v3248 = vpop.f32.mrb[0].mxu0
        %v3249 = vpop.f32.mrb[0].mxu0
        %v3250 = vadd.f32 %v3153, %v3249
        %v3251 = vpop.f32.mrb[0].mxu0
        %3252 = vmatprep.mubr.bf16.mxu0 %v2815
        %3253 = vmatmul.mubr.bf16.gmra.mrb[0].mxu0 %v2814
        %v3254 = vpop.f32.mrb[0].mxu0
        %v3255 = vadd.f32 %v3158, %v3254
        %v3256 = vpop.f32.mrb[0].mxu0
        %v3257 = vpop.f32.mrb[0].mxu0
        %v3258 = vadd.f32 %v3161, %v3257
        %v3259 = vpop.f32.mrb[0].mxu0
        %3260 = vmatprep.mubr.bf16.mxu0 %v2819
        %3261 = vmatmul.mubr.bf16.gmra.mrb[0].mxu0 %v2818
        %v3262 = vpop.f32.mrb[0].mxu0
        %v3263 = vadd.f32 %v3166, %v3262
        %v3264 = vpop.f32.mrb[0].mxu0
        %v3265 = vpop.f32.mrb[0].mxu0
        %v3266 = vadd.f32 %v3169, %v3265
        %v3267 = vpop.f32.mrb[0].mxu0
        %3268 = vmatprep.mubr.bf16.mxu0 %v2823
        %3269 = vmatmul.mubr.bf16.gmra.mrb[0].mxu0 %v2822
        %v3270 = vpop.f32.mrb[0].mxu0
        %v3271 = vadd.f32 %v3174, %v3270
        %v3272 = vpop.f32.mrb[0].mxu0
        %v3273 = vpop.f32.mrb[0].mxu0
        %v3274 = vadd.f32 %v3177, %v3273
        %v3275 = vpop.f32.mrb[0].mxu0
        %3276 = vmatprep.mubr.bf16.mxu0 %v2827
        %3277 = vmatmul.mubr.bf16.gmra.mrb[0].mxu0 %v2826
        %v3278 = vpop.f32.mrb[0].mxu0
        %v3279 = vadd.f32 %v3182, %v3278
        %v3280 = vpop.f32.mrb[0].mxu0
        %v3281 = vpop.f32.mrb[0].mxu0
        %v3282 = vadd.f32 %v3185, %v3281
        %v3283 = vpop.f32.mrb[0].mxu0
        %3284 = vdwg.mxu0
        %v3285 = vmax.f32 %v3223, 0.0
        %v3286 = vmax.f32 %v3226, 0.0
        %v3287 = vmax.f32 %v3231, 0.0
        %v3288 = vmax.f32 %v3234, 0.0
        %v3289 = vmax.f32 %v3239, 0.0
        %v3290 = vmax.f32 %v3242, 0.0
        %v3291 = vmax.f32 %v3247, 0.0
        %v3292 = vmax.f32 %v3250, 0.0
        %v3293 = vmax.f32 %v3255, 0.0
        %v3294 = vmax.f32 %v3258, 0.0
        %v3295 = vmax.f32 %v3263, 0.0
        %v3296 = vmax.f32 %v3266, 0.0
        %v3297 = vmax.f32 %v3271, 0.0
        %v3298 = vmax.f32 %v3274, 0.0
        %v3299 = vmax.f32 %v3279, 0.0
        %v3300 = vmax.f32 %v3282, 0.0
        %v3301 = vpack.c.bf16 %v3286, %v3285
        %v3302 = vpack.c.bf16 %v3288, %v3287
        %v3303 = vpack.c.bf16 %v3290, %v3289
        %v3304 = vpack.c.bf16 %v3292, %v3291
        %v3305 = vpack.c.bf16 %v3294, %v3293
        %v3306 = vpack.c.bf16 %v3296, %v3295
        %v3307 = vpack.c.bf16 %v3298, %v3297
        %v3308 = vpack.c.bf16 %v3300, %v3299
        %v3309 = vld [vmem:[%s9] sm:$0xf]
        %v3310 = vld [vmem:[%s9 + $0x4] sm:$0xf]
        %v3311 = vld [vmem:[%s9 + $0x8] sm:$0xf]
        %v3312 = vld [vmem:[%s9 + $0xc] sm:$0xf]
        %v3313 = vld [vmem:[%s9 + $0x10] sm:$0xf]
        %v3314 = vld [vmem:[%s9 + $0x14] sm:$0xf]
        %v3315 = vld [vmem:[%s9 + $0x18] sm:$0xf]
        %v3316 = vld [vmem:[%s9 + $0x1c] sm:$0xf]
        %v3317 = vld [vmem:[%s9 + $0x20] sm:$0xf]
        %v3318 = vld [vmem:[%s9 + $0x24] sm:$0xf]
        %v3319 = vld [vmem:[%s9 + $0x28] sm:$0xf]
        %v3320 = vld [vmem:[%s9 + $0x2c] sm:$0xf]
        %v3321 = vld [vmem:[%s9 + $0x30] sm:$0xf]
        %v3322 = vld [vmem:[%s9 + $0x34] sm:$0xf]
        %v3323 = vld [vmem:[%s9 + $0x38] sm:$0xf]
        %v3324 = vld [vmem:[%s9 + $0x3c] sm:$0xf]
        %v3325 = vld [vmem:[%s10] sm:$0x1]
        %v3327 = vlaneseq
        %v3328 = vshrl.u32 %v3327, 7
        %v3329 = vsub.s32 0, %v3328
        %v3330 = vrot.slane %v3325, %v3329
        %v3348 = vunpack.c.l.b16 %v3309
        %v3349 = vunpack.c.l.b16 %v3310
        %v3350 = vunpack.c.l.b16 %v3311
        %v3351 = vunpack.c.l.b16 %v3312
        %v3352 = vunpack.c.l.b16 %v3313
        %v3353 = vunpack.c.l.b16 %v3314
        %v3354 = vunpack.c.l.b16 %v3315
        %v3355 = vunpack.c.l.b16 %v3316
        %v3356 = vunpack.c.l.b16 %v3317
        %v3357 = vunpack.c.l.b16 %v3318
        %v3358 = vunpack.c.l.b16 %v3319
        %v3359 = vunpack.c.l.b16 %v3320
        %v3360 = vunpack.c.l.b16 %v3321
        %v3361 = vunpack.c.l.b16 %v3322
        %v3362 = vunpack.c.l.b16 %v3323
        %v3363 = vunpack.c.l.b16 %v3324
        %v3364 = vpack.c.b16 %v3349, %v3348
        %v3365 = vpack.c.b16 %v3351, %v3350
        %v3366 = vpack.c.b16 %v3353, %v3352
        %v3367 = vpack.c.b16 %v3355, %v3354
        %v3368 = vpack.c.b16 %v3357, %v3356
        %v3369 = vpack.c.b16 %v3359, %v3358
        %v3370 = vpack.c.b16 %v3361, %v3360
        %v3371 = vpack.c.b16 %v3363, %v3362
        %3380 = vmatprep.subr.bf16.mxu0 0
        %3381 = vmatpush1.bf16.msra.mxu0 %v3364
        %3382 = vmatprep.subr.bf16.mxu0 0
        %3383 = vmatpush1.bf16.msra.mxu0 %v3365
        %3384 = vmatprep.subr.bf16.mxu0 0
        %3385 = vmatpush1.bf16.msra.mxu0 %v3366
        %3386 = vmatprep.subr.bf16.mxu0 0
        %3387 = vmatpush1.bf16.msra.mxu0 %v3367
        %3388 = vmatprep.subr.bf16.mxu0 0
        %3389 = vmatpush1.bf16.msra.mxu0 %v3368
        %3390 = vmatprep.subr.bf16.mxu0 0
        %3391 = vmatpush1.bf16.msra.mxu0 %v3369
        %3392 = vmatprep.subr.bf16.mxu0 0
        %3393 = vmatpush1.bf16.msra.mxu0 %v3370
        %3394 = vmatprep.subr.bf16.mxu0 0
        %3395 = vmatpush1.bf16.msra.mxu0 %v3371
        %3396 = vmatprep.subr.bf16.mxu0 0
        %3397 = vmatpush1.bf16.msra.mxu0 0
        %3398 = vmatprep.subr.bf16.mxu0 0
        %3399 = vmatpush1.bf16.msra.mxu0 0
        %3400 = vmatprep.subr.bf16.mxu0 0
        %3401 = vmatpush1.bf16.msra.mxu0 0
        %3402 = vmatprep.subr.bf16.mxu0 0
        %3403 = vmatpush1.bf16.msra.mxu0 0
        %3404 = vmatprep.subr.bf16.mxu0 0
        %3405 = vmatpush1.bf16.msra.mxu0 0
        %3406 = vmatprep.subr.bf16.mxu0 0
        %3407 = vmatpush1.bf16.msra.mxu0 0
        %3408 = vmatprep.subr.bf16.mxu0 0
        %3409 = vmatpush1.bf16.msra.mxu0 0
        %3410 = vmatprep.subr.bf16.mxu0 0
        %3411 = vmatpush1.bf16.msra.mxu0 0
        %3412 = vmatprep.mubr.bf16.mxu0 0
        %3413 = vmatmul.mubr.bf16.gmra.mrb[0].mxu0 %v3301
        %v3414 = vpop.f32.mrb[0].mxu0
        %v3415 = vadd.f32 %v3330, %v3414
        %v3416 = vpop.f32.mrb[0].mxu0
        %v3417 = vpop.f32.mrb[0].mxu0
        %v3418 = vadd.f32 %v3330, %v3417
        %v3419 = vpop.f32.mrb[0].mxu0
        %3420 = vmatprep.mubr.bf16.mxu0 0
        %3421 = vmatmul.mubr.bf16.gmra.mrb[0].mxu0 %v3302
        %v3422 = vpop.f32.mrb[0].mxu0
        %v3423 = vadd.f32 %v3330, %v3422
        %v3424 = vpop.f32.mrb[0].mxu0
        %v3425 = vpop.f32.mrb[0].mxu0
        %v3426 = vadd.f32 %v3330, %v3425
        %v3427 = vpop.f32.mrb[0].mxu0
        %3428 = vmatprep.mubr.bf16.mxu0 0
        %3429 = vmatmul.mubr.bf16.gmra.mrb[0].mxu0 %v3303
        %v3430 = vpop.f32.mrb[0].mxu0
        %v3431 = vadd.f32 %v3330, %v3430
        %v3432 = vpop.f32.mrb[0].mxu0
        %v3433 = vpop.f32.mrb[0].mxu0
        %v3434 = vadd.f32 %v3330, %v3433
        %v3435 = vpop.f32.mrb[0].mxu0
        %3436 = vmatprep.mubr.bf16.mxu0 0
        %3437 = vmatmul.mubr.bf16.gmra.mrb[0].mxu0 %v3304
        %v3438 = vpop.f32.mrb[0].mxu0
        %v3439 = vadd.f32 %v3330, %v3438
        %v3440 = vpop.f32.mrb[0].mxu0
        %v3441 = vpop.f32.mrb[0].mxu0
        %v3442 = vadd.f32 %v3330, %v3441
        %v3443 = vpop.f32.mrb[0].mxu0
        %3444 = vmatprep.mubr.bf16.mxu0 0
        %3445 = vmatmul.mubr.bf16.gmra.mrb[0].mxu0 %v3305
        %v3446 = vpop.f32.mrb[0].mxu0
        %v3447 = vadd.f32 %v3330, %v3446
        %v3448 = vpop.f32.mrb[0].mxu0
        %v3449 = vpop.f32.mrb[0].mxu0
        %v3450 = vadd.f32 %v3330, %v3449
        %v3451 = vpop.f32.mrb[0].mxu0
        %3452 = vmatprep.mubr.bf16.mxu0 0
        %3453 = vmatmul.mubr.bf16.gmra.mrb[0].mxu0 %v3306
        %v3454 = vpop.f32.mrb[0].mxu0
        %v3455 = vadd.f32 %v3330, %v3454
        %v3456 = vpop.f32.mrb[0].mxu0
        %v3457 = vpop.f32.mrb[0].mxu0
        %v3458 = vadd.f32 %v3330, %v3457
        %v3459 = vpop.f32.mrb[0].mxu0
        %3460 = vmatprep.mubr.bf16.mxu0 0
        %3461 = vmatmul.mubr.bf16.gmra.mrb[0].mxu0 %v3307
        %v3462 = vpop.f32.mrb[0].mxu0
        %v3463 = vadd.f32 %v3330, %v3462
        %v3464 = vpop.f32.mrb[0].mxu0
        %v3465 = vpop.f32.mrb[0].mxu0
        %v3466 = vadd.f32 %v3330, %v3465
        %v3467 = vpop.f32.mrb[0].mxu0
        %3468 = vmatprep.mubr.bf16.mxu0 0
        %3469 = vmatmul.mubr.bf16.gmra.mrb[0].mxu0 %v3308
        %v3470 = vpop.f32.mrb[0].mxu0
        %v3471 = vadd.f32 %v3330, %v3470
        %v3472 = vpop.f32.mrb[0].mxu0
        %v3473 = vpop.f32.mrb[0].mxu0
        %v3474 = vadd.f32 %v3330, %v3473
        %v3475 = vpop.f32.mrb[0].mxu0
        %3476 = vdwg.mxu0
        %v3477 = vmax.f32 %v3415, 0.0
        %v3478 = vmax.f32 %v3418, 0.0
        %v3479 = vmax.f32 %v3423, 0.0
        %v3480 = vmax.f32 %v3426, 0.0
        %v3481 = vmax.f32 %v3431, 0.0
        %v3482 = vmax.f32 %v3434, 0.0
        %v3483 = vmax.f32 %v3439, 0.0
        %v3484 = vmax.f32 %v3442, 0.0
        %v3485 = vmax.f32 %v3447, 0.0
        %v3486 = vmax.f32 %v3450, 0.0
        %v3487 = vmax.f32 %v3455, 0.0
        %v3488 = vmax.f32 %v3458, 0.0
        %v3489 = vmax.f32 %v3463, 0.0
        %v3490 = vmax.f32 %v3466, 0.0
        %v3491 = vmax.f32 %v3471, 0.0
        %v3492 = vmax.f32 %v3474, 0.0
        %v3493 = vpack.c.bf16 %v3478, %v3477
        %v3494 = vpack.c.bf16 %v3480, %v3479
        %v3495 = vpack.c.bf16 %v3482, %v3481
        %v3496 = vpack.c.bf16 %v3484, %v3483
        %v3497 = vpack.c.bf16 %v3486, %v3485
        %v3498 = vpack.c.bf16 %v3488, %v3487
        %v3499 = vpack.c.bf16 %v3490, %v3489
        %v3500 = vpack.c.bf16 %v3492, %v3491
        %v3501 = vunpack.c.l.bf16 %v3493
        %v3502 = vunpack.c.h.bf16 %v3493
        %v3503 = vunpack.c.l.bf16 %v3494
        %v3504 = vunpack.c.h.bf16 %v3494
        %v3505 = vunpack.c.l.bf16 %v3495
        %v3506 = vunpack.c.h.bf16 %v3495
        %v3507 = vunpack.c.l.bf16 %v3496
        %v3508 = vunpack.c.h.bf16 %v3496
        %v3509 = vunpack.c.l.bf16 %v3497
        %v3510 = vunpack.c.h.bf16 %v3497
        %v3511 = vunpack.c.l.bf16 %v3498
        %v3512 = vunpack.c.h.bf16 %v3498
        %v3513 = vunpack.c.l.bf16 %v3499
        %v3514 = vunpack.c.h.bf16 %v3499
        %v3515 = vunpack.c.l.bf16 %v3500
        %v3516 = vunpack.c.h.bf16 %v3500
        %v3517 = vld [vmem:[%s11] sm:$0x1]
        %v3519 = vlaneseq
        %v3520 = vshrl.u32 %v3519, 7
        %v3521 = vsub.s32 0, %v3520
        %v3522 = vrot.slane %v3517, %v3521
        %v3524 = vmul.f32 %v3501, %v3522
        %v3525 = vmul.f32 %v3502, %v3522
        %v3526 = vmul.f32 %v3503, %v3522
        %v3527 = vmul.f32 %v3504, %v3522
        %v3528 = vmul.f32 %v3505, %v3522
        %v3529 = vmul.f32 %v3506, %v3522
        %v3530 = vmul.f32 %v3507, %v3522
        %v3531 = vmul.f32 %v3508, %v3522
        %v3532 = vmul.f32 %v3509, %v3522
        %v3533 = vmul.f32 %v3510, %v3522
        %v3534 = vmul.f32 %v3511, %v3522
        %v3535 = vmul.f32 %v3512, %v3522
        %v3536 = vmul.f32 %v3513, %v3522
        %v3537 = vmul.f32 %v3514, %v3522
        %v3538 = vmul.f32 %v3515, %v3522
        %v3539 = vmul.f32 %v3516, %v3522
        %3540 = vadd.xlane.f32.xlu0 %v3524
        %v3541 = vpop.xlane.xlu0 %3540
        %3542 = vadd.xlane.f32.xlu0 %v3525
        %v3543 = vpop.xlane.xlu0 %3542
        %3544 = vadd.xlane.f32.xlu0 %v3526
        %v3545 = vpop.xlane.xlu0 %3544
        %3546 = vadd.xlane.f32.xlu0 %v3527
        %v3547 = vpop.xlane.xlu0 %3546
        %3548 = vadd.xlane.f32.xlu0 %v3528
        %v3549 = vpop.xlane.xlu0 %3548
        %3550 = vadd.xlane.f32.xlu0 %v3529
        %v3551 = vpop.xlane.xlu0 %3550
        %3552 = vadd.xlane.f32.xlu0 %v3530
        %v3553 = vpop.xlane.xlu0 %3552
        %3554 = vadd.xlane.f32.xlu0 %v3531
        %v3555 = vpop.xlane.xlu0 %3554
        %3556 = vadd.xlane.f32.xlu0 %v3532
        %v3557 = vpop.xlane.xlu0 %3556
        %3558 = vadd.xlane.f32.xlu0 %v3533
        %v3559 = vpop.xlane.xlu0 %3558
        %3560 = vadd.xlane.f32.xlu0 %v3534
        %v3561 = vpop.xlane.xlu0 %3560
        %3562 = vadd.xlane.f32.xlu0 %v3535
        %v3563 = vpop.xlane.xlu0 %3562
        %3564 = vadd.xlane.f32.xlu0 %v3536
        %v3565 = vpop.xlane.xlu0 %3564
        %3566 = vadd.xlane.f32.xlu0 %v3537
        %v3567 = vpop.xlane.xlu0 %3566
        %3568 = vadd.xlane.f32.xlu0 %v3538
        %v3569 = vpop.xlane.xlu0 %3568
        %3570 = vadd.xlane.f32.xlu0 %v3539
        %v3571 = vpop.xlane.xlu0 %3570
        %v3572 = vld [vmem:[#allocation2] sm:$0x1]
        %v3574 = vlaneseq
        %v3575 = vshrl.u32 %v3574, 7
        %v3576 = vsub.s32 0, %v3575
        %v3577 = vrot.slane %v3572, %v3576
        %v3579 = vadd.f32 %v3541, %v3577
        %v3580 = vadd.f32 %v3543, %v3577
        %v3581 = vadd.f32 %v3545, %v3577
        %v3582 = vadd.f32 %v3547, %v3577
        %v3583 = vadd.f32 %v3549, %v3577
        %v3584 = vadd.f32 %v3551, %v3577
        %v3585 = vadd.f32 %v3553, %v3577
        %v3586 = vadd.f32 %v3555, %v3577
        %v3587 = vadd.f32 %v3557, %v3577
        %v3588 = vadd.f32 %v3559, %v3577
        %v3589 = vadd.f32 %v3561, %v3577
        %v3590 = vadd.f32 %v3563, %v3577
        %v3591 = vadd.f32 %v3565, %v3577
        %v3592 = vadd.f32 %v3567, %v3577
        %v3593 = vadd.f32 %v3569, %v3577
        %v3594 = vadd.f32 %v3571, %v3577
        %vm3595 = vcmask 7168
        %3596 = vst.msk [vmem:[%s488] sm:$0xff] %vm3595, %v3579
        %3597 = vst.msk [vmem:[%s488 + $0x8] sm:$0xff] %vm3595, %v3580
        %3598 = vst.msk [vmem:[%s488 + $0x10] sm:$0xff] %vm3595, %v3581
        %3599 = vst.msk [vmem:[%s488 + $0x18] sm:$0xff] %vm3595, %v3582
        %3600 = vst.msk [vmem:[%s488 + $0x20] sm:$0xff] %vm3595, %v3583
        %3601 = vst.msk [vmem:[%s488 + $0x28] sm:$0xff] %vm3595, %v3584
        %3602 = vst.msk [vmem:[%s488 + $0x30] sm:$0xff] %vm3595, %v3585
        %3603 = vst.msk [vmem:[%s488 + $0x38] sm:$0xff] %vm3595, %v3586
        %3604 = vst.msk [vmem:[%s488 + $0x40] sm:$0xff] %vm3595, %v3587
        %3605 = vst.msk [vmem:[%s488 + $0x48] sm:$0xff] %vm3595, %v3588
        %3606 = vst.msk [vmem:[%s488 + $0x50] sm:$0xff] %vm3595, %v3589
        %3607 = vst.msk [vmem:[%s488 + $0x58] sm:$0xff] %vm3595, %v3590
        %3608 = vst.msk [vmem:[%s488 + $0x60] sm:$0xff] %vm3595, %v3591
        %3609 = vst.msk [vmem:[%s488 + $0x68] sm:$0xff] %vm3595, %v3592
        %3610 = vst.msk [vmem:[%s488 + $0x70] sm:$0xff] %vm3595, %v3593
        %3611 = vst.msk [vmem:[%s488 + $0x78] sm:$0xff] %vm3595, %v3594
        %s3612 = smul.u32 16, %s28
        %p3613 = scmp.lt.s32.totalorder %s3612, 31
        %s3614 = scalar_select %p3613, %s3612, 31
        %s3615 = smul.addr %s3614, 8
        %s3616 = scalar_lea.vmem %s13, %s3615
        // Predicated region
        $region85: #{mlp3_forward.1} parent=71 // pred_check
          %p3617 = pneg %p324
        $region86: #{mlp3_forward.1} parent=71 // pred_check_branch
          %3619 = sbr.rel (%p3617) target = $region88
        $region87: #{mlp3_forward.1} parent=71 // pred_region
          %s3620 = smul.u32 16, %s28
        $region88: #{mlp3_forward.1} parent=71 // pred_fallthru
          _
      $region72: #{mlp3_forward.1} parent=5 // pred_fallthru
        _
      %p3621 = scmp.le.s32.totalorder 2, %s23
      // Predicated region
      $region89: #{mlp3_forward.1} parent=5 // pred_check
        %p3622 = pneg %p3621
      $region90: #{mlp3_forward.1} parent=5 // pred_check_branch
        %3624 = sbr.rel (%p3622) target = $region92
      $region91: #{mlp3_forward.1} parent=5 // pred_region
        %s3625 = ssub.s32 %s23, 2
        // Predicated region
        $region93: #{mlp3_forward.1} parent=91 // pred_check
          %p3626 = pneg %p330
        $region94: #{mlp3_forward.1} parent=91 // pred_check_branch
          %3628 = sbr.rel (%p3626) target = $region96
        $region95: #{mlp3_forward.1} parent=91 // pred_region
          %s3629 = smul.u32 16, %s29
          %p3630 = scmp.lt.s32.totalorder %s3629, 31
          %s3631 = scalar_select %p3630, %s3629, 31
          %s3632 = smul.addr %s3631, 8
          %s3633 = scalar_lea.vmem %s13, %s3632
        $region96: #{mlp3_forward.1} parent=91 // pred_fallthru
          _
      $region92: #{mlp3_forward.1} parent=5 // pred_fallthru
        _
    $region6: #{mlp3_forward.1} parent=1 // loop_footer
      %s27 = sadd.s32 1, %s23
    $region7: #{mlp3_forward.1} parent=1 // loop_footer_branch
      %22 = sbr.rel target = $region3
    $region8: #{mlp3_forward.1} parent=1 // loop_exit
      _
    %3634 = vsyncpa [#allocation4], 1
    %s3635 = scalar_lea.sflag [#allocation4], 1
    %3636 = vsyncpa %s3635, 1
    %3637 = vsyncpa [#allocation6], 1

</llo_original>
